<compile_context>
chip_gen: v5e
topology: v5e:2x2
jax: 0.10.0
libtpu: 0.0.40
codegen_flags: <defaults>
</compile_context>

<pallas_src>
import jax
import jax.numpy as jnp
import numpy as np
from jax.experimental import pallas as pl
from jax.experimental.pallas import tpu as pltpu

# ---- model hyper-parameters (small, consistent with the module) ----
NUM_LAYERS = 2
EMB = 32           # d_model
NHEAD = 4
HEAD_DIM = EMB // NHEAD
FFN = 64           # dim_feedforward
SEQ = 8
BATCH = 2
LN_EPS = 1e-5
N_TOK = BATCH * SEQ


def _layer_norm(v, g, b):
    mu = jnp.mean(v, axis=-1, keepdims=True)
    c = v - mu
    var = jnp.mean(c * c, axis=-1, keepdims=True)
    return c * jax.lax.rsqrt(var + LN_EPS) * g + b


def _encoder_kernel(x_ref, wa_ref, w2_ref, sp_ref, o_ref):
    # x: running activation, tokens in seq-major order (row = s*BATCH + b).
    x = x_ref[...]                                   # (N_TOK, EMB) f32
    scale = 1.0 / (HEAD_DIM ** 0.5)

    # Cross-sequence attention mask, built ONCE (hoisted out of the layer
    # loop).  Tokens n and m belong to the same sequence iff n % B == m % B.
    row_b = jax.lax.broadcasted_iota(jnp.int32, (N_TOK, N_TOK), 0) % BATCH
    col_b = jax.lax.broadcasted_iota(jnp.int32, (N_TOK, N_TOK), 1) % BATCH
    attn_bias = jnp.where(row_b == col_b, 0.0, jnp.float32(-1e30))   # (N, N)

    for l in range(NUM_LAYERS):                      # static unroll (2 layers)
        # ---- unpack this layer's params from the packed slabs ----
        wa = wa_ref[l]                               # (3, EMB, 3*EMB)
        w_in = wa[0]                                 # (EMB, 3*EMB)
        w_o = wa[1, :, 0:EMB]                        # (EMB, EMB)
        w_1 = wa[2, :, 0:FFN]                        # (EMB, FFN)
        w_2 = w2_ref[l]                              # (FFN, EMB)
        sp = sp_ref[l]                               # (8, 3*EMB)
        b_in = sp[0:1, 0:3 * EMB]
        b_o = sp[1:2, 0:EMB]
        b_1 = sp[2:3, 0:FFN]
        b_2 = sp[3:4, 0:EMB]
        g_1 = sp[4:5, 0:EMB]
        be_1 = sp[5:6, 0:EMB]
        g_2 = sp[6:7, 0:EMB]
        be_2 = sp[7:8, 0:EMB]

        # ---- fused QKV projection: one (N, E) @ (E, 3E) matmul ----
        qkv = jnp.dot(x, w_in, preferred_element_type=jnp.float32) + b_in

        # ---- head split: one reshape + one leading-dim transpose ----
        # columns are ordered (which in {q,k,v}, head, dim), so the middle
        # axis of the reshape is exactly which*NHEAD + head.
        qkv_h = jnp.transpose(qkv.reshape(N_TOK, 3 * NHEAD, HEAD_DIM),
                              (1, 0, 2))             # (3H, N, D)
        q = qkv_h[0:NHEAD]                           # (H, N, D)
        k = qkv_h[NHEAD:2 * NHEAD]
        v = qkv_h[2 * NHEAD:3 * NHEAD]

        # ---- attention: one batched matmul + one softmax for all heads ----
        s = jnp.einsum('hnd,hmd->hnm', q, k,
                       preferred_element_type=jnp.float32) * scale
        s = s + attn_bias                            # mask cross-sequence pairs
        s = s - jnp.max(s, axis=-1, keepdims=True)
        p = jnp.exp(s)
        # exact divide (approx reciprocal would risk the 1e-4 tolerance)
        p = p / jnp.sum(p, axis=-1, keepdims=True)
        ctx = jnp.einsum('hnm,hmd->hnd', p, v,
                         preferred_element_type=jnp.float32)          # (H, N, D)
        ctx = jnp.transpose(ctx, (1, 0, 2)).reshape(N_TOK, EMB)       # (N, E)
        attn = jnp.dot(ctx, w_o, preferred_element_type=jnp.float32) + b_o

        # ---- post-norm residual blocks (norm_first=False); dropout == identity ----
        y = _layer_norm(x + attn, g_1, be_1)

        ff = jnp.dot(y, w_1, preferred_element_type=jnp.float32) + b_1
        ff = jnp.maximum(ff, 0.0)                                     # ReLU
        ff = jnp.dot(ff, w_2, preferred_element_type=jnp.float32) + b_2
        x = _layer_norm(y + ff, g_2, be_2)

    o_ref[...] = x
    # TODO(synk): src_mask / src_key_padding_mask paths not implemented
    # (the module's forward is exercised with mask=None).


def pack_params(params):
    """Host-side, one-time packing of per-layer params into 3 VMEM slabs."""
    L, E, F = NUM_LAYERS, EMB, FFN
    t = lambda w: jnp.swapaxes(w, 1, 2)                      # (L,out,in)->(L,in,out)
    w_in = jnp.concatenate([t(params['wq']), t(params['wk']), t(params['wv'])],
                           axis=-1)                          # (L, E, 3E)
    wa = jnp.zeros((L, 3, E, 3 * E), jnp.float32)
    wa = wa.at[:, 0, :, :].set(w_in)
    wa = wa.at[:, 1, :, :E].set(t(params['wo']))
    wa = wa.at[:, 2, :, :F].set(t(params['w1']))
    w2 = t(params['w2'])                                     # (L, F, E)

    sp = jnp.zeros((L, 8, 3 * E), jnp.float32)
    b_in = jnp.concatenate([params['bq'], params['bk'], params['bv']],
                           axis=-1)[:, 0, :]                 # (L, 3E)
    sp = sp.at[:, 0, :].set(b_in)
    sp = sp.at[:, 1, :E].set(params['bo'][:, 0])
    sp = sp.at[:, 2, :F].set(params['b1'][:, 0])
    sp = sp.at[:, 3, :E].set(params['b2'][:, 0])
    sp = sp.at[:, 4, :E].set(params['g1'][:, 0])
    sp = sp.at[:, 5, :E].set(params['be1'][:, 0])
    sp = sp.at[:, 6, :E].set(params['g2'][:, 0])
    sp = sp.at[:, 7, :E].set(params['be2'][:, 0])
    return {'wa': wa, 'w2': w2, 'sp': sp}


@jax.jit
def transformer_encoder(src_sbe, packed):
    """src_sbe: (S, B, E) float32, PyTorch layout. Returns (S, B, E)."""
    # Free view: seq-major token flattening (no XLA transpose).
    x = src_sbe.reshape(N_TOK, EMB)

    vmem = lambda: pl.BlockSpec(memory_space=pltpu.MemorySpace.VMEM)
    out = pl.pallas_call(
        _encoder_kernel,
        out_shape=jax.ShapeDtypeStruct((N_TOK, EMB), jnp.float32),
        in_specs=[vmem(), vmem(), vmem(), vmem()],   # 4 refs, whole arrays in VMEM
        out_specs=vmem(),
    )(x, packed['wa'], packed['w2'], packed['sp'])

    return out.reshape(SEQ, BATCH, EMB)              # free view back to (S, B, E)


# ---------------- pure-JAX reference (same math, no Pallas) ----------------
def _reference(src_sbe, params):
    x = jnp.transpose(src_sbe, (1, 0, 2))    # (B, S, E)

    def lin(v, w, b):                        # w: (out, in), b: (out,)
        return jnp.einsum('bsi,oi->bso', v, w) + b

    def ln(v, g, b):
        mu = jnp.mean(v, axis=-1, keepdims=True)
        var = jnp.mean((v - mu) ** 2, axis=-1, keepdims=True)
        return (v - mu) / jnp.sqrt(var + LN_EPS) * g + b

    for l in range(NUM_LAYERS):
        q = lin(x, params['wq'][l], params['bq'][l, 0])
        k = lin(x, params['wk'][l], params['bk'][l, 0])
        v = lin(x, params['wv'][l], params['bv'][l, 0])
        outs = []
        for h in range(NHEAD):
            sl = slice(h * HEAD_DIM, (h + 1) * HEAD_DIM)
            s = jnp.einsum('bqd,bkd->bqk', q[..., sl], k[..., sl]) / np.sqrt(HEAD_DIM)
            p = jax.nn.softmax(s, axis=-1)
            outs.append(jnp.einsum('bqk,bkd->bqd', p, v[..., sl]))
        attn = lin(jnp.concatenate(outs, axis=-1),
                   params['wo'][l], params['bo'][l, 0])
        y = ln(x + attn, params['g1'][l, 0], params['be1'][l, 0])
        ff = jax.nn.relu(lin(y, params['w1'][l], params['b1'][l, 0]))
        ff = lin(ff, params['w2'][l], params['b2'][l, 0])
        x = ln(y + ff, params['g2'][l, 0], params['be2'][l, 0])
    return jnp.transpose(x, (1, 0, 2))


def _init_params(key):
    """Deterministic synthetic weights matching nn.TransformerEncoderLayer shapes."""
    ks = jax.random.split(key, 20)
    L, E, F = NUM_LAYERS, EMB, FFN
    n = lambda k, shape, s=0.05: (jax.random.normal(k, shape, jnp.float32) * s)
    return {
        # in_proj_weight (3E, E) split into q/k/v pieces; biases kept (L, 1, dim)
        'wq': n(ks[0], (L, E, E)), 'wk': n(ks[1], (L, E, E)), 'wv': n(ks[2], (L, E, E)),
        'bq': n(ks[3], (L, 1, E)), 'bk': n(ks[4], (L, 1, E)), 'bv': n(ks[5], (L, 1, E)),
        'wo': n(ks[6], (L, E, E)), 'bo': n(ks[7], (L, 1, E)),
        'w1': n(ks[8], (L, F, E)), 'b1': n(ks[9], (L, 1, F)),
        'w2': n(ks[10], (L, E, F)), 'b2': n(ks[11], (L, 1, E)),
        'g1': 1.0 + n(ks[12], (L, 1, E), 0.01), 'be1': n(ks[13], (L, 1, E)),
        'g2': 1.0 + n(ks[14], (L, 1, E), 0.01), 'be2': n(ks[15], (L, 1, E)),
    }


if __name__ == "__main__":
    key = jax.random.PRNGKey(0)
    k_src, k_par = jax.random.split(key)

    src = jax.random.normal(k_src, (SEQ, BATCH, EMB), jnp.float32)  # (S, B, E)
    params = _init_params(k_par)
    packed = pack_params(params)                                    # one-time packing

    out = transformer_encoder(src, packed)
    out = jax.block_until_ready(out)

    ref = _reference(src, params)
    np.testing.assert_allclose(np.asarray(out), np.asarray(ref),
                               rtol=1e-4, atol=1e-4)
    assert out.shape == (SEQ, BATCH, EMB)
    print("KERNEL_OK")
</pallas_src>

<mosaic_0001>
module attributes {stable_mosaic.version = 11 : i64} {
  func.func @_encoder_kernel(%arg0: memref<16x32xf32, #tpu.memory_space<vmem>>, %arg1: memref<2x3x32x96xf32, #tpu.memory_space<vmem>>, %arg2: memref<2x64x32xf32, #tpu.memory_space<vmem>>, %arg3: memref<2x8x96xf32, #tpu.memory_space<vmem>>, %arg4: memref<16x32xf32, #tpu.memory_space<vmem>>) attributes {dimension_semantics = [], scalar_prefetch = 0 : i64, scratch_operands = 0 : i64, tpu.core_type = #tpu.core_type<tc>} {
    %c0 = arith.constant 0 : index
    %c0_0 = arith.constant 0 : index
    %0 = vector.load %arg0[%c0, %c0_0] : memref<16x32xf32, #tpu.memory_space<vmem>>, vector<16x32xf32>
    %1 = tpu.iota {dimensions = array<i32: 0>} : vector<16x16xi32>
    %c2_i32 = arith.constant 2 : i32
    %c0_i32 = arith.constant 0 : i32
    %2 = arith.cmpi eq, %c2_i32, %c0_i32 : i32
    %c1_i32 = arith.constant 1 : i32
    %3 = arith.select %2, %c1_i32, %c2_i32 : i32
    %4 = vector.broadcast %3 : i32 to vector<16x16xi32>
    %5 = arith.remsi %1, %4 : vector<16x16xi32>
    %c0_i32_1 = arith.constant 0 : i32
    %6 = vector.broadcast %c0_i32_1 : i32 to vector<16x16xi32>
    %7 = arith.cmpi ne, %5, %6 : vector<16x16xi32>
    %c0_i32_2 = arith.constant 0 : i32
    %8 = vector.broadcast %c0_i32_2 : i32 to vector<16x16xi32>
    %9 = arith.cmpi slt, %5, %8 : vector<16x16xi32>
    %c0_i32_3 = arith.constant 0 : i32
    %10 = arith.cmpi slt, %3, %c0_i32_3 : i32
    %11 = vector.broadcast %10 : i1 to vector<16x16xi1>
    %12 = vector.broadcast %11 : vector<16x16xi1> to vector<16x16xi1>
    %13 = arith.xori %9, %12 : vector<16x16xi1>
    %14 = arith.andi %13, %7 : vector<16x16xi1>
    %15 = vector.broadcast %3 : i32 to vector<16x16xi32>
    %16 = arith.addi %5, %15 : vector<16x16xi32>
    %17 = arith.select %14, %16, %5 : vector<16x16xi1>, vector<16x16xi32>
    %18 = tpu.iota {dimensions = array<i32: 1>} : vector<16x16xi32>
    %c2_i32_4 = arith.constant 2 : i32
    %c0_i32_5 = arith.constant 0 : i32
    %19 = arith.cmpi eq, %c2_i32_4, %c0_i32_5 : i32
    %c1_i32_6 = arith.constant 1 : i32
    %20 = arith.select %19, %c1_i32_6, %c2_i32_4 : i32
    %21 = vector.broadcast %20 : i32 to vector<16x16xi32>
    %22 = arith.remsi %18, %21 : vector<16x16xi32>
    %c0_i32_7 = arith.constant 0 : i32
    %23 = vector.broadcast %c0_i32_7 : i32 to vector<16x16xi32>
    %24 = arith.cmpi ne, %22, %23 : vector<16x16xi32>
    %c0_i32_8 = arith.constant 0 : i32
    %25 = vector.broadcast %c0_i32_8 : i32 to vector<16x16xi32>
    %26 = arith.cmpi slt, %22, %25 : vector<16x16xi32>
    %c0_i32_9 = arith.constant 0 : i32
    %27 = arith.cmpi slt, %20, %c0_i32_9 : i32
    %28 = vector.broadcast %27 : i1 to vector<16x16xi1>
    %29 = vector.broadcast %28 : vector<16x16xi1> to vector<16x16xi1>
    %30 = arith.xori %26, %29 : vector<16x16xi1>
    %31 = arith.andi %30, %24 : vector<16x16xi1>
    %32 = vector.broadcast %20 : i32 to vector<16x16xi32>
    %33 = arith.addi %22, %32 : vector<16x16xi32>
    %34 = arith.select %31, %33, %22 : vector<16x16xi1>, vector<16x16xi32>
    %35 = arith.cmpi eq, %17, %34 : vector<16x16xi32>
    %cst = arith.constant 0.000000e+00 : f32
    %cst_10 = arith.constant -1.000000e+30 : f32
    %36 = vector.broadcast %cst : f32 to vector<16x16xf32>
    %37 = vector.broadcast %cst_10 : f32 to vector<16x16xf32>
    %38 = arith.select %35, %36, %37 : vector<16x16xi1>, vector<16x16xf32>
    %c0_11 = arith.constant 0 : index
    %c0_12 = arith.constant 0 : index
    %c0_13 = arith.constant 0 : index
    %c0_14 = arith.constant 0 : index
    %39 = vector.load %arg1[%c0_11, %c0_12, %c0_13, %c0_14] : memref<2x3x32x96xf32, #tpu.memory_space<vmem>>, vector<1x3x32x96xf32>
    %40 = vector.shape_cast %39 : vector<1x3x32x96xf32> to vector<3x32x96xf32>
    %41 = vector.extract_strided_slice %40 {offsets = [0, 0, 0], sizes = [1, 32, 96], strides = [1, 1, 1]} : vector<3x32x96xf32> to vector<1x32x96xf32>
    %42 = vector.shape_cast %41 : vector<1x32x96xf32> to vector<32x96xf32>
    %43 = vector.extract_strided_slice %40 {offsets = [1, 0, 0], sizes = [1, 32, 32], strides = [1, 1, 1]} : vector<3x32x96xf32> to vector<1x32x32xf32>
    %44 = vector.shape_cast %43 : vector<1x32x32xf32> to vector<32x32xf32>
    %45 = vector.extract_strided_slice %40 {offsets = [2, 0, 0], sizes = [1, 32, 64], strides = [1, 1, 1]} : vector<3x32x96xf32> to vector<1x32x64xf32>
    %46 = vector.shape_cast %45 : vector<1x32x64xf32> to vector<32x64xf32>
    %c0_15 = arith.constant 0 : index
    %c0_16 = arith.constant 0 : index
    %c0_17 = arith.constant 0 : index
    %47 = vector.load %arg2[%c0_15, %c0_16, %c0_17] : memref<2x64x32xf32, #tpu.memory_space<vmem>>, vector<1x64x32xf32>
    %48 = vector.shape_cast %47 : vector<1x64x32xf32> to vector<64x32xf32>
    %c0_18 = arith.constant 0 : index
    %c0_19 = arith.constant 0 : index
    %c0_20 = arith.constant 0 : index
    %49 = vector.load %arg3[%c0_18, %c0_19, %c0_20] : memref<2x8x96xf32, #tpu.memory_space<vmem>>, vector<1x8x96xf32>
    %50 = vector.shape_cast %49 : vector<1x8x96xf32> to vector<8x96xf32>
    %51 = vector.extract_strided_slice %50 {offsets = [0, 0], sizes = [1, 96], strides = [1, 1]} : vector<8x96xf32> to vector<1x96xf32>
    %52 = vector.extract_strided_slice %50 {offsets = [1, 0], sizes = [1, 32], strides = [1, 1]} : vector<8x96xf32> to vector<1x32xf32>
    %53 = vector.extract_strided_slice %50 {offsets = [2, 0], sizes = [1, 64], strides = [1, 1]} : vector<8x96xf32> to vector<1x64xf32>
    %54 = vector.extract_strided_slice %50 {offsets = [3, 0], sizes = [1, 32], strides = [1, 1]} : vector<8x96xf32> to vector<1x32xf32>
    %55 = vector.extract_strided_slice %50 {offsets = [4, 0], sizes = [1, 32], strides = [1, 1]} : vector<8x96xf32> to vector<1x32xf32>
    %56 = vector.extract_strided_slice %50 {offsets = [5, 0], sizes = [1, 32], strides = [1, 1]} : vector<8x96xf32> to vector<1x32xf32>
    %57 = vector.extract_strided_slice %50 {offsets = [6, 0], sizes = [1, 32], strides = [1, 1]} : vector<8x96xf32> to vector<1x32xf32>
    %58 = vector.extract_strided_slice %50 {offsets = [7, 0], sizes = [1, 32], strides = [1, 1]} : vector<8x96xf32> to vector<1x32xf32>
    %cst_21 = arith.constant dense<0.000000e+00> : vector<16x96xf32>
    %59 = tpu.matmul %0, %42, %cst_21 {dimension_numbers = #tpu.dot_dimension_numbers<[1], [0], [0], [1], [0, 0, 1, 1], [], []>} : vector<16x32xf32>, vector<32x96xf32>, vector<16x96xf32> -> vector<16x96xf32>
    %60 = vector.broadcast %51 : vector<1x96xf32> to vector<16x96xf32>
    %61 = arith.addf %59, %60 : vector<16x96xf32>
    %62 = vector.shape_cast %61 : vector<16x96xf32> to vector<16x12x8xf32>
    %63 = tpu.transpose %62, [1, 0, 2] : vector<16x12x8xf32> -> vector<12x16x8xf32>
    %64 = vector.extract_strided_slice %63 {offsets = [0, 0, 0], sizes = [4, 16, 8], strides = [1, 1, 1]} : vector<12x16x8xf32> to vector<4x16x8xf32>
    %65 = vector.extract_strided_slice %63 {offsets = [4, 0, 0], sizes = [4, 16, 8], strides = [1, 1, 1]} : vector<12x16x8xf32> to vector<4x16x8xf32>
    %66 = vector.extract_strided_slice %63 {offsets = [8, 0, 0], sizes = [4, 16, 8], strides = [1, 1, 1]} : vector<12x16x8xf32> to vector<4x16x8xf32>
    "tpu.trace_start"() <{level = 10 : i32, message = "hnd,hmd->hnm"}> : () -> ()
    %cst_22 = arith.constant dense<0.000000e+00> : vector<4x16x16xf32>
    %67 = tpu.matmul %64, %65, %cst_22 {dimension_numbers = #tpu.dot_dimension_numbers<[2], [2], [1], [1], [0, 0, 0, 1, 1, 1], [0], [0]>} : vector<4x16x8xf32>, vector<4x16x8xf32>, vector<4x16x16xf32> -> vector<4x16x16xf32>
    "tpu.trace_stop"() : () -> ()
    %cst_23 = arith.constant 0.353553385 : f32
    %68 = vector.broadcast %cst_23 : f32 to vector<4x16x16xf32>
    %69 = arith.mulf %67, %68 : vector<4x16x16xf32>
    %70 = vector.shape_cast %38 : vector<16x16xf32> to vector<1x16x16xf32>
    %71 = vector.broadcast %70 : vector<1x16x16xf32> to vector<4x16x16xf32>
    %72 = arith.addf %69, %71 : vector<4x16x16xf32>
    %cst_24 = arith.constant dense<0xFF800000> : vector<4x16xf32>
    %73 = vector.multi_reduction <maximumf>, %72, %cst_24 [2] : vector<4x16x16xf32> to vector<4x16xf32>
    %74 = vector.shape_cast %73 : vector<4x16xf32> to vector<4x16x1xf32>
    %75 = vector.broadcast %74 : vector<4x16x1xf32> to vector<4x16x16xf32>
    %76 = arith.subf %72, %75 : vector<4x16x16xf32>
    %77 = math.exp %76 : vector<4x16x16xf32>
    %cst_25 = arith.constant dense<0.000000e+00> : vector<4x16xf32>
    %78 = vector.multi_reduction <add>, %77, %cst_25 [2] : vector<4x16x16xf32> to vector<4x16xf32>
    %79 = vector.shape_cast %78 : vector<4x16xf32> to vector<4x16x1xf32>
    %80 = vector.broadcast %79 : vector<4x16x1xf32> to vector<4x16x16xf32>
    %81 = arith.divf %77, %80 : vector<4x16x16xf32>
    "tpu.trace_start"() <{level = 10 : i32, message = "hnm,hmd->hnd"}> : () -> ()
    %cst_26 = arith.constant dense<0.000000e+00> : vector<4x16x8xf32>
    %82 = tpu.matmul %81, %66, %cst_26 {dimension_numbers = #tpu.dot_dimension_numbers<[2], [1], [1], [2], [0, 0, 0, 1, 1, 2], [0], [0]>} : vector<4x16x16xf32>, vector<4x16x8xf32>, vector<4x16x8xf32> -> vector<4x16x8xf32>
    "tpu.trace_stop"() : () -> ()
    %83 = tpu.transpose %82, [1, 0, 2] : vector<4x16x8xf32> -> vector<16x4x8xf32>
    %84 = vector.shape_cast %83 : vector<16x4x8xf32> to vector<16x32xf32>
    %cst_27 = arith.constant dense<0.000000e+00> : vector<16x32xf32>
    %85 = tpu.matmul %84, %44, %cst_27 {dimension_numbers = #tpu.dot_dimension_numbers<[1], [0], [0], [1], [0, 0, 1, 1], [], []>} : vector<16x32xf32>, vector<32x32xf32>, vector<16x32xf32> -> vector<16x32xf32>
    %86 = vector.broadcast %52 : vector<1x32xf32> to vector<16x32xf32>
    %87 = arith.addf %85, %86 : vector<16x32xf32>
    %88 = arith.addf %0, %87 : vector<16x32xf32>
    %cst_28 = arith.constant dense<0.000000e+00> : vector<16xf32>
    %89 = vector.multi_reduction <add>, %88, %cst_28 [1] : vector<16x32xf32> to vector<16xf32>
    %90 = vector.shape_cast %89 : vector<16xf32> to vector<16x1xf32>
    %cst_29 = arith.constant 3.200000e+01 : f32
    %91 = vector.broadcast %cst_29 : f32 to vector<16x1xf32>
    %92 = arith.divf %90, %91 : vector<16x1xf32>
    %93 = vector.broadcast %92 : vector<16x1xf32> to vector<16x32xf32>
    %94 = arith.subf %88, %93 : vector<16x32xf32>
    %95 = arith.mulf %94, %94 : vector<16x32xf32>
    %cst_30 = arith.constant dense<0.000000e+00> : vector<16xf32>
    %96 = vector.multi_reduction <add>, %95, %cst_30 [1] : vector<16x32xf32> to vector<16xf32>
    %97 = vector.shape_cast %96 : vector<16xf32> to vector<16x1xf32>
    %cst_31 = arith.constant 3.200000e+01 : f32
    %98 = vector.broadcast %cst_31 : f32 to vector<16x1xf32>
    %99 = arith.divf %97, %98 : vector<16x1xf32>
    %cst_32 = arith.constant 9.99999974E-6 : f32
    %100 = vector.broadcast %cst_32 : f32 to vector<16x1xf32>
    %101 = arith.addf %99, %100 : vector<16x1xf32>
    %102 = math.rsqrt %101 : vector<16x1xf32>
    %103 = vector.broadcast %102 : vector<16x1xf32> to vector<16x32xf32>
    %104 = arith.mulf %94, %103 : vector<16x32xf32>
    %105 = vector.broadcast %55 : vector<1x32xf32> to vector<16x32xf32>
    %106 = arith.mulf %104, %105 : vector<16x32xf32>
    %107 = vector.broadcast %56 : vector<1x32xf32> to vector<16x32xf32>
    %108 = arith.addf %106, %107 : vector<16x32xf32>
    %cst_33 = arith.constant dense<0.000000e+00> : vector<16x64xf32>
    %109 = tpu.matmul %108, %46, %cst_33 {dimension_numbers = #tpu.dot_dimension_numbers<[1], [0], [0], [1], [0, 0, 1, 1], [], []>} : vector<16x32xf32>, vector<32x64xf32>, vector<16x64xf32> -> vector<16x64xf32>
    %110 = vector.broadcast %53 : vector<1x64xf32> to vector<16x64xf32>
    %111 = arith.addf %109, %110 : vector<16x64xf32>
    %cst_34 = arith.constant 0.000000e+00 : f32
    %112 = vector.broadcast %cst_34 : f32 to vector<16x64xf32>
    %113 = arith.maximumf %111, %112 : vector<16x64xf32>
    %cst_35 = arith.constant dense<0.000000e+00> : vector<16x32xf32>
    %114 = tpu.matmul %113, %48, %cst_35 {dimension_numbers = #tpu.dot_dimension_numbers<[1], [0], [0], [1], [0, 0, 1, 1], [], []>} : vector<16x64xf32>, vector<64x32xf32>, vector<16x32xf32> -> vector<16x32xf32>
    %115 = vector.broadcast %54 : vector<1x32xf32> to vector<16x32xf32>
    %116 = arith.addf %114, %115 : vector<16x32xf32>
    %117 = arith.addf %108, %116 : vector<16x32xf32>
    %cst_36 = arith.constant dense<0.000000e+00> : vector<16xf32>
    %118 = vector.multi_reduction <add>, %117, %cst_36 [1] : vector<16x32xf32> to vector<16xf32>
    %119 = vector.shape_cast %118 : vector<16xf32> to vector<16x1xf32>
    %cst_37 = arith.constant 3.200000e+01 : f32
    %120 = vector.broadcast %cst_37 : f32 to vector<16x1xf32>
    %121 = arith.divf %119, %120 : vector<16x1xf32>
    %122 = vector.broadcast %121 : vector<16x1xf32> to vector<16x32xf32>
    %123 = arith.subf %117, %122 : vector<16x32xf32>
    %124 = arith.mulf %123, %123 : vector<16x32xf32>
    %cst_38 = arith.constant dense<0.000000e+00> : vector<16xf32>
    %125 = vector.multi_reduction <add>, %124, %cst_38 [1] : vector<16x32xf32> to vector<16xf32>
    %126 = vector.shape_cast %125 : vector<16xf32> to vector<16x1xf32>
    %cst_39 = arith.constant 3.200000e+01 : f32
    %127 = vector.broadcast %cst_39 : f32 to vector<16x1xf32>
    %128 = arith.divf %126, %127 : vector<16x1xf32>
    %cst_40 = arith.constant 9.99999974E-6 : f32
    %129 = vector.broadcast %cst_40 : f32 to vector<16x1xf32>
    %130 = arith.addf %128, %129 : vector<16x1xf32>
    %131 = math.rsqrt %130 : vector<16x1xf32>
    %132 = vector.broadcast %131 : vector<16x1xf32> to vector<16x32xf32>
    %133 = arith.mulf %123, %132 : vector<16x32xf32>
    %134 = vector.broadcast %57 : vector<1x32xf32> to vector<16x32xf32>
    %135 = arith.mulf %133, %134 : vector<16x32xf32>
    %136 = vector.broadcast %58 : vector<1x32xf32> to vector<16x32xf32>
    %137 = arith.addf %135, %136 : vector<16x32xf32>
    %c1 = arith.constant 1 : index
    %c0_41 = arith.constant 0 : index
    %c0_42 = arith.constant 0 : index
    %c0_43 = arith.constant 0 : index
    %138 = vector.load %arg1[%c1, %c0_41, %c0_42, %c0_43] : memref<2x3x32x96xf32, #tpu.memory_space<vmem>>, vector<1x3x32x96xf32>
    %139 = vector.shape_cast %138 : vector<1x3x32x96xf32> to vector<3x32x96xf32>
    %140 = vector.extract_strided_slice %139 {offsets = [0, 0, 0], sizes = [1, 32, 96], strides = [1, 1, 1]} : vector<3x32x96xf32> to vector<1x32x96xf32>
    %141 = vector.shape_cast %140 : vector<1x32x96xf32> to vector<32x96xf32>
    %142 = vector.extract_strided_slice %139 {offsets = [1, 0, 0], sizes = [1, 32, 32], strides = [1, 1, 1]} : vector<3x32x96xf32> to vector<1x32x32xf32>
    %143 = vector.shape_cast %142 : vector<1x32x32xf32> to vector<32x32xf32>
    %144 = vector.extract_strided_slice %139 {offsets = [2, 0, 0], sizes = [1, 32, 64], strides = [1, 1, 1]} : vector<3x32x96xf32> to vector<1x32x64xf32>
    %145 = vector.shape_cast %144 : vector<1x32x64xf32> to vector<32x64xf32>
    %c1_44 = arith.constant 1 : index
    %c0_45 = arith.constant 0 : index
    %c0_46 = arith.constant 0 : index
    %146 = vector.load %arg2[%c1_44, %c0_45, %c0_46] : memref<2x64x32xf32, #tpu.memory_space<vmem>>, vector<1x64x32xf32>
    %147 = vector.shape_cast %146 : vector<1x64x32xf32> to vector<64x32xf32>
    %c1_47 = arith.constant 1 : index
    %c0_48 = arith.constant 0 : index
    %c0_49 = arith.constant 0 : index
    %148 = vector.load %arg3[%c1_47, %c0_48, %c0_49] : memref<2x8x96xf32, #tpu.memory_space<vmem>>, vector<1x8x96xf32>
    %149 = vector.shape_cast %148 : vector<1x8x96xf32> to vector<8x96xf32>
    %150 = vector.extract_strided_slice %149 {offsets = [0, 0], sizes = [1, 96], strides = [1, 1]} : vector<8x96xf32> to vector<1x96xf32>
    %151 = vector.extract_strided_slice %149 {offsets = [1, 0], sizes = [1, 32], strides = [1, 1]} : vector<8x96xf32> to vector<1x32xf32>
    %152 = vector.extract_strided_slice %149 {offsets = [2, 0], sizes = [1, 64], strides = [1, 1]} : vector<8x96xf32> to vector<1x64xf32>
    %153 = vector.extract_strided_slice %149 {offsets = [3, 0], sizes = [1, 32], strides = [1, 1]} : vector<8x96xf32> to vector<1x32xf32>
    %154 = vector.extract_strided_slice %149 {offsets = [4, 0], sizes = [1, 32], strides = [1, 1]} : vector<8x96xf32> to vector<1x32xf32>
    %155 = vector.extract_strided_slice %149 {offsets = [5, 0], sizes = [1, 32], strides = [1, 1]} : vector<8x96xf32> to vector<1x32xf32>
    %156 = vector.extract_strided_slice %149 {offsets = [6, 0], sizes = [1, 32], strides = [1, 1]} : vector<8x96xf32> to vector<1x32xf32>
    %157 = vector.extract_strided_slice %149 {offsets = [7, 0], sizes = [1, 32], strides = [1, 1]} : vector<8x96xf32> to vector<1x32xf32>
    %cst_50 = arith.constant dense<0.000000e+00> : vector<16x96xf32>
    %158 = tpu.matmul %137, %141, %cst_50 {dimension_numbers = #tpu.dot_dimension_numbers<[1], [0], [0], [1], [0, 0, 1, 1], [], []>} : vector<16x32xf32>, vector<32x96xf32>, vector<16x96xf32> -> vector<16x96xf32>
    %159 = vector.broadcast %150 : vector<1x96xf32> to vector<16x96xf32>
    %160 = arith.addf %158, %159 : vector<16x96xf32>
    %161 = vector.shape_cast %160 : vector<16x96xf32> to vector<16x12x8xf32>
    %162 = tpu.transpose %161, [1, 0, 2] : vector<16x12x8xf32> -> vector<12x16x8xf32>
    %163 = vector.extract_strided_slice %162 {offsets = [0, 0, 0], sizes = [4, 16, 8], strides = [1, 1, 1]} : vector<12x16x8xf32> to vector<4x16x8xf32>
    %164 = vector.extract_strided_slice %162 {offsets = [4, 0, 0], sizes = [4, 16, 8], strides = [1, 1, 1]} : vector<12x16x8xf32> to vector<4x16x8xf32>
    %165 = vector.extract_strided_slice %162 {offsets = [8, 0, 0], sizes = [4, 16, 8], strides = [1, 1, 1]} : vector<12x16x8xf32> to vector<4x16x8xf32>
    "tpu.trace_start"() <{level = 10 : i32, message = "hnd,hmd->hnm"}> : () -> ()
    %cst_51 = arith.constant dense<0.000000e+00> : vector<4x16x16xf32>
    %166 = tpu.matmul %163, %164, %cst_51 {dimension_numbers = #tpu.dot_dimension_numbers<[2], [2], [1], [1], [0, 0, 0, 1, 1, 1], [0], [0]>} : vector<4x16x8xf32>, vector<4x16x8xf32>, vector<4x16x16xf32> -> vector<4x16x16xf32>
    "tpu.trace_stop"() : () -> ()
    %cst_52 = arith.constant 0.353553385 : f32
    %167 = vector.broadcast %cst_52 : f32 to vector<4x16x16xf32>
    %168 = arith.mulf %166, %167 : vector<4x16x16xf32>
    %169 = vector.shape_cast %38 : vector<16x16xf32> to vector<1x16x16xf32>
    %170 = vector.broadcast %169 : vector<1x16x16xf32> to vector<4x16x16xf32>
    %171 = arith.addf %168, %170 : vector<4x16x16xf32>
    %cst_53 = arith.constant dense<0xFF800000> : vector<4x16xf32>
    %172 = vector.multi_reduction <maximumf>, %171, %cst_53 [2] : vector<4x16x16xf32> to vector<4x16xf32>
    %173 = vector.shape_cast %172 : vector<4x16xf32> to vector<4x16x1xf32>
    %174 = vector.broadcast %173 : vector<4x16x1xf32> to vector<4x16x16xf32>
    %175 = arith.subf %171, %174 : vector<4x16x16xf32>
    %176 = math.exp %175 : vector<4x16x16xf32>
    %cst_54 = arith.constant dense<0.000000e+00> : vector<4x16xf32>
    %177 = vector.multi_reduction <add>, %176, %cst_54 [2] : vector<4x16x16xf32> to vector<4x16xf32>
    %178 = vector.shape_cast %177 : vector<4x16xf32> to vector<4x16x1xf32>
    %179 = vector.broadcast %178 : vector<4x16x1xf32> to vector<4x16x16xf32>
    %180 = arith.divf %176, %179 : vector<4x16x16xf32>
    "tpu.trace_start"() <{level = 10 : i32, message = "hnm,hmd->hnd"}> : () -> ()
    %cst_55 = arith.constant dense<0.000000e+00> : vector<4x16x8xf32>
    %181 = tpu.matmul %180, %165, %cst_55 {dimension_numbers = #tpu.dot_dimension_numbers<[2], [1], [1], [2], [0, 0, 0, 1, 1, 2], [0], [0]>} : vector<4x16x16xf32>, vector<4x16x8xf32>, vector<4x16x8xf32> -> vector<4x16x8xf32>
    "tpu.trace_stop"() : () -> ()
    %182 = tpu.transpose %181, [1, 0, 2] : vector<4x16x8xf32> -> vector<16x4x8xf32>
    %183 = vector.shape_cast %182 : vector<16x4x8xf32> to vector<16x32xf32>
    %cst_56 = arith.constant dense<0.000000e+00> : vector<16x32xf32>
    %184 = tpu.matmul %183, %143, %cst_56 {dimension_numbers = #tpu.dot_dimension_numbers<[1], [0], [0], [1], [0, 0, 1, 1], [], []>} : vector<16x32xf32>, vector<32x32xf32>, vector<16x32xf32> -> vector<16x32xf32>
    %185 = vector.broadcast %151 : vector<1x32xf32> to vector<16x32xf32>
    %186 = arith.addf %184, %185 : vector<16x32xf32>
    %187 = arith.addf %137, %186 : vector<16x32xf32>
    %cst_57 = arith.constant dense<0.000000e+00> : vector<16xf32>
    %188 = vector.multi_reduction <add>, %187, %cst_57 [1] : vector<16x32xf32> to vector<16xf32>
    %189 = vector.shape_cast %188 : vector<16xf32> to vector<16x1xf32>
    %cst_58 = arith.constant 3.200000e+01 : f32
    %190 = vector.broadcast %cst_58 : f32 to vector<16x1xf32>
    %191 = arith.divf %189, %190 : vector<16x1xf32>
    %192 = vector.broadcast %191 : vector<16x1xf32> to vector<16x32xf32>
    %193 = arith.subf %187, %192 : vector<16x32xf32>
    %194 = arith.mulf %193, %193 : vector<16x32xf32>
    %cst_59 = arith.constant dense<0.000000e+00> : vector<16xf32>
    %195 = vector.multi_reduction <add>, %194, %cst_59 [1] : vector<16x32xf32> to vector<16xf32>
    %196 = vector.shape_cast %195 : vector<16xf32> to vector<16x1xf32>
    %cst_60 = arith.constant 3.200000e+01 : f32
    %197 = vector.broadcast %cst_60 : f32 to vector<16x1xf32>
    %198 = arith.divf %196, %197 : vector<16x1xf32>
    %cst_61 = arith.constant 9.99999974E-6 : f32
    %199 = vector.broadcast %cst_61 : f32 to vector<16x1xf32>
    %200 = arith.addf %198, %199 : vector<16x1xf32>
    %201 = math.rsqrt %200 : vector<16x1xf32>
    %202 = vector.broadcast %201 : vector<16x1xf32> to vector<16x32xf32>
    %203 = arith.mulf %193, %202 : vector<16x32xf32>
    %204 = vector.broadcast %154 : vector<1x32xf32> to vector<16x32xf32>
    %205 = arith.mulf %203, %204 : vector<16x32xf32>
    %206 = vector.broadcast %155 : vector<1x32xf32> to vector<16x32xf32>
    %207 = arith.addf %205, %206 : vector<16x32xf32>
    %cst_62 = arith.constant dense<0.000000e+00> : vector<16x64xf32>
    %208 = tpu.matmul %207, %145, %cst_62 {dimension_numbers = #tpu.dot_dimension_numbers<[1], [0], [0], [1], [0, 0, 1, 1], [], []>} : vector<16x32xf32>, vector<32x64xf32>, vector<16x64xf32> -> vector<16x64xf32>
    %209 = vector.broadcast %152 : vector<1x64xf32> to vector<16x64xf32>
    %210 = arith.addf %208, %209 : vector<16x64xf32>
    %cst_63 = arith.constant 0.000000e+00 : f32
    %211 = vector.broadcast %cst_63 : f32 to vector<16x64xf32>
    %212 = arith.maximumf %210, %211 : vector<16x64xf32>
    %cst_64 = arith.constant dense<0.000000e+00> : vector<16x32xf32>
    %213 = tpu.matmul %212, %147, %cst_64 {dimension_numbers = #tpu.dot_dimension_numbers<[1], [0], [0], [1], [0, 0, 1, 1], [], []>} : vector<16x64xf32>, vector<64x32xf32>, vector<16x32xf32> -> vector<16x32xf32>
    %214 = vector.broadcast %153 : vector<1x32xf32> to vector<16x32xf32>
    %215 = arith.addf %213, %214 : vector<16x32xf32>
    %216 = arith.addf %207, %215 : vector<16x32xf32>
    %cst_65 = arith.constant dense<0.000000e+00> : vector<16xf32>
    %217 = vector.multi_reduction <add>, %216, %cst_65 [1] : vector<16x32xf32> to vector<16xf32>
    %218 = vector.shape_cast %217 : vector<16xf32> to vector<16x1xf32>
    %cst_66 = arith.constant 3.200000e+01 : f32
    %219 = vector.broadcast %cst_66 : f32 to vector<16x1xf32>
    %220 = arith.divf %218, %219 : vector<16x1xf32>
    %221 = vector.broadcast %220 : vector<16x1xf32> to vector<16x32xf32>
    %222 = arith.subf %216, %221 : vector<16x32xf32>
    %223 = arith.mulf %222, %222 : vector<16x32xf32>
    %cst_67 = arith.constant dense<0.000000e+00> : vector<16xf32>
    %224 = vector.multi_reduction <add>, %223, %cst_67 [1] : vector<16x32xf32> to vector<16xf32>
    %225 = vector.shape_cast %224 : vector<16xf32> to vector<16x1xf32>
    %cst_68 = arith.constant 3.200000e+01 : f32
    %226 = vector.broadcast %cst_68 : f32 to vector<16x1xf32>
    %227 = arith.divf %225, %226 : vector<16x1xf32>
    %cst_69 = arith.constant 9.99999974E-6 : f32
    %228 = vector.broadcast %cst_69 : f32 to vector<16x1xf32>
    %229 = arith.addf %227, %228 : vector<16x1xf32>
    %230 = math.rsqrt %229 : vector<16x1xf32>
    %231 = vector.broadcast %230 : vector<16x1xf32> to vector<16x32xf32>
    %232 = arith.mulf %222, %231 : vector<16x32xf32>
    %233 = vector.broadcast %156 : vector<1x32xf32> to vector<16x32xf32>
    %234 = arith.mulf %232, %233 : vector<16x32xf32>
    %235 = vector.broadcast %157 : vector<1x32xf32> to vector<16x32xf32>
    %236 = arith.addf %234, %235 : vector<16x32xf32>
    %c0_70 = arith.constant 0 : index
    %c0_71 = arith.constant 0 : index
    %237 = vector.load %arg4[%c0_70, %c0_71] : memref<16x32xf32, #tpu.memory_space<vmem>>, vector<16x32xf32>
    tpu.vector_store %arg4[%c0_70, %c0_71], %236 {strides = array<i32>} : memref<16x32xf32, #tpu.memory_space<vmem>>, vector<16x32xf32>,
    return
  }
}

</mosaic_0001>

<llo_original>
// kernel: transformer_encoder.1
$region0: #{transformer_encoder.1}
  #allocation0 [shape = 'u32[]', space=smem, size = 0x4, offset = 0x4, fixed_abs, tag = 'smem constant byte address 0x4 - core index']
  #allocation1 [shape = 'u32[72,128]{1,0:T(1,128)}', space=vmem, size = 0x9000, scoped, tag = 'internal scratch']
  %s0 = inlined_call_operand.hbm [shape: f32[16,32], index: 0, kind: input, shape index: {}]
  %s1 = inlined_call_operand.vmem [shape: f32[2,3,32,96], index: 1, kind: input, shape index: {}]
  %s2 = inlined_call_operand.vmem [shape: f32[2,64,32], index: 2, kind: input, shape index: {}]
  %s3 = inlined_call_operand.hbm [shape: f32[2,8,96], index: 3, kind: input, shape index: {}]
  %s4 = inlined_call_operand.hbm [shape: f32[16,32], index: 4, kind: output, shape index: {}]
  %s5 = sld [smem:[#allocation0]]
  $region34: #{transformer_encoder.1} parent=0
    _
  %s7 = ssub.s32 1, %s5
  %s8 = scalar_select 0, %s7, %s5
  $region1: #{transformer_encoder.1} parent=0
    #allocation2 [shape = 'u8[8192]{0}', space=vmem, size = 0x2000, scoped, tag = 'input window, operand 0, single buffered']
    #allocation3 [shape = 's32[1]{0}', space=sflag, size = 0x4, scoped, tag = 'scoped memory for transformer_encoder.1']
    #allocation4 [shape = 's32[1]{0}', space=sflag, size = 0x4, scoped, tag = 'scoped memory for transformer_encoder.1']
    #allocation5 [shape = 'u8[8192]{0}', space=vmem, size = 0x2000, scoped, tag = 'input window, operand 3, single buffered']
    #allocation6 [shape = 's32[1]{0}', space=sflag, size = 0x4, scoped, tag = 'scoped memory for transformer_encoder.1']
    #allocation7 [shape = 'u8[8192]{0}', space=vmem, size = 0x2000, scoped, tag = 'output window, operand 0, single buffered']
    %9 = vsyncpa [#allocation3], 0
    %10 = vsyncpa [#allocation6], 0
    %11 = vsyncpa [#allocation4], 0
    // Predicated region
    $region2: #{transformer_encoder.1} parent=1 // pred_check
      _
    $region3: #{transformer_encoder.1} parent=1 // pred_check_branch
      %13 = sbr.rel (0) target = $region5
    $region4: #{transformer_encoder.1} parent=1 // pred_region
      %15 = vsyncadd [#allocation3], 0
      %s16 = sshll.u32 %s0, 4
      %s17 = int_to_ptr.hbm [resolvable:$true] %s16
      %s18 = sshll.u32 [#allocation2], 4
      %s19 = int_to_ptr.vmem [resolvable:$true] %s18
      %24 = dma.hbm_to_vmem [thread:$0]  %s17, 256, %s19, [#allocation3], 128, 128, 8
    $region5: #{transformer_encoder.1} parent=1 // pred_fallthru
      _
    // Predicated region
    $region6: #{transformer_encoder.1} parent=1 // pred_check
      _
    $region7: #{transformer_encoder.1} parent=1 // pred_check_branch
      %26 = sbr.rel (0) target = $region9
    $region8: #{transformer_encoder.1} parent=1 // pred_region
      _
    $region9: #{transformer_encoder.1} parent=1 // pred_fallthru
      _
    // Predicated region
    $region10: #{transformer_encoder.1} parent=1 // pred_check
      _
    $region11: #{transformer_encoder.1} parent=1 // pred_check_branch
      %28 = sbr.rel (0) target = $region13
    $region12: #{transformer_encoder.1} parent=1 // pred_region
      _
    $region13: #{transformer_encoder.1} parent=1 // pred_fallthru
      _
    // Predicated region
    $region14: #{transformer_encoder.1} parent=1 // pred_check
      _
    $region15: #{transformer_encoder.1} parent=1 // pred_check_branch
      %30 = sbr.rel (0) target = $region17
    $region16: #{transformer_encoder.1} parent=1 // pred_region
      %32 = vsyncadd [#allocation6], 0
      %s33 = sshll.u32 %s3, 4
      %s34 = int_to_ptr.hbm [resolvable:$true] %s33
      %s35 = sshll.u32 [#allocation5], 4
      %s36 = int_to_ptr.vmem [resolvable:$true] %s35
      %41 = dma.hbm_to_vmem [thread:$0]  %s34, 256, %s36, [#allocation6], 128, 128, 8
    $region17: #{transformer_encoder.1} parent=1 // pred_fallthru
      _
    // Predicated region
    $region18: #{transformer_encoder.1} parent=1 // pred_check
      _
    $region19: #{transformer_encoder.1} parent=1 // pred_check_branch
      %43 = sbr.rel (0) target = $region21
    $region20: #{transformer_encoder.1} parent=1 // pred_region
      %45 = dma.done [#allocation3], 256
    $region21: #{transformer_encoder.1} parent=1 // pred_fallthru
      _
    // Predicated region
    $region22: #{transformer_encoder.1} parent=1 // pred_check
      _
    $region23: #{transformer_encoder.1} parent=1 // pred_check_branch
      %47 = sbr.rel (0) target = $region25
    $region24: #{transformer_encoder.1} parent=1 // pred_region
      %49 = dma.done [#allocation6], 256
    $region25: #{transformer_encoder.1} parent=1 // pred_fallthru
      _
    %v50 = vld [vmem:[#allocation2] sm:$0xff]
    %v51 = vld [vmem:[#allocation2 + $0x8] sm:$0xff]
    %v52 = vlaneseq
    %v53 = vshrl.u32 %v52, 7
    %v54 = vadd.s32 %v53, 8
    %vm55 = vcmp.lt.s32.totalorder %v53, 0
    %v56 = vsub.s32 0, %v53
    %v57 = vsel %vm55, %v56, %v53
    %v58 = vshrl.u32 %v57, 1
    %v59 = vand.u32 %v57, 1
    %v60 = vsub.s32 0, %v59
    %v61 = vsel %vm55, %v60, %v59
    %vm62 = vcmp.lt.s32.totalorder %v54, 0
    %v63 = vsub.s32 0, %v54
    %v64 = vsel %vm62, %v63, %v54
    %v65 = vshrl.u32 %v64, 1
    %v66 = vand.u32 %v64, 1
    %v67 = vsub.s32 0, %v66
    %v68 = vsel %vm62, %v67, %v66
    %vm69 = vcmp.ne.s32.totalorder %v61, 0
    %vm70 = vcmp.ne.s32.totalorder %v68, 0
    %vm71 = vcmp.lt.s32.totalorder %v61, 0
    %vm72 = vcmp.lt.s32.totalorder %v68, 0
    %vm73 = vmand %vm71, %vm69
    %vm74 = vmand %vm72, %vm70
    %v75 = vadd.s32 %v61, 2
    %v76 = vadd.s32 %v68, 2
    %v77 = vsel %vm73, %v75, %v61
    %v78 = vsel %vm74, %v76, %v68
    %v79 = vlaneseq
    %v80 = vand.u32 %v79, 127
    %vm81 = vcmp.lt.s32.totalorder %v80, 0
    %v82 = vsub.s32 0, %v80
    %v83 = vsel %vm81, %v82, %v80
    %v84 = vshrl.u32 %v83, 1
    %v85 = vand.u32 %v83, 1
    %v86 = vsub.s32 0, %v85
    %v87 = vsel %vm81, %v86, %v85
    %vm88 = vcmp.ne.s32.totalorder %v87, 0
    %vm89 = vcmp.lt.s32.totalorder %v87, 0
    %vm90 = vmand %vm89, %vm88
    %v91 = vadd.s32 %v87, 2
    %v92 = vsel %vm90, %v91, %v87
    %vm93 = vcmp.eq.s32.totalorder %v77, %v92
    %vm94 = vcmp.eq.s32.totalorder %v78, %v92
    %v95 = vsel %vm93, 0.0, -1e+30
    %v96 = vsel %vm94, 0.0, -1e+30
    %v97 = vld [vmem:[%s1] sm:$0xff]
    %v98 = vld [vmem:[%s1 + $0x8] sm:$0xff]
    %v99 = vld [vmem:[%s1 + $0x10] sm:$0xff]
    %v100 = vld [vmem:[%s1 + $0x18] sm:$0xff]
    %v101 = vld [vmem:[%s1 + $0x20] sm:$0xff]
    %v102 = vld [vmem:[%s1 + $0x28] sm:$0xff]
    %v103 = vld [vmem:[%s1 + $0x30] sm:$0xff]
    %v104 = vld [vmem:[%s1 + $0x38] sm:$0xff]
    %v105 = vld [vmem:[%s1 + $0x40] sm:$0xff]
    %v106 = vld [vmem:[%s1 + $0x48] sm:$0xff]
    %v107 = vld [vmem:[%s1 + $0x50] sm:$0xff]
    %v108 = vld [vmem:[%s1 + $0x58] sm:$0xff]
    %v109 = vld [vmem:[%s2] sm:$0xff]
    %v110 = vld [vmem:[%s2 + $0x8] sm:$0xff]
    %v111 = vld [vmem:[%s2 + $0x10] sm:$0xff]
    %v112 = vld [vmem:[%s2 + $0x18] sm:$0xff]
    %v113 = vld [vmem:[%s2 + $0x20] sm:$0xff]
    %v114 = vld [vmem:[%s2 + $0x28] sm:$0xff]
    %v115 = vld [vmem:[%s2 + $0x30] sm:$0xff]
    %v116 = vld [vmem:[%s2 + $0x38] sm:$0xff]
    %v117 = vld [vmem:[#allocation5] sm:$0xff]
    %v118 = vperm.slane %v117, 0
    %vm119 = vcmask 261120
    %v121 = vsel %vm119, %v50, 0
    %v124 = vsel %vm119, %v51, 0
    %126 = vmatpush.msra.mxu0 0.0
    %127 = vmatpush.msra.mxu0 0.0
    %128 = vmatpush.msra.mxu0 0.0
    %129 = vmatpush.msra.mxu0 0.0
    %130 = vmatpush.msra.mxu0 0.0
    %131 = vmatpush.msra.mxu0 0.0
    %132 = vmatpush.msra.mxu0 0.0
    %133 = vmatpush.msra.mxu0 0.0
    %134 = vmatpush.msra.mxu0 0.0
    %135 = vmatpush.msra.mxu0 0.0
    %136 = vmatpush.msra.mxu0 0.0
    %137 = vmatpush.msra.mxu0 0.0
    %138 = vmatpush.msra.mxu0 %v100
    %139 = vmatpush.msra.mxu0 %v99
    %140 = vmatpush.msra.mxu0 %v98
    %141 = vmatpush.msra.mxu0 %v97
    %142 = vmatmul.f32.gmra.mxu0 %v121
    %v143 = vpop.f32.mrf.mxu0
    %v144 = vadd.f32 %v118, %v143
    %145 = vmatmul.f32.gmra.mxu0 %v124
    %v146 = vpop.f32.mrf.mxu0
    %v147 = vadd.f32 %v118, %v146
    %148 = vdwg.mxu0
    %151 = vrot.lane.b32.xlu0 %v144, 120
    %v152 = vpop.permute.xlu0 %151
    %153 = vrot.lane.b32.xlu0 %v147, 120
    %v154 = vpop.permute.xlu0 %153
    %157 = vrot.lane.b32.xlu0 %v144, 112
    %v158 = vpop.permute.xlu0 %157
    %159 = vrot.lane.b32.xlu0 %v147, 112
    %v160 = vpop.permute.xlu0 %159
    %163 = vrot.lane.b32.xlu0 %v144, 104
    %v164 = vpop.permute.xlu0 %163
    %165 = vrot.lane.b32.xlu0 %v147, 104
    %v166 = vpop.permute.xlu0 %165
    %169 = vrot.lane.b32.xlu0 %v144, 96
    %v170 = vpop.permute.xlu0 %169
    %171 = vrot.lane.b32.xlu0 %v147, 96
    %v172 = vpop.permute.xlu0 %171
    %175 = vrot.lane.b32.xlu0 %v144, 88
    %v176 = vpop.permute.xlu0 %175
    %177 = vrot.lane.b32.xlu0 %v147, 88
    %v178 = vpop.permute.xlu0 %177
    %181 = vrot.lane.b32.xlu0 %v144, 80
    %v182 = vpop.permute.xlu0 %181
    %183 = vrot.lane.b32.xlu0 %v147, 80
    %v184 = vpop.permute.xlu0 %183
    %187 = vrot.lane.b32.xlu0 %v144, 72
    %v188 = vpop.permute.xlu0 %187
    %189 = vrot.lane.b32.xlu0 %v147, 72
    %v190 = vpop.permute.xlu0 %189
    %193 = vrot.lane.b32.xlu0 %v144, 64
    %v194 = vpop.permute.xlu0 %193
    %195 = vrot.lane.b32.xlu0 %v147, 64
    %v196 = vpop.permute.xlu0 %195
    %199 = vrot.lane.b32.xlu0 %v144, 56
    %v200 = vpop.permute.xlu0 %199
    %201 = vrot.lane.b32.xlu0 %v147, 56
    %v202 = vpop.permute.xlu0 %201
    %205 = vrot.lane.b32.xlu0 %v144, 48
    %v206 = vpop.permute.xlu0 %205
    %207 = vrot.lane.b32.xlu0 %v147, 48
    %v208 = vpop.permute.xlu0 %207
    %211 = vrot.lane.b32.xlu0 %v144, 40
    %v212 = vpop.permute.xlu0 %211
    %213 = vrot.lane.b32.xlu0 %v147, 40
    %v214 = vpop.permute.xlu0 %213
    %v217 = vrot.slane %v158, 4
    %vm218 = vcmask 1047556
    %v219 = vsel %vm218, %v217, %v144
    %v220 = vrot.slane %v144, 4
    %v221 = vsel %vm218, %v158, %v220
    %v223 = vunpack.c.l.s4 1983009808
    %v224 = vunpack.c.0.s8 %v223
    %v225 = vperm.slane %v219, %v224
    %v227 = vunpack.c.l.s4 1983009808
    %v228 = vunpack.c.0.s8 %v227
    %v229 = vperm.slane %v221, %v228
    %v230 = vrot.slane %v164, 4
    %v231 = vsel %vm218, %v230, %v152
    %v232 = vrot.slane %v152, 4
    %v233 = vsel %vm218, %v164, %v232
    %v235 = vunpack.c.l.s4 1983009808
    %v236 = vunpack.c.0.s8 %v235
    %v237 = vperm.slane %v231, %v236
    %v239 = vunpack.c.l.s4 1983009808
    %v240 = vunpack.c.0.s8 %v239
    %v241 = vperm.slane %v233, %v240
    %v242 = vrot.slane %v182, 4
    %v243 = vsel %vm218, %v242, %v170
    %v244 = vrot.slane %v170, 4
    %v245 = vsel %vm218, %v182, %v244
    %v247 = vunpack.c.l.s4 1983009808
    %v248 = vunpack.c.0.s8 %v247
    %v249 = vperm.slane %v243, %v248
    %v251 = vunpack.c.l.s4 1983009808
    %v252 = vunpack.c.0.s8 %v251
    %v253 = vperm.slane %v245, %v252
    %v254 = vrot.slane %v188, 4
    %v255 = vsel %vm218, %v254, %v176
    %v256 = vrot.slane %v176, 4
    %v257 = vsel %vm218, %v188, %v256
    %v259 = vunpack.c.l.s4 1983009808
    %v260 = vunpack.c.0.s8 %v259
    %v261 = vperm.slane %v255, %v260
    %v263 = vunpack.c.l.s4 1983009808
    %v264 = vunpack.c.0.s8 %v263
    %v265 = vperm.slane %v257, %v264
    %v266 = vrot.slane %v237, 4
    %v267 = vsel %vm218, %v266, %v225
    %v268 = vrot.slane %v225, 4
    %v269 = vsel %vm218, %v237, %v268
    %v271 = vunpack.c.l.s4 1934713408
    %v272 = vunpack.c.0.s8 %v271
    %v273 = vperm.slane %v267, %v272
    %v275 = vunpack.c.l.s4 1934713408
    %v276 = vunpack.c.0.s8 %v275
    %v277 = vperm.slane %v269, %v276
    %v278 = vrot.slane %v241, 4
    %v279 = vsel %vm218, %v278, %v229
    %v280 = vrot.slane %v229, 4
    %v281 = vsel %vm218, %v241, %v280
    %v283 = vunpack.c.l.s4 1934713408
    %v284 = vunpack.c.0.s8 %v283
    %v285 = vperm.slane %v279, %v284
    %v287 = vunpack.c.l.s4 1934713408
    %v288 = vunpack.c.0.s8 %v287
    %v289 = vperm.slane %v281, %v288
    %v290 = vrot.slane %v261, 4
    %v291 = vsel %vm218, %v290, %v249
    %v292 = vrot.slane %v249, 4
    %v293 = vsel %vm218, %v261, %v292
    %v295 = vunpack.c.l.s4 1934713408
    %v296 = vunpack.c.0.s8 %v295
    %v297 = vperm.slane %v291, %v296
    %v299 = vunpack.c.l.s4 1934713408
    %v300 = vunpack.c.0.s8 %v299
    %v301 = vperm.slane %v293, %v300
    %v302 = vrot.slane %v265, 4
    %v303 = vsel %vm218, %v302, %v253
    %v304 = vrot.slane %v253, 4
    %v305 = vsel %vm218, %v265, %v304
    %v307 = vunpack.c.l.s4 1934713408
    %v308 = vunpack.c.0.s8 %v307
    %v309 = vperm.slane %v303, %v308
    %v311 = vunpack.c.l.s4 1934713408
    %v312 = vunpack.c.0.s8 %v311
    %v313 = vperm.slane %v305, %v312
    %v314 = vrot.slane %v297, 4
    %v315 = vsel %vm218, %v314, %v273
    %v316 = vrot.slane %v273, 4
    %v317 = vsel %vm218, %v297, %v316
    %v318 = vrot.slane %v301, 4
    %v319 = vsel %vm218, %v318, %v277
    %v320 = vrot.slane %v277, 4
    %v321 = vsel %vm218, %v301, %v320
    %v322 = vrot.slane %v309, 4
    %v323 = vsel %vm218, %v322, %v285
    %v324 = vrot.slane %v285, 4
    %v325 = vsel %vm218, %v309, %v324
    %v326 = vrot.slane %v313, 4
    %v327 = vsel %vm218, %v326, %v289
    %v328 = vrot.slane %v289, 4
    %v329 = vsel %vm218, %v313, %v328
    %v330 = vrot.slane %v206, 4
    %v331 = vsel %vm218, %v330, %v194
    %v332 = vrot.slane %v194, 4
    %v333 = vsel %vm218, %v206, %v332
    %v335 = vunpack.c.l.s4 1983009808
    %v336 = vunpack.c.0.s8 %v335
    %v337 = vperm.slane %v331, %v336
    %v339 = vunpack.c.l.s4 1983009808
    %v340 = vunpack.c.0.s8 %v339
    %v341 = vperm.slane %v333, %v340
    %v342 = vrot.slane %v212, 4
    %v343 = vsel %vm218, %v342, %v200
    %v344 = vrot.slane %v200, 4
    %v345 = vsel %vm218, %v212, %v344
    %v347 = vunpack.c.l.s4 1983009808
    %v348 = vunpack.c.0.s8 %v347
    %v349 = vperm.slane %v343, %v348
    %v351 = vunpack.c.l.s4 1983009808
    %v352 = vunpack.c.0.s8 %v351
    %v353 = vperm.slane %v345, %v352
    %v354 = vrot.slane %v349, 4
    %v355 = vsel %vm218, %v354, %v337
    %v356 = vrot.slane %v337, 4
    %v357 = vsel %vm218, %v349, %v356
    %v359 = vunpack.c.l.s4 1934713408
    %v360 = vunpack.c.0.s8 %v359
    %v361 = vperm.slane %v355, %v360
    %v363 = vunpack.c.l.s4 1934713408
    %v364 = vunpack.c.0.s8 %v363
    %v365 = vperm.slane %v357, %v364
    %v366 = vrot.slane %v353, 4
    %v367 = vsel %vm218, %v366, %v341
    %v368 = vrot.slane %v341, 4
    %v369 = vsel %vm218, %v353, %v368
    %v371 = vunpack.c.l.s4 1934713408
    %v372 = vunpack.c.0.s8 %v371
    %v373 = vperm.slane %v367, %v372
    %v375 = vunpack.c.l.s4 1934713408
    %v376 = vunpack.c.0.s8 %v375
    %v377 = vperm.slane %v369, %v376
    %v378 = vrot.slane %v361, 4
    %v379 = vsel %vm218, 0.0, %v378
    %v380 = vrot.slane %v365, 4
    %v381 = vsel %vm218, 0.0, %v380
    %v382 = vrot.slane %v373, 4
    %v383 = vsel %vm218, 0.0, %v382
    %v384 = vrot.slane %v377, 4
    %v385 = vsel %vm218, 0.0, %v384
    %v386 = vrot.slane %v160, 4
    %v387 = vsel %vm218, %v386, %v147
    %v388 = vrot.slane %v147, 4
    %v389 = vsel %vm218, %v160, %v388
    %v391 = vunpack.c.l.s4 1983009808
    %v392 = vunpack.c.0.s8 %v391
    %v393 = vperm.slane %v387, %v392
    %v395 = vunpack.c.l.s4 1983009808
    %v396 = vunpack.c.0.s8 %v395
    %v397 = vperm.slane %v389, %v396
    %v398 = vrot.slane %v166, 4
    %v399 = vsel %vm218, %v398, %v154
    %v400 = vrot.slane %v154, 4
    %v401 = vsel %vm218, %v166, %v400
    %v403 = vunpack.c.l.s4 1983009808
    %v404 = vunpack.c.0.s8 %v403
    %v405 = vperm.slane %v399, %v404
    %v407 = vunpack.c.l.s4 1983009808
    %v408 = vunpack.c.0.s8 %v407
    %v409 = vperm.slane %v401, %v408
    %v410 = vrot.slane %v184, 4
    %v411 = vsel %vm218, %v410, %v172
    %v412 = vrot.slane %v172, 4
    %v413 = vsel %vm218, %v184, %v412
    %v415 = vunpack.c.l.s4 1983009808
    %v416 = vunpack.c.0.s8 %v415
    %v417 = vperm.slane %v411, %v416
    %v419 = vunpack.c.l.s4 1983009808
    %v420 = vunpack.c.0.s8 %v419
    %v421 = vperm.slane %v413, %v420
    %v422 = vrot.slane %v190, 4
    %v423 = vsel %vm218, %v422, %v178
    %v424 = vrot.slane %v178, 4
    %v425 = vsel %vm218, %v190, %v424
    %v427 = vunpack.c.l.s4 1983009808
    %v428 = vunpack.c.0.s8 %v427
    %v429 = vperm.slane %v423, %v428
    %v431 = vunpack.c.l.s4 1983009808
    %v432 = vunpack.c.0.s8 %v431
    %v433 = vperm.slane %v425, %v432
    %v434 = vrot.slane %v405, 4
    %v435 = vsel %vm218, %v434, %v393
    %v436 = vrot.slane %v393, 4
    %v437 = vsel %vm218, %v405, %v436
    %v439 = vunpack.c.l.s4 1934713408
    %v440 = vunpack.c.0.s8 %v439
    %v441 = vperm.slane %v435, %v440
    %v443 = vunpack.c.l.s4 1934713408
    %v444 = vunpack.c.0.s8 %v443
    %v445 = vperm.slane %v437, %v444
    %v446 = vrot.slane %v409, 4
    %v447 = vsel %vm218, %v446, %v397
    %v448 = vrot.slane %v397, 4
    %v449 = vsel %vm218, %v409, %v448
    %v451 = vunpack.c.l.s4 1934713408
    %v452 = vunpack.c.0.s8 %v451
    %v453 = vperm.slane %v447, %v452
    %v455 = vunpack.c.l.s4 1934713408
    %v456 = vunpack.c.0.s8 %v455
    %v457 = vperm.slane %v449, %v456
    %v458 = vrot.slane %v429, 4
    %v459 = vsel %vm218, %v458, %v417
    %v460 = vrot.slane %v417, 4
    %v461 = vsel %vm218, %v429, %v460
    %v463 = vunpack.c.l.s4 1934713408
    %v464 = vunpack.c.0.s8 %v463
    %v465 = vperm.slane %v459, %v464
    %v467 = vunpack.c.l.s4 1934713408
    %v468 = vunpack.c.0.s8 %v467
    %v469 = vperm.slane %v461, %v468
    %v470 = vrot.slane %v433, 4
    %v471 = vsel %vm218, %v470, %v421
    %v472 = vrot.slane %v421, 4
    %v473 = vsel %vm218, %v433, %v472
    %v475 = vunpack.c.l.s4 1934713408
    %v476 = vunpack.c.0.s8 %v475
    %v477 = vperm.slane %v471, %v476
    %v479 = vunpack.c.l.s4 1934713408
    %v480 = vunpack.c.0.s8 %v479
    %v481 = vperm.slane %v473, %v480
    %v482 = vrot.slane %v465, 4
    %v483 = vsel %vm218, %v482, %v441
    %v484 = vrot.slane %v441, 4
    %v485 = vsel %vm218, %v465, %v484
    %v486 = vrot.slane %v469, 4
    %v487 = vsel %vm218, %v486, %v445
    %v488 = vrot.slane %v445, 4
    %v489 = vsel %vm218, %v469, %v488
    %v490 = vrot.slane %v477, 4
    %v491 = vsel %vm218, %v490, %v453
    %v492 = vrot.slane %v453, 4
    %v493 = vsel %vm218, %v477, %v492
    %v494 = vrot.slane %v481, 4
    %v495 = vsel %vm218, %v494, %v457
    %v496 = vrot.slane %v457, 4
    %v497 = vsel %vm218, %v481, %v496
    %v498 = vrot.slane %v208, 4
    %v499 = vsel %vm218, %v498, %v196
    %v500 = vrot.slane %v196, 4
    %v501 = vsel %vm218, %v208, %v500
    %v503 = vunpack.c.l.s4 1983009808
    %v504 = vunpack.c.0.s8 %v503
    %v505 = vperm.slane %v499, %v504
    %v507 = vunpack.c.l.s4 1983009808
    %v508 = vunpack.c.0.s8 %v507
    %v509 = vperm.slane %v501, %v508
    %v510 = vrot.slane %v214, 4
    %v511 = vsel %vm218, %v510, %v202
    %v512 = vrot.slane %v202, 4
    %v513 = vsel %vm218, %v214, %v512
    %v515 = vunpack.c.l.s4 1983009808
    %v516 = vunpack.c.0.s8 %v515
    %v517 = vperm.slane %v511, %v516
    %v519 = vunpack.c.l.s4 1983009808
    %v520 = vunpack.c.0.s8 %v519
    %v521 = vperm.slane %v513, %v520
    %v522 = vrot.slane %v517, 4
    %v523 = vsel %vm218, %v522, %v505
    %v524 = vrot.slane %v505, 4
    %v525 = vsel %vm218, %v517, %v524
    %v527 = vunpack.c.l.s4 1934713408
    %v528 = vunpack.c.0.s8 %v527
    %v529 = vperm.slane %v523, %v528
    %v531 = vunpack.c.l.s4 1934713408
    %v532 = vunpack.c.0.s8 %v531
    %v533 = vperm.slane %v525, %v532
    %v534 = vrot.slane %v521, 4
    %v535 = vsel %vm218, %v534, %v509
    %v536 = vrot.slane %v509, 4
    %v537 = vsel %vm218, %v521, %v536
    %v539 = vunpack.c.l.s4 1934713408
    %v540 = vunpack.c.0.s8 %v539
    %v541 = vperm.slane %v535, %v540
    %v543 = vunpack.c.l.s4 1934713408
    %v544 = vunpack.c.0.s8 %v543
    %v545 = vperm.slane %v537, %v544
    %v546 = vrot.slane %v529, 4
    %v547 = vsel %vm218, 0.0, %v546
    %v548 = vrot.slane %v533, 4
    %v549 = vsel %vm218, 0.0, %v548
    %v550 = vrot.slane %v541, 4
    %v551 = vsel %vm218, 0.0, %v550
    %v552 = vrot.slane %v545, 4
    %v553 = vsel %vm218, 0.0, %v552
    %v554 = vrot.slane %v319, 4
    %v555 = vsel %vm218, %v554, %v315
    %v556 = vrot.slane %v315, 4
    %v557 = vsel %vm218, %v319, %v556
    %v559 = vunpack.c.l.s4 1983009808
    %v560 = vunpack.c.0.s8 %v559
    %v561 = vperm.slane %v555, %v560
    %v563 = vunpack.c.l.s4 1983009808
    %v564 = vunpack.c.0.s8 %v563
    %v565 = vperm.slane %v557, %v564
    %v566 = vrot.slane %v321, 4
    %v567 = vsel %vm218, %v566, %v317
    %v568 = vrot.slane %v317, 4
    %v569 = vsel %vm218, %v321, %v568
    %v571 = vunpack.c.l.s4 1983009808
    %v572 = vunpack.c.0.s8 %v571
    %v573 = vperm.slane %v567, %v572
    %v575 = vunpack.c.l.s4 1983009808
    %v576 = vunpack.c.0.s8 %v575
    %v577 = vperm.slane %v569, %v576
    %v578 = vrot.slane %v327, 4
    %v579 = vsel %vm218, %v578, %v323
    %v580 = vrot.slane %v323, 4
    %v581 = vsel %vm218, %v327, %v580
    %v583 = vunpack.c.l.s4 1983009808
    %v584 = vunpack.c.0.s8 %v583
    %v585 = vperm.slane %v579, %v584
    %v587 = vunpack.c.l.s4 1983009808
    %v588 = vunpack.c.0.s8 %v587
    %v589 = vperm.slane %v581, %v588
    %v590 = vrot.slane %v329, 4
    %v591 = vsel %vm218, %v590, %v325
    %v592 = vrot.slane %v325, 4
    %v593 = vsel %vm218, %v329, %v592
    %v595 = vunpack.c.l.s4 1983009808
    %v596 = vunpack.c.0.s8 %v595
    %v597 = vperm.slane %v591, %v596
    %v599 = vunpack.c.l.s4 1983009808
    %v600 = vunpack.c.0.s8 %v599
    %v601 = vperm.slane %v593, %v600
    %v602 = vrot.slane %v573, 4
    %v603 = vsel %vm218, %v602, %v561
    %v604 = vrot.slane %v561, 4
    %v605 = vsel %vm218, %v573, %v604
    %v607 = vunpack.c.l.s4 1934713408
    %v608 = vunpack.c.0.s8 %v607
    %v609 = vperm.slane %v603, %v608
    %v611 = vunpack.c.l.s4 1934713408
    %v612 = vunpack.c.0.s8 %v611
    %v613 = vperm.slane %v605, %v612
    %v614 = vrot.slane %v577, 4
    %v615 = vsel %vm218, %v614, %v565
    %v616 = vrot.slane %v565, 4
    %v617 = vsel %vm218, %v577, %v616
    %v619 = vunpack.c.l.s4 1934713408
    %v620 = vunpack.c.0.s8 %v619
    %v621 = vperm.slane %v615, %v620
    %v623 = vunpack.c.l.s4 1934713408
    %v624 = vunpack.c.0.s8 %v623
    %v625 = vperm.slane %v617, %v624
    %v626 = vrot.slane %v597, 4
    %v627 = vsel %vm218, %v626, %v585
    %v628 = vrot.slane %v585, 4
    %v629 = vsel %vm218, %v597, %v628
    %v631 = vunpack.c.l.s4 1934713408
    %v632 = vunpack.c.0.s8 %v631
    %v633 = vperm.slane %v627, %v632
    %v635 = vunpack.c.l.s4 1934713408
    %v636 = vunpack.c.0.s8 %v635
    %v637 = vperm.slane %v629, %v636
    %v638 = vrot.slane %v601, 4
    %v639 = vsel %vm218, %v638, %v589
    %v640 = vrot.slane %v589, 4
    %v641 = vsel %vm218, %v601, %v640
    %v643 = vunpack.c.l.s4 1934713408
    %v644 = vunpack.c.0.s8 %v643
    %v645 = vperm.slane %v639, %v644
    %v647 = vunpack.c.l.s4 1934713408
    %v648 = vunpack.c.0.s8 %v647
    %v649 = vperm.slane %v641, %v648
    %v650 = vrot.slane %v633, 4
    %v651 = vsel %vm218, %v650, %v609
    %v652 = vrot.slane %v609, 4
    %v653 = vsel %vm218, %v633, %v652
    %v654 = vrot.slane %v637, 4
    %v655 = vsel %vm218, %v654, %v613
    %v656 = vrot.slane %v613, 4
    %v657 = vsel %vm218, %v637, %v656
    %v658 = vrot.slane %v645, 4
    %v659 = vsel %vm218, %v658, %v621
    %v660 = vrot.slane %v621, 4
    %v661 = vsel %vm218, %v645, %v660
    %v662 = vrot.slane %v649, 4
    %v663 = vsel %vm218, %v662, %v625
    %v664 = vrot.slane %v625, 4
    %v665 = vsel %vm218, %v649, %v664
    %v666 = vrot.slane %v487, 4
    %v667 = vsel %vm218, %v666, %v483
    %v668 = vrot.slane %v483, 4
    %v669 = vsel %vm218, %v487, %v668
    %v671 = vunpack.c.l.s4 1983009808
    %v672 = vunpack.c.0.s8 %v671
    %v673 = vperm.slane %v667, %v672
    %v675 = vunpack.c.l.s4 1983009808
    %v676 = vunpack.c.0.s8 %v675
    %v677 = vperm.slane %v669, %v676
    %v678 = vrot.slane %v489, 4
    %v679 = vsel %vm218, %v678, %v485
    %v680 = vrot.slane %v485, 4
    %v681 = vsel %vm218, %v489, %v680
    %v683 = vunpack.c.l.s4 1983009808
    %v684 = vunpack.c.0.s8 %v683
    %v685 = vperm.slane %v679, %v684
    %v687 = vunpack.c.l.s4 1983009808
    %v688 = vunpack.c.0.s8 %v687
    %v689 = vperm.slane %v681, %v688
    %v690 = vrot.slane %v495, 4
    %v691 = vsel %vm218, %v690, %v491
    %v692 = vrot.slane %v491, 4
    %v693 = vsel %vm218, %v495, %v692
    %v695 = vunpack.c.l.s4 1983009808
    %v696 = vunpack.c.0.s8 %v695
    %v697 = vperm.slane %v691, %v696
    %v699 = vunpack.c.l.s4 1983009808
    %v700 = vunpack.c.0.s8 %v699
    %v701 = vperm.slane %v693, %v700
    %v702 = vrot.slane %v497, 4
    %v703 = vsel %vm218, %v702, %v493
    %v704 = vrot.slane %v493, 4
    %v705 = vsel %vm218, %v497, %v704
    %v707 = vunpack.c.l.s4 1983009808
    %v708 = vunpack.c.0.s8 %v707
    %v709 = vperm.slane %v703, %v708
    %v711 = vunpack.c.l.s4 1983009808
    %v712 = vunpack.c.0.s8 %v711
    %v713 = vperm.slane %v705, %v712
    %v714 = vrot.slane %v685, 4
    %v715 = vsel %vm218, %v714, %v673
    %v716 = vrot.slane %v673, 4
    %v717 = vsel %vm218, %v685, %v716
    %v719 = vunpack.c.l.s4 1934713408
    %v720 = vunpack.c.0.s8 %v719
    %v721 = vperm.slane %v715, %v720
    %v723 = vunpack.c.l.s4 1934713408
    %v724 = vunpack.c.0.s8 %v723
    %v725 = vperm.slane %v717, %v724
    %v726 = vrot.slane %v689, 4
    %v727 = vsel %vm218, %v726, %v677
    %v728 = vrot.slane %v677, 4
    %v729 = vsel %vm218, %v689, %v728
    %v731 = vunpack.c.l.s4 1934713408
    %v732 = vunpack.c.0.s8 %v731
    %v733 = vperm.slane %v727, %v732
    %v735 = vunpack.c.l.s4 1934713408
    %v736 = vunpack.c.0.s8 %v735
    %v737 = vperm.slane %v729, %v736
    %v738 = vrot.slane %v709, 4
    %v739 = vsel %vm218, %v738, %v697
    %v740 = vrot.slane %v697, 4
    %v741 = vsel %vm218, %v709, %v740
    %v743 = vunpack.c.l.s4 1934713408
    %v744 = vunpack.c.0.s8 %v743
    %v745 = vperm.slane %v739, %v744
    %v747 = vunpack.c.l.s4 1934713408
    %v748 = vunpack.c.0.s8 %v747
    %v749 = vperm.slane %v741, %v748
    %v750 = vrot.slane %v713, 4
    %v751 = vsel %vm218, %v750, %v701
    %v752 = vrot.slane %v701, 4
    %v753 = vsel %vm218, %v713, %v752
    %v755 = vunpack.c.l.s4 1934713408
    %v756 = vunpack.c.0.s8 %v755
    %v757 = vperm.slane %v751, %v756
    %v759 = vunpack.c.l.s4 1934713408
    %v760 = vunpack.c.0.s8 %v759
    %v761 = vperm.slane %v753, %v760
    %v762 = vrot.slane %v745, 4
    %v763 = vsel %vm218, %v762, %v721
    %v764 = vrot.slane %v721, 4
    %v765 = vsel %vm218, %v745, %v764
    %v766 = vrot.slane %v749, 4
    %v767 = vsel %vm218, %v766, %v725
    %v768 = vrot.slane %v725, 4
    %v769 = vsel %vm218, %v749, %v768
    %v770 = vrot.slane %v757, 4
    %v771 = vsel %vm218, %v770, %v733
    %v772 = vrot.slane %v733, 4
    %v773 = vsel %vm218, %v757, %v772
    %v774 = vrot.slane %v761, 4
    %v775 = vsel %vm218, %v774, %v737
    %v776 = vrot.slane %v737, 4
    %v777 = vsel %vm218, %v761, %v776
    %v778 = vsel %vm218, %v380, %v361
    %v780 = vunpack.c.l.s4 1983009808
    %v781 = vunpack.c.0.s8 %v780
    %v782 = vperm.slane %v778, %v781
    %v783 = vrot.slane %v381, 4
    %v784 = vsel %vm218, %v783, %v379
    %v786 = vunpack.c.l.s4 1983009808
    %v787 = vunpack.c.0.s8 %v786
    %v788 = vperm.slane %v784, %v787
    %v789 = vsel %vm218, %v384, %v373
    %v791 = vunpack.c.l.s4 1983009808
    %v792 = vunpack.c.0.s8 %v791
    %v793 = vperm.slane %v789, %v792
    %v794 = vrot.slane %v385, 4
    %v795 = vsel %vm218, %v794, %v383
    %v797 = vunpack.c.l.s4 1983009808
    %v798 = vunpack.c.0.s8 %v797
    %v799 = vperm.slane %v795, %v798
    %v800 = vrot.slane %v788, 4
    %v801 = vsel %vm218, %v800, %v782
    %v802 = vrot.slane %v782, 4
    %v803 = vsel %vm218, %v788, %v802
    %v805 = vunpack.c.l.s4 1934713408
    %v806 = vunpack.c.0.s8 %v805
    %v807 = vperm.slane %v801, %v806
    %v809 = vunpack.c.l.s4 1934713408
    %v810 = vunpack.c.0.s8 %v809
    %v811 = vperm.slane %v803, %v810
    %v812 = vrot.slane %v799, 4
    %v813 = vsel %vm218, %v812, %v793
    %v814 = vrot.slane %v793, 4
    %v815 = vsel %vm218, %v799, %v814
    %v817 = vunpack.c.l.s4 1934713408
    %v818 = vunpack.c.0.s8 %v817
    %v819 = vperm.slane %v813, %v818
    %v821 = vunpack.c.l.s4 1934713408
    %v822 = vunpack.c.0.s8 %v821
    %v823 = vperm.slane %v815, %v822
    %v824 = vrot.slane %v819, 4
    %v825 = vsel %vm218, %v824, %v807
    %v826 = vrot.slane %v807, 4
    %v827 = vsel %vm218, %v819, %v826
    %v828 = vrot.slane %v823, 4
    %v829 = vsel %vm218, %v828, %v811
    %v830 = vrot.slane %v811, 4
    %v831 = vsel %vm218, %v823, %v830
    %v832 = vsel %vm218, %v548, %v529
    %v834 = vunpack.c.l.s4 1983009808
    %v835 = vunpack.c.0.s8 %v834
    %v836 = vperm.slane %v832, %v835
    %v837 = vrot.slane %v549, 4
    %v838 = vsel %vm218, %v837, %v547
    %v840 = vunpack.c.l.s4 1983009808
    %v841 = vunpack.c.0.s8 %v840
    %v842 = vperm.slane %v838, %v841
    %v843 = vsel %vm218, %v552, %v541
    %v845 = vunpack.c.l.s4 1983009808
    %v846 = vunpack.c.0.s8 %v845
    %v847 = vperm.slane %v843, %v846
    %v848 = vrot.slane %v553, 4
    %v849 = vsel %vm218, %v848, %v551
    %v851 = vunpack.c.l.s4 1983009808
    %v852 = vunpack.c.0.s8 %v851
    %v853 = vperm.slane %v849, %v852
    %v854 = vrot.slane %v842, 4
    %v855 = vsel %vm218, %v854, %v836
    %v856 = vrot.slane %v836, 4
    %v857 = vsel %vm218, %v842, %v856
    %v859 = vunpack.c.l.s4 1934713408
    %v860 = vunpack.c.0.s8 %v859
    %v861 = vperm.slane %v855, %v860
    %v863 = vunpack.c.l.s4 1934713408
    %v864 = vunpack.c.0.s8 %v863
    %v865 = vperm.slane %v857, %v864
    %v866 = vrot.slane %v853, 4
    %v867 = vsel %vm218, %v866, %v847
    %v868 = vrot.slane %v847, 4
    %v869 = vsel %vm218, %v853, %v868
    %v871 = vunpack.c.l.s4 1934713408
    %v872 = vunpack.c.0.s8 %v871
    %v873 = vperm.slane %v867, %v872
    %v875 = vunpack.c.l.s4 1934713408
    %v876 = vunpack.c.0.s8 %v875
    %v877 = vperm.slane %v869, %v876
    %v878 = vrot.slane %v873, 4
    %v879 = vsel %vm218, %v878, %v861
    %v880 = vrot.slane %v861, 4
    %v881 = vsel %vm218, %v873, %v880
    %v882 = vrot.slane %v877, 4
    %v883 = vsel %vm218, %v882, %v865
    %v884 = vrot.slane %v865, 4
    %v885 = vsel %vm218, %v877, %v884
    %vm886 = vcmask 64512
    %v888 = vsel %vm886, %v651, 0
    %v891 = vsel %vm886, %v763, 0
    %v894 = vsel %vm886, %v659, 0
    %v897 = vsel %vm886, %v771, 0
    %899 = vmatpush.xpose.msra.mxu0 0.0
    %900 = vmatpush.xpose.msra.mxu0 0.0
    %901 = vmatpush.xpose.msra.mxu0 0.0
    %902 = vmatpush.xpose.msra.mxu0 0.0
    %903 = vmatpush.xpose.msra.mxu0 0.0
    %904 = vmatpush.xpose.msra.mxu0 0.0
    %905 = vmatpush.xpose.msra.mxu0 0.0
    %906 = vmatpush.xpose.msra.mxu0 0.0
    %907 = vmatpush.xpose.msra.mxu0 0.0
    %908 = vmatpush.xpose.msra.mxu0 0.0
    %909 = vmatpush.xpose.msra.mxu0 0.0
    %910 = vmatpush.xpose.msra.mxu0 0.0
    %911 = vmatpush.xpose.msra.mxu0 0.0
    %912 = vmatpush.xpose.msra.mxu0 0.0
    %913 = vmatpush.xpose.msra.mxu0 %v897
    %914 = vmatpush.xpose.msra.mxu0 %v894
    %915 = vmatmul.f32.gmra.mxu0 %v888
    %v916 = vpop.f32.mrf.mxu0
    %v917 = vadd.f32 0.0, %v916
    %918 = vmatmul.f32.gmra.mxu0 %v891
    %v919 = vpop.f32.mrf.mxu0
    %v920 = vadd.f32 0.0, %v919
    %921 = vdwg.mxu0
    %v923 = vsel %vm886, %v653, 0
    %v926 = vsel %vm886, %v765, 0
    %v929 = vsel %vm886, %v661, 0
    %v932 = vsel %vm886, %v773, 0
    %934 = vmatpush.xpose.msra.mxu0 0.0
    %935 = vmatpush.xpose.msra.mxu0 0.0
    %936 = vmatpush.xpose.msra.mxu0 0.0
    %937 = vmatpush.xpose.msra.mxu0 0.0
    %938 = vmatpush.xpose.msra.mxu0 0.0
    %939 = vmatpush.xpose.msra.mxu0 0.0
    %940 = vmatpush.xpose.msra.mxu0 0.0
    %941 = vmatpush.xpose.msra.mxu0 0.0
    %942 = vmatpush.xpose.msra.mxu0 0.0
    %943 = vmatpush.xpose.msra.mxu0 0.0
    %944 = vmatpush.xpose.msra.mxu0 0.0
    %945 = vmatpush.xpose.msra.mxu0 0.0
    %946 = vmatpush.xpose.msra.mxu0 0.0
    %947 = vmatpush.xpose.msra.mxu0 0.0
    %948 = vmatpush.xpose.msra.mxu0 %v932
    %949 = vmatpush.xpose.msra.mxu0 %v929
    %950 = vmatmul.f32.gmra.mxu0 %v923
    %v951 = vpop.f32.mrf.mxu0
    %v952 = vadd.f32 0.0, %v951
    %953 = vmatmul.f32.gmra.mxu0 %v926
    %v954 = vpop.f32.mrf.mxu0
    %v955 = vadd.f32 0.0, %v954
    %956 = vdwg.mxu0
    %v958 = vsel %vm886, %v655, 0
    %v961 = vsel %vm886, %v767, 0
    %v964 = vsel %vm886, %v663, 0
    %v967 = vsel %vm886, %v775, 0
    %969 = vmatpush.xpose.msra.mxu0 0.0
    %970 = vmatpush.xpose.msra.mxu0 0.0
    %971 = vmatpush.xpose.msra.mxu0 0.0
    %972 = vmatpush.xpose.msra.mxu0 0.0
    %973 = vmatpush.xpose.msra.mxu0 0.0
    %974 = vmatpush.xpose.msra.mxu0 0.0
    %975 = vmatpush.xpose.msra.mxu0 0.0
    %976 = vmatpush.xpose.msra.mxu0 0.0
    %977 = vmatpush.xpose.msra.mxu0 0.0
    %978 = vmatpush.xpose.msra.mxu0 0.0
    %979 = vmatpush.xpose.msra.mxu0 0.0
    %980 = vmatpush.xpose.msra.mxu0 0.0
    %981 = vmatpush.xpose.msra.mxu0 0.0
    %982 = vmatpush.xpose.msra.mxu0 0.0
    %983 = vmatpush.xpose.msra.mxu0 %v967
    %984 = vmatpush.xpose.msra.mxu0 %v964
    %985 = vmatmul.f32.gmra.mxu0 %v958
    %v986 = vpop.f32.mrf.mxu0
    %v987 = vadd.f32 0.0, %v986
    %988 = vmatmul.f32.gmra.mxu0 %v961
    %v989 = vpop.f32.mrf.mxu0
    %v990 = vadd.f32 0.0, %v989
    %991 = vdwg.mxu0
    %v993 = vsel %vm886, %v657, 0
    %v996 = vsel %vm886, %v769, 0
    %v999 = vsel %vm886, %v665, 0
    %v1002 = vsel %vm886, %v777, 0
    %1004 = vmatpush.xpose.msra.mxu0 0.0
    %1005 = vmatpush.xpose.msra.mxu0 0.0
    %1006 = vmatpush.xpose.msra.mxu0 0.0
    %1007 = vmatpush.xpose.msra.mxu0 0.0
    %1008 = vmatpush.xpose.msra.mxu0 0.0
    %1009 = vmatpush.xpose.msra.mxu0 0.0
    %1010 = vmatpush.xpose.msra.mxu0 0.0
    %1011 = vmatpush.xpose.msra.mxu0 0.0
    %1012 = vmatpush.xpose.msra.mxu0 0.0
    %1013 = vmatpush.xpose.msra.mxu0 0.0
    %1014 = vmatpush.xpose.msra.mxu0 0.0
    %1015 = vmatpush.xpose.msra.mxu0 0.0
    %1016 = vmatpush.xpose.msra.mxu0 0.0
    %1017 = vmatpush.xpose.msra.mxu0 0.0
    %1018 = vmatpush.xpose.msra.mxu0 %v1002
    %1019 = vmatpush.xpose.msra.mxu0 %v999
    %1020 = vmatmul.f32.gmra.mxu0 %v993
    %v1021 = vpop.f32.mrf.mxu0
    %v1022 = vadd.f32 0.0, %v1021
    %1023 = vmatmul.f32.gmra.mxu0 %v996
    %v1024 = vpop.f32.mrf.mxu0
    %v1025 = vadd.f32 0.0, %v1024
    %1026 = vdwg.mxu0
    %v1027 = vmul.f32 %v917, 0.35355338
    %v1028 = vmul.f32 %v920, 0.35355338
    %v1029 = vmul.f32 %v952, 0.35355338
    %v1030 = vmul.f32 %v955, 0.35355338
    %v1031 = vmul.f32 %v987, 0.35355338
    %v1032 = vmul.f32 %v990, 0.35355338
    %v1033 = vmul.f32 %v1022, 0.35355338
    %v1034 = vmul.f32 %v1025, 0.35355338
    %v1035 = vadd.f32 %v1027, %v95
    %v1036 = vadd.f32 %v1028, %v96
    %v1037 = vadd.f32 %v1029, %v95
    %v1038 = vadd.f32 %v1030, %v96
    %v1039 = vadd.f32 %v1031, %v95
    %v1040 = vadd.f32 %v1032, %v96
    %v1041 = vadd.f32 %v1033, %v95
    %v1042 = vadd.f32 %v1034, %v96
    %vm1043 = vcmask 130048
    %v1044 = vsel %vm1043, %v1035, -inf
    %1045 = vmax.xlane.f32.xlu0 %v1044
    %v1046 = vpop.xlane.xlu0 %1045
    %v1047 = vsel %vm1043, %v1036, -inf
    %1048 = vmax.xlane.f32.xlu0 %v1047
    %v1049 = vpop.xlane.xlu0 %1048
    %v1050 = vsel %vm1043, %v1037, -inf
    %1051 = vmax.xlane.f32.xlu0 %v1050
    %v1052 = vpop.xlane.xlu0 %1051
    %v1053 = vsel %vm1043, %v1038, -inf
    %1054 = vmax.xlane.f32.xlu0 %v1053
    %v1055 = vpop.xlane.xlu0 %1054
    %v1056 = vsel %vm1043, %v1039, -inf
    %1057 = vmax.xlane.f32.xlu0 %v1056
    %v1058 = vpop.xlane.xlu0 %1057
    %v1059 = vsel %vm1043, %v1040, -inf
    %1060 = vmax.xlane.f32.xlu0 %v1059
    %v1061 = vpop.xlane.xlu0 %1060
    %v1062 = vsel %vm1043, %v1041, -inf
    %1063 = vmax.xlane.f32.xlu0 %v1062
    %v1064 = vpop.xlane.xlu0 %1063
    %v1065 = vsel %vm1043, %v1042, -inf
    %1066 = vmax.xlane.f32.xlu0 %v1065
    %v1067 = vpop.xlane.xlu0 %1066
    %v1068 = vsub.f32 %v1035, %v1046
    %v1069 = vsub.f32 %v1036, %v1049
    %v1070 = vsub.f32 %v1037, %v1052
    %v1071 = vsub.f32 %v1038, %v1055
    %v1072 = vsub.f32 %v1039, %v1058
    %v1073 = vsub.f32 %v1040, %v1061
    %v1074 = vsub.f32 %v1041, %v1064
    %v1075 = vsub.f32 %v1042, %v1067
    %v1076 = vmul.f32 %v1068, 1.442695
    %v1077 = vpow.pop %v1076
    %v1078 = vmul.f32 %v1069, 1.442695
    %v1079 = vpow.pop %v1078
    %v1080 = vmul.f32 %v1070, 1.442695
    %v1081 = vpow.pop %v1080
    %v1082 = vmul.f32 %v1071, 1.442695
    %v1083 = vpow.pop %v1082
    %v1084 = vmul.f32 %v1072, 1.442695
    %v1085 = vpow.pop %v1084
    %v1086 = vmul.f32 %v1073, 1.442695
    %v1087 = vpow.pop %v1086
    %v1088 = vmul.f32 %v1074, 1.442695
    %v1089 = vpow.pop %v1088
    %v1090 = vmul.f32 %v1075, 1.442695
    %v1091 = vpow.pop %v1090
    %v1092 = vsel %vm1043, %v1077, 0.0
    %1093 = vadd.xlane.f32.xlu0 %v1092
    %v1094 = vpop.xlane.xlu0 %1093
    %v1095 = vsel %vm1043, %v1079, 0.0
    %1096 = vadd.xlane.f32.xlu0 %v1095
    %v1097 = vpop.xlane.xlu0 %1096
    %v1098 = vsel %vm1043, %v1081, 0.0
    %1099 = vadd.xlane.f32.xlu0 %v1098
    %v1100 = vpop.xlane.xlu0 %1099
    %v1101 = vsel %vm1043, %v1083, 0.0
    %1102 = vadd.xlane.f32.xlu0 %v1101
    %v1103 = vpop.xlane.xlu0 %1102
    %v1104 = vsel %vm1043, %v1085, 0.0
    %1105 = vadd.xlane.f32.xlu0 %v1104
    %v1106 = vpop.xlane.xlu0 %1105
    %v1107 = vsel %vm1043, %v1087, 0.0
    %1108 = vadd.xlane.f32.xlu0 %v1107
    %v1109 = vpop.xlane.xlu0 %1108
    %v1110 = vsel %vm1043, %v1089, 0.0
    %1111 = vadd.xlane.f32.xlu0 %v1110
    %v1112 = vpop.xlane.xlu0 %1111
    %v1113 = vsel %vm1043, %v1091, 0.0
    %1114 = vadd.xlane.f32.xlu0 %v1113
    %v1115 = vpop.xlane.xlu0 %1114
    %v1116 = vrcp.pop %v1094
    %v1117 = vmul.f32 %v1094, %v1116
    %v1118 = vsub.f32 1.0, %v1117
    %v1119 = vmul.f32 %v1116, %v1118
    %v1120 = vadd.f32 %v1116, %v1119
    %vm1121 = vweird.f32 %v1094
    %vm1122 = vweird.f32 %v1116
    %vm1123 = vmor %vm1121, %vm1122
    %v1124 = vsel %vm1123, %v1116, %v1120
    %v1125 = vand.u32 2147483647, %v1094
    %vm1126 = vcmp.eq.f32.partialorder %v1125, 8.507059e+37
    %v1127 = vand.u32 %v1094, 2147483648
    %v1128 = vor.u32 1.1754944e-38, %v1127
    %v1129 = vsel %vm1126, %v1128, %v1124
    %v1130 = vmul.f32 %v1077, %v1129
    %v1131 = vrcp.pop %v1097
    %v1132 = vmul.f32 %v1097, %v1131
    %v1133 = vsub.f32 1.0, %v1132
    %v1134 = vmul.f32 %v1131, %v1133
    %v1135 = vadd.f32 %v1131, %v1134
    %vm1136 = vweird.f32 %v1097
    %vm1137 = vweird.f32 %v1131
    %vm1138 = vmor %vm1136, %vm1137
    %v1139 = vsel %vm1138, %v1131, %v1135
    %v1140 = vand.u32 2147483647, %v1097
    %vm1141 = vcmp.eq.f32.partialorder %v1140, 8.507059e+37
    %v1142 = vand.u32 %v1097, 2147483648
    %v1143 = vor.u32 1.1754944e-38, %v1142
    %v1144 = vsel %vm1141, %v1143, %v1139
    %v1145 = vmul.f32 %v1079, %v1144
    %v1146 = vrcp.pop %v1100
    %v1147 = vmul.f32 %v1100, %v1146
    %v1148 = vsub.f32 1.0, %v1147
    %v1149 = vmul.f32 %v1146, %v1148
    %v1150 = vadd.f32 %v1146, %v1149
    %vm1151 = vweird.f32 %v1100
    %vm1152 = vweird.f32 %v1146
    %vm1153 = vmor %vm1151, %vm1152
    %v1154 = vsel %vm1153, %v1146, %v1150
    %v1155 = vand.u32 2147483647, %v1100
    %vm1156 = vcmp.eq.f32.partialorder %v1155, 8.507059e+37
    %v1157 = vand.u32 %v1100, 2147483648
    %v1158 = vor.u32 1.1754944e-38, %v1157
    %v1159 = vsel %vm1156, %v1158, %v1154
    %v1160 = vmul.f32 %v1081, %v1159
    %v1161 = vrcp.pop %v1103
    %v1162 = vmul.f32 %v1103, %v1161
    %v1163 = vsub.f32 1.0, %v1162
    %v1164 = vmul.f32 %v1161, %v1163
    %v1165 = vadd.f32 %v1161, %v1164
    %vm1166 = vweird.f32 %v1103
    %vm1167 = vweird.f32 %v1161
    %vm1168 = vmor %vm1166, %vm1167
    %v1169 = vsel %vm1168, %v1161, %v1165
    %v1170 = vand.u32 2147483647, %v1103
    %vm1171 = vcmp.eq.f32.partialorder %v1170, 8.507059e+37
    %v1172 = vand.u32 %v1103, 2147483648
    %v1173 = vor.u32 1.1754944e-38, %v1172
    %v1174 = vsel %vm1171, %v1173, %v1169
    %v1175 = vmul.f32 %v1083, %v1174
    %v1176 = vrcp.pop %v1106
    %v1177 = vmul.f32 %v1106, %v1176
    %v1178 = vsub.f32 1.0, %v1177
    %v1179 = vmul.f32 %v1176, %v1178
    %v1180 = vadd.f32 %v1176, %v1179
    %vm1181 = vweird.f32 %v1106
    %vm1182 = vweird.f32 %v1176
    %vm1183 = vmor %vm1181, %vm1182
    %v1184 = vsel %vm1183, %v1176, %v1180
    %v1185 = vand.u32 2147483647, %v1106
    %vm1186 = vcmp.eq.f32.partialorder %v1185, 8.507059e+37
    %v1187 = vand.u32 %v1106, 2147483648
    %v1188 = vor.u32 1.1754944e-38, %v1187
    %v1189 = vsel %vm1186, %v1188, %v1184
    %v1190 = vmul.f32 %v1085, %v1189
    %v1191 = vrcp.pop %v1109
    %v1192 = vmul.f32 %v1109, %v1191
    %v1193 = vsub.f32 1.0, %v1192
    %v1194 = vmul.f32 %v1191, %v1193
    %v1195 = vadd.f32 %v1191, %v1194
    %vm1196 = vweird.f32 %v1109
    %vm1197 = vweird.f32 %v1191
    %vm1198 = vmor %vm1196, %vm1197
    %v1199 = vsel %vm1198, %v1191, %v1195
    %v1200 = vand.u32 2147483647, %v1109
    %vm1201 = vcmp.eq.f32.partialorder %v1200, 8.507059e+37
    %v1202 = vand.u32 %v1109, 2147483648
    %v1203 = vor.u32 1.1754944e-38, %v1202
    %v1204 = vsel %vm1201, %v1203, %v1199
    %v1205 = vmul.f32 %v1087, %v1204
    %v1206 = vrcp.pop %v1112
    %v1207 = vmul.f32 %v1112, %v1206
    %v1208 = vsub.f32 1.0, %v1207
    %v1209 = vmul.f32 %v1206, %v1208
    %v1210 = vadd.f32 %v1206, %v1209
    %vm1211 = vweird.f32 %v1112
    %vm1212 = vweird.f32 %v1206
    %vm1213 = vmor %vm1211, %vm1212
    %v1214 = vsel %vm1213, %v1206, %v1210
    %v1215 = vand.u32 2147483647, %v1112
    %vm1216 = vcmp.eq.f32.partialorder %v1215, 8.507059e+37
    %v1217 = vand.u32 %v1112, 2147483648
    %v1218 = vor.u32 1.1754944e-38, %v1217
    %v1219 = vsel %vm1216, %v1218, %v1214
    %v1220 = vmul.f32 %v1089, %v1219
    %v1221 = vrcp.pop %v1115
    %v1222 = vmul.f32 %v1115, %v1221
    %v1223 = vsub.f32 1.0, %v1222
    %v1224 = vmul.f32 %v1221, %v1223
    %v1225 = vadd.f32 %v1221, %v1224
    %vm1226 = vweird.f32 %v1115
    %vm1227 = vweird.f32 %v1221
    %vm1228 = vmor %vm1226, %vm1227
    %v1229 = vsel %vm1228, %v1221, %v1225
    %v1230 = vand.u32 2147483647, %v1115
    %vm1231 = vcmp.eq.f32.partialorder %v1230, 8.507059e+37
    %v1232 = vand.u32 %v1115, 2147483648
    %v1233 = vor.u32 1.1754944e-38, %v1232
    %v1234 = vsel %vm1231, %v1233, %v1229
    %v1235 = vmul.f32 %v1091, %v1234
    %v1237 = vsel %vm1043, %v1130, 0
    %v1240 = vsel %vm1043, %v1145, 0
    %1242 = vmatpush.msra.mxu0 0.0
    %1243 = vmatpush.msra.mxu0 0.0
    %1244 = vmatpush.msra.mxu0 0.0
    %1245 = vmatpush.msra.mxu0 0.0
    %1246 = vmatpush.msra.mxu0 0.0
    %1247 = vmatpush.msra.mxu0 0.0
    %1248 = vmatpush.msra.mxu0 0.0
    %1249 = vmatpush.msra.mxu0 0.0
    %1250 = vmatpush.msra.mxu0 0.0
    %1251 = vmatpush.msra.mxu0 0.0
    %1252 = vmatpush.msra.mxu0 0.0
    %1253 = vmatpush.msra.mxu0 0.0
    %1254 = vmatpush.msra.mxu0 0.0
    %1255 = vmatpush.msra.mxu0 0.0
    %1256 = vmatpush.msra.mxu0 %v879
    %1257 = vmatpush.msra.mxu0 %v825
    %1258 = vmatmul.f32.gmra.mxu0 %v1237
    %v1259 = vpop.f32.mrf.mxu0
    %v1260 = vadd.f32 0.0, %v1259
    %1261 = vmatmul.f32.gmra.mxu0 %v1240
    %v1262 = vpop.f32.mrf.mxu0
    %v1263 = vadd.f32 0.0, %v1262
    %1264 = vdwg.mxu0
    %v1266 = vsel %vm1043, %v1160, 0
    %v1269 = vsel %vm1043, %v1175, 0
    %1271 = vmatpush.msra.mxu0 0.0
    %1272 = vmatpush.msra.mxu0 0.0
    %1273 = vmatpush.msra.mxu0 0.0
    %1274 = vmatpush.msra.mxu0 0.0
    %1275 = vmatpush.msra.mxu0 0.0
    %1276 = vmatpush.msra.mxu0 0.0
    %1277 = vmatpush.msra.mxu0 0.0
    %1278 = vmatpush.msra.mxu0 0.0
    %1279 = vmatpush.msra.mxu0 0.0
    %1280 = vmatpush.msra.mxu0 0.0
    %1281 = vmatpush.msra.mxu0 0.0
    %1282 = vmatpush.msra.mxu0 0.0
    %1283 = vmatpush.msra.mxu0 0.0
    %1284 = vmatpush.msra.mxu0 0.0
    %1285 = vmatpush.msra.mxu0 %v881
    %1286 = vmatpush.msra.mxu0 %v827
    %1287 = vmatmul.f32.gmra.mxu0 %v1266
    %v1288 = vpop.f32.mrf.mxu0
    %v1289 = vadd.f32 0.0, %v1288
    %1290 = vmatmul.f32.gmra.mxu0 %v1269
    %v1291 = vpop.f32.mrf.mxu0
    %v1292 = vadd.f32 0.0, %v1291
    %1293 = vdwg.mxu0
    %v1295 = vsel %vm1043, %v1190, 0
    %v1298 = vsel %vm1043, %v1205, 0
    %1300 = vmatpush.msra.mxu0 0.0
    %1301 = vmatpush.msra.mxu0 0.0
    %1302 = vmatpush.msra.mxu0 0.0
    %1303 = vmatpush.msra.mxu0 0.0
    %1304 = vmatpush.msra.mxu0 0.0
    %1305 = vmatpush.msra.mxu0 0.0
    %1306 = vmatpush.msra.mxu0 0.0
    %1307 = vmatpush.msra.mxu0 0.0
    %1308 = vmatpush.msra.mxu0 0.0
    %1309 = vmatpush.msra.mxu0 0.0
    %1310 = vmatpush.msra.mxu0 0.0
    %1311 = vmatpush.msra.mxu0 0.0
    %1312 = vmatpush.msra.mxu0 0.0
    %1313 = vmatpush.msra.mxu0 0.0
    %1314 = vmatpush.msra.mxu0 %v883
    %1315 = vmatpush.msra.mxu0 %v829
    %1316 = vmatmul.f32.gmra.mxu0 %v1295
    %v1317 = vpop.f32.mrf.mxu0
    %v1318 = vadd.f32 0.0, %v1317
    %1319 = vmatmul.f32.gmra.mxu0 %v1298
    %v1320 = vpop.f32.mrf.mxu0
    %v1321 = vadd.f32 0.0, %v1320
    %1322 = vdwg.mxu0
    %v1324 = vsel %vm1043, %v1220, 0
    %v1327 = vsel %vm1043, %v1235, 0
    %1329 = vmatpush.msra.mxu0 0.0
    %1330 = vmatpush.msra.mxu0 0.0
    %1331 = vmatpush.msra.mxu0 0.0
    %1332 = vmatpush.msra.mxu0 0.0
    %1333 = vmatpush.msra.mxu0 0.0
    %1334 = vmatpush.msra.mxu0 0.0
    %1335 = vmatpush.msra.mxu0 0.0
    %1336 = vmatpush.msra.mxu0 0.0
    %1337 = vmatpush.msra.mxu0 0.0
    %1338 = vmatpush.msra.mxu0 0.0
    %1339 = vmatpush.msra.mxu0 0.0
    %1340 = vmatpush.msra.mxu0 0.0
    %1341 = vmatpush.msra.mxu0 0.0
    %1342 = vmatpush.msra.mxu0 0.0
    %1343 = vmatpush.msra.mxu0 %v885
    %1344 = vmatpush.msra.mxu0 %v831
    %1345 = vmatmul.f32.gmra.mxu0 %v1324
    %v1346 = vpop.f32.mrf.mxu0
    %v1347 = vadd.f32 0.0, %v1346
    %1348 = vmatmul.f32.gmra.mxu0 %v1327
    %v1349 = vpop.f32.mrf.mxu0
    %v1350 = vadd.f32 0.0, %v1349
    %1351 = vdwg.mxu0
    %v1352 = vrot.slane %v1318, 4
    %v1353 = vsel %vm218, %v1352, %v1260
    %v1354 = vrot.slane %v1260, 4
    %v1355 = vsel %vm218, %v1318, %v1354
    %v1357 = vunpack.c.l.s4 1983009808
    %v1358 = vunpack.c.0.s8 %v1357
    %v1359 = vperm.slane %v1353, %v1358
    %v1361 = vunpack.c.l.s4 1983009808
    %v1362 = vunpack.c.0.s8 %v1361
    %v1363 = vperm.slane %v1355, %v1362
    %v1364 = vrot.slane %v1347, 4
    %v1365 = vsel %vm218, %v1364, %v1289
    %v1366 = vrot.slane %v1289, 4
    %v1367 = vsel %vm218, %v1347, %v1366
    %v1369 = vunpack.c.l.s4 1983009808
    %v1370 = vunpack.c.0.s8 %v1369
    %v1371 = vperm.slane %v1365, %v1370
    %v1373 = vunpack.c.l.s4 1983009808
    %v1374 = vunpack.c.0.s8 %v1373
    %v1375 = vperm.slane %v1367, %v1374
    %v1376 = vrot.slane %v1371, 4
    %v1377 = vsel %vm218, %v1376, %v1359
    %v1378 = vrot.slane %v1359, 4
    %v1379 = vsel %vm218, %v1371, %v1378
    %v1381 = vunpack.c.l.s4 1934713408
    %v1382 = vunpack.c.0.s8 %v1381
    %v1383 = vperm.slane %v1377, %v1382
    %v1385 = vunpack.c.l.s4 1934713408
    %v1386 = vunpack.c.0.s8 %v1385
    %v1387 = vperm.slane %v1379, %v1386
    %v1388 = vrot.slane %v1375, 4
    %v1389 = vsel %vm218, %v1388, %v1363
    %v1390 = vrot.slane %v1363, 4
    %v1391 = vsel %vm218, %v1375, %v1390
    %v1393 = vunpack.c.l.s4 1934713408
    %v1394 = vunpack.c.0.s8 %v1393
    %v1395 = vperm.slane %v1389, %v1394
    %v1397 = vunpack.c.l.s4 1934713408
    %v1398 = vunpack.c.0.s8 %v1397
    %v1399 = vperm.slane %v1391, %v1398
    %v1400 = vrot.slane %v1383, 4
    %v1401 = vsel %vm218, 0.0, %v1400
    %v1402 = vrot.slane %v1387, 4
    %v1403 = vsel %vm218, 0.0, %v1402
    %v1404 = vrot.slane %v1395, 4
    %v1405 = vsel %vm218, 0.0, %v1404
    %v1406 = vrot.slane %v1399, 4
    %v1407 = vsel %vm218, 0.0, %v1406
    %v1408 = vrot.slane %v1321, 4
    %v1409 = vsel %vm218, %v1408, %v1263
    %v1410 = vrot.slane %v1263, 4
    %v1411 = vsel %vm218, %v1321, %v1410
    %v1413 = vunpack.c.l.s4 1983009808
    %v1414 = vunpack.c.0.s8 %v1413
    %v1415 = vperm.slane %v1409, %v1414
    %v1417 = vunpack.c.l.s4 1983009808
    %v1418 = vunpack.c.0.s8 %v1417
    %v1419 = vperm.slane %v1411, %v1418
    %v1420 = vrot.slane %v1350, 4
    %v1421 = vsel %vm218, %v1420, %v1292
    %v1422 = vrot.slane %v1292, 4
    %v1423 = vsel %vm218, %v1350, %v1422
    %v1425 = vunpack.c.l.s4 1983009808
    %v1426 = vunpack.c.0.s8 %v1425
    %v1427 = vperm.slane %v1421, %v1426
    %v1429 = vunpack.c.l.s4 1983009808
    %v1430 = vunpack.c.0.s8 %v1429
    %v1431 = vperm.slane %v1423, %v1430
    %v1432 = vrot.slane %v1427, 4
    %v1433 = vsel %vm218, %v1432, %v1415
    %v1434 = vrot.slane %v1415, 4
    %v1435 = vsel %vm218, %v1427, %v1434
    %v1437 = vunpack.c.l.s4 1934713408
    %v1438 = vunpack.c.0.s8 %v1437
    %v1439 = vperm.slane %v1433, %v1438
    %v1441 = vunpack.c.l.s4 1934713408
    %v1442 = vunpack.c.0.s8 %v1441
    %v1443 = vperm.slane %v1435, %v1442
    %v1444 = vrot.slane %v1431, 4
    %v1445 = vsel %vm218, %v1444, %v1419
    %v1446 = vrot.slane %v1419, 4
    %v1447 = vsel %vm218, %v1431, %v1446
    %v1449 = vunpack.c.l.s4 1934713408
    %v1450 = vunpack.c.0.s8 %v1449
    %v1451 = vperm.slane %v1445, %v1450
    %v1453 = vunpack.c.l.s4 1934713408
    %v1454 = vunpack.c.0.s8 %v1453
    %v1455 = vperm.slane %v1447, %v1454
    %v1456 = vrot.slane %v1439, 4
    %v1457 = vsel %vm218, 0.0, %v1456
    %v1458 = vrot.slane %v1443, 4
    %v1459 = vsel %vm218, 0.0, %v1458
    %v1460 = vrot.slane %v1451, 4
    %v1461 = vsel %vm218, 0.0, %v1460
    %v1462 = vrot.slane %v1455, 4
    %v1463 = vsel %vm218, 0.0, %v1462
    %v1464 = vsel %vm218, %v1402, %v1383
    %v1466 = vunpack.c.l.s4 1983009808
    %v1467 = vunpack.c.0.s8 %v1466
    %v1468 = vperm.slane %v1464, %v1467
    %v1469 = vrot.slane %v1403, 4
    %v1470 = vsel %vm218, %v1469, %v1401
    %v1472 = vunpack.c.l.s4 1983009808
    %v1473 = vunpack.c.0.s8 %v1472
    %v1474 = vperm.slane %v1470, %v1473
    %v1475 = vsel %vm218, %v1406, %v1395
    %v1477 = vunpack.c.l.s4 1983009808
    %v1478 = vunpack.c.0.s8 %v1477
    %v1479 = vperm.slane %v1475, %v1478
    %v1480 = vrot.slane %v1407, 4
    %v1481 = vsel %vm218, %v1480, %v1405
    %v1483 = vunpack.c.l.s4 1983009808
    %v1484 = vunpack.c.0.s8 %v1483
    %v1485 = vperm.slane %v1481, %v1484
    %v1486 = vrot.slane %v1474, 4
    %v1487 = vsel %vm218, %v1486, %v1468
    %v1488 = vrot.slane %v1468, 4
    %v1489 = vsel %vm218, %v1474, %v1488
    %v1491 = vunpack.c.l.s4 1934713408
    %v1492 = vunpack.c.0.s8 %v1491
    %v1493 = vperm.slane %v1487, %v1492
    %v1495 = vunpack.c.l.s4 1934713408
    %v1496 = vunpack.c.0.s8 %v1495
    %v1497 = vperm.slane %v1489, %v1496
    %v1498 = vrot.slane %v1485, 4
    %v1499 = vsel %vm218, %v1498, %v1479
    %v1500 = vrot.slane %v1479, 4
    %v1501 = vsel %vm218, %v1485, %v1500
    %v1503 = vunpack.c.l.s4 1934713408
    %v1504 = vunpack.c.0.s8 %v1503
    %v1505 = vperm.slane %v1499, %v1504
    %v1507 = vunpack.c.l.s4 1934713408
    %v1508 = vunpack.c.0.s8 %v1507
    %v1509 = vperm.slane %v1501, %v1508
    %v1510 = vrot.slane %v1505, 4
    %v1511 = vsel %vm218, %v1510, %v1493
    %v1512 = vrot.slane %v1493, 4
    %v1513 = vsel %vm218, %v1505, %v1512
    %v1514 = vrot.slane %v1509, 4
    %v1515 = vsel %vm218, %v1514, %v1497
    %v1516 = vrot.slane %v1497, 4
    %v1517 = vsel %vm218, %v1509, %v1516
    %v1518 = vsel %vm218, %v1458, %v1439
    %v1520 = vunpack.c.l.s4 1983009808
    %v1521 = vunpack.c.0.s8 %v1520
    %v1522 = vperm.slane %v1518, %v1521
    %v1523 = vrot.slane %v1459, 4
    %v1524 = vsel %vm218, %v1523, %v1457
    %v1526 = vunpack.c.l.s4 1983009808
    %v1527 = vunpack.c.0.s8 %v1526
    %v1528 = vperm.slane %v1524, %v1527
    %v1529 = vsel %vm218, %v1462, %v1451
    %v1531 = vunpack.c.l.s4 1983009808
    %v1532 = vunpack.c.0.s8 %v1531
    %v1533 = vperm.slane %v1529, %v1532
    %v1534 = vrot.slane %v1463, 4
    %v1535 = vsel %vm218, %v1534, %v1461
    %v1537 = vunpack.c.l.s4 1983009808
    %v1538 = vunpack.c.0.s8 %v1537
    %v1539 = vperm.slane %v1535, %v1538
    %v1540 = vrot.slane %v1528, 4
    %v1541 = vsel %vm218, %v1540, %v1522
    %v1542 = vrot.slane %v1522, 4
    %v1543 = vsel %vm218, %v1528, %v1542
    %v1545 = vunpack.c.l.s4 1934713408
    %v1546 = vunpack.c.0.s8 %v1545
    %v1547 = vperm.slane %v1541, %v1546
    %v1549 = vunpack.c.l.s4 1934713408
    %v1550 = vunpack.c.0.s8 %v1549
    %v1551 = vperm.slane %v1543, %v1550
    %v1552 = vrot.slane %v1539, 4
    %v1553 = vsel %vm218, %v1552, %v1533
    %v1554 = vrot.slane %v1533, 4
    %v1555 = vsel %vm218, %v1539, %v1554
    %v1557 = vunpack.c.l.s4 1934713408
    %v1558 = vunpack.c.0.s8 %v1557
    %v1559 = vperm.slane %v1553, %v1558
    %v1561 = vunpack.c.l.s4 1934713408
    %v1562 = vunpack.c.0.s8 %v1561
    %v1563 = vperm.slane %v1555, %v1562
    %v1564 = vrot.slane %v1559, 4
    %v1565 = vsel %vm218, %v1564, %v1547
    %v1566 = vrot.slane %v1547, 4
    %v1567 = vsel %vm218, %v1559, %v1566
    %v1568 = vrot.slane %v1563, 4
    %v1569 = vsel %vm218, %v1568, %v1551
    %v1570 = vrot.slane %v1551, 4
    %v1571 = vsel %vm218, %v1563, %v1570
    %1574 = vrot.lane.b32.xlu0 %v1513, 8
    %v1575 = vpop.permute.xlu0 %1574
    %1576 = vrot.lane.b32.xlu0 %v1567, 8
    %v1577 = vpop.permute.xlu0 %1576
    %1582 = vrot.lane.b32.xlu0 %v1515, 16
    %v1583 = vpop.permute.xlu0 %1582
    %1584 = vrot.lane.b32.xlu0 %v1569, 16
    %v1585 = vpop.permute.xlu0 %1584
    %1590 = vrot.lane.b32.xlu0 %v1517, 24
    %v1591 = vpop.permute.xlu0 %1590
    %1592 = vrot.lane.b32.xlu0 %v1571, 24
    %v1593 = vpop.permute.xlu0 %1592
    %v1596 = vsel %vm886, %v1511, %v1575
    %v1597 = vsel %vm886, %v1565, %v1577
    %v1598 = vsel %vm1043, %v1596, %v1583
    %v1599 = vsel %vm1043, %v1597, %v1585
    %vm1600 = vcmask 195584
    %v1601 = vsel %vm1600, %v1598, %v1591
    %v1602 = vsel %vm1600, %v1599, %v1593
    %v1603 = vperm.slane %v117, 1
    %v1605 = vsel %vm119, %v1601, 0
    %v1608 = vsel %vm119, %v1602, 0
    %1610 = vmatpush.msra.mxu0 0.0
    %1611 = vmatpush.msra.mxu0 0.0
    %1612 = vmatpush.msra.mxu0 0.0
    %1613 = vmatpush.msra.mxu0 0.0
    %1614 = vmatpush.msra.mxu0 0.0
    %1615 = vmatpush.msra.mxu0 0.0
    %1616 = vmatpush.msra.mxu0 0.0
    %1617 = vmatpush.msra.mxu0 0.0
    %1618 = vmatpush.msra.mxu0 0.0
    %1619 = vmatpush.msra.mxu0 0.0
    %1620 = vmatpush.msra.mxu0 0.0
    %1621 = vmatpush.msra.mxu0 0.0
    %1622 = vmatpush.msra.mxu0 %v104
    %1623 = vmatpush.msra.mxu0 %v103
    %1624 = vmatpush.msra.mxu0 %v102
    %1625 = vmatpush.msra.mxu0 %v101
    %1626 = vmatmul.f32.gmra.mxu0 %v1605
    %v1627 = vpop.f32.mrf.mxu0
    %v1628 = vadd.f32 %v1603, %v1627
    %1629 = vmatmul.f32.gmra.mxu0 %v1608
    %v1630 = vpop.f32.mrf.mxu0
    %v1631 = vadd.f32 %v1603, %v1630
    %1632 = vdwg.mxu0
    %v1633 = vadd.f32 %v50, %v1628
    %v1634 = vadd.f32 %v51, %v1631
    %v1635 = vsel %vm119, %v1633, 0.0
    %1636 = vadd.xlane.f32.xlu0 %v1635
    %v1637 = vpop.xlane.xlu0 %1636
    %v1638 = vsel %vm119, %v1634, 0.0
    %1639 = vadd.xlane.f32.xlu0 %v1638
    %v1640 = vpop.xlane.xlu0 %1639
    %v1641 = vrcp.pop 32.0
    %v1642 = vmul.f32 32.0, %v1641
    %v1643 = vsub.f32 1.0, %v1642
    %v1644 = vmul.f32 %v1641, %v1643
    %v1645 = vadd.f32 %v1641, %v1644
    %vm1646 = vweird.f32 %v1641
    %v1647 = vsel %vm1646, %v1641, %v1645
    %v1648 = vmul.f32 %v1637, %v1647
    %v1649 = vmul.f32 %v1640, %v1647
    %v1650 = vsub.f32 %v1633, %v1648
    %v1651 = vsub.f32 %v1634, %v1649
    %v1652 = vmul.f32 %v1650, %v1650
    %v1653 = vmul.f32 %v1651, %v1651
    %v1654 = vsel %vm119, %v1652, 0.0
    %1655 = vadd.xlane.f32.xlu0 %v1654
    %v1656 = vpop.xlane.xlu0 %1655
    %v1657 = vsel %vm119, %v1653, 0.0
    %1658 = vadd.xlane.f32.xlu0 %v1657
    %v1659 = vpop.xlane.xlu0 %1658
    %v1660 = vmul.f32 %v1656, %v1647
    %v1661 = vmul.f32 %v1659, %v1647
    %v1662 = vadd.f32 %v1660, 1e-05
    %v1663 = vadd.f32 %v1661, 1e-05
    %v1664 = vrsqrt.pop %v1662
    %v1665 = vmul.f32 %v1664, %v1662
    %v1666 = vmul.f32 %v1665, %v1664
    %v1667 = vmul.f32 0.5, %v1666
    %v1668 = vsub.f32 1.5, %v1667
    %v1669 = vmul.f32 %v1664, %v1668
    %vm1670 = vweird.f32 %v1662
    %vm1671 = vweird.f32 %v1664
    %vm1672 = vmor %vm1670, %vm1671
    %v1673 = vsel %vm1672, %v1664, %v1669
    %v1674 = vrsqrt.pop %v1663
    %v1675 = vmul.f32 %v1674, %v1663
    %v1676 = vmul.f32 %v1675, %v1674
    %v1677 = vmul.f32 0.5, %v1676
    %v1678 = vsub.f32 1.5, %v1677
    %v1679 = vmul.f32 %v1674, %v1678
    %vm1680 = vweird.f32 %v1663
    %vm1681 = vweird.f32 %v1674
    %vm1682 = vmor %vm1680, %vm1681
    %v1683 = vsel %vm1682, %v1674, %v1679
    %v1684 = vmul.f32 %v1650, %v1673
    %v1685 = vmul.f32 %v1651, %v1683
    %v1686 = vperm.slane %v117, 4
    %v1687 = vmul.f32 %v1684, %v1686
    %v1688 = vmul.f32 %v1685, %v1686
    %v1689 = vperm.slane %v117, 5
    %v1690 = vadd.f32 %v1687, %v1689
    %v1691 = vadd.f32 %v1688, %v1689
    %v1692 = vperm.slane %v117, 2
    %v1694 = vsel %vm119, %v1690, 0
    %v1697 = vsel %vm119, %v1691, 0
    %1699 = vmatpush.msra.mxu0 0.0
    %1700 = vmatpush.msra.mxu0 0.0
    %1701 = vmatpush.msra.mxu0 0.0
    %1702 = vmatpush.msra.mxu0 0.0
    %1703 = vmatpush.msra.mxu0 0.0
    %1704 = vmatpush.msra.mxu0 0.0
    %1705 = vmatpush.msra.mxu0 0.0
    %1706 = vmatpush.msra.mxu0 0.0
    %1707 = vmatpush.msra.mxu0 0.0
    %1708 = vmatpush.msra.mxu0 0.0
    %1709 = vmatpush.msra.mxu0 0.0
    %1710 = vmatpush.msra.mxu0 0.0
    %1711 = vmatpush.msra.mxu0 %v108
    %1712 = vmatpush.msra.mxu0 %v107
    %1713 = vmatpush.msra.mxu0 %v106
    %1714 = vmatpush.msra.mxu0 %v105
    %1715 = vmatmul.f32.gmra.mxu0 %v1694
    %v1716 = vpop.f32.mrf.mxu0
    %v1717 = vadd.f32 %v1692, %v1716
    %1718 = vmatmul.f32.gmra.mxu0 %v1697
    %v1719 = vpop.f32.mrf.mxu0
    %v1720 = vadd.f32 %v1692, %v1719
    %1721 = vdwg.mxu0
    %v1722 = vmax.f32 %v1717, 0.0
    %v1723 = vmax.f32 %v1720, 0.0
    %v1724 = vperm.slane %v117, 3
    %vm1725 = vcmask 523264
    %v1727 = vsel %vm1725, %v1722, 0
    %v1730 = vsel %vm1725, %v1723, 0
    %1732 = vmatpush.msra.mxu0 0.0
    %1733 = vmatpush.msra.mxu0 0.0
    %1734 = vmatpush.msra.mxu0 0.0
    %1735 = vmatpush.msra.mxu0 0.0
    %1736 = vmatpush.msra.mxu0 0.0
    %1737 = vmatpush.msra.mxu0 0.0
    %1738 = vmatpush.msra.mxu0 0.0
    %1739 = vmatpush.msra.mxu0 0.0
    %1740 = vmatpush.msra.mxu0 %v116
    %1741 = vmatpush.msra.mxu0 %v115
    %1742 = vmatpush.msra.mxu0 %v114
    %1743 = vmatpush.msra.mxu0 %v113
    %1744 = vmatpush.msra.mxu0 %v112
    %1745 = vmatpush.msra.mxu0 %v111
    %1746 = vmatpush.msra.mxu0 %v110
    %1747 = vmatpush.msra.mxu0 %v109
    %1748 = vmatmul.f32.gmra.mxu0 %v1727
    %v1749 = vpop.f32.mrf.mxu0
    %v1750 = vadd.f32 %v1724, %v1749
    %1751 = vmatmul.f32.gmra.mxu0 %v1730
    %v1752 = vpop.f32.mrf.mxu0
    %v1753 = vadd.f32 %v1724, %v1752
    %1754 = vdwg.mxu0
    %v1755 = vadd.f32 %v1690, %v1750
    %v1756 = vadd.f32 %v1691, %v1753
    %v1757 = vsel %vm119, %v1755, 0.0
    %1758 = vadd.xlane.f32.xlu0 %v1757
    %v1759 = vpop.xlane.xlu0 %1758
    %v1760 = vsel %vm119, %v1756, 0.0
    %1761 = vadd.xlane.f32.xlu0 %v1760
    %v1762 = vpop.xlane.xlu0 %1761
    %v1763 = vmul.f32 %v1759, %v1647
    %v1764 = vmul.f32 %v1762, %v1647
    %v1765 = vsub.f32 %v1755, %v1763
    %v1766 = vsub.f32 %v1756, %v1764
    %v1767 = vmul.f32 %v1765, %v1765
    %v1768 = vmul.f32 %v1766, %v1766
    %v1769 = vsel %vm119, %v1767, 0.0
    %1770 = vadd.xlane.f32.xlu0 %v1769
    %v1771 = vpop.xlane.xlu0 %1770
    %v1772 = vsel %vm119, %v1768, 0.0
    %1773 = vadd.xlane.f32.xlu0 %v1772
    %v1774 = vpop.xlane.xlu0 %1773
    %v1775 = vmul.f32 %v1771, %v1647
    %v1776 = vmul.f32 %v1774, %v1647
    %v1777 = vadd.f32 %v1775, 1e-05
    %v1778 = vadd.f32 %v1776, 1e-05
    %v1779 = vrsqrt.pop %v1777
    %v1780 = vmul.f32 %v1779, %v1777
    %v1781 = vmul.f32 %v1780, %v1779
    %v1782 = vmul.f32 0.5, %v1781
    %v1783 = vsub.f32 1.5, %v1782
    %v1784 = vmul.f32 %v1779, %v1783
    %vm1785 = vweird.f32 %v1777
    %vm1786 = vweird.f32 %v1779
    %vm1787 = vmor %vm1785, %vm1786
    %v1788 = vsel %vm1787, %v1779, %v1784
    %v1789 = vrsqrt.pop %v1778
    %v1790 = vmul.f32 %v1789, %v1778
    %v1791 = vmul.f32 %v1790, %v1789
    %v1792 = vmul.f32 0.5, %v1791
    %v1793 = vsub.f32 1.5, %v1792
    %v1794 = vmul.f32 %v1789, %v1793
    %vm1795 = vweird.f32 %v1778
    %vm1796 = vweird.f32 %v1789
    %vm1797 = vmor %vm1795, %vm1796
    %v1798 = vsel %vm1797, %v1789, %v1794
    %v1799 = vmul.f32 %v1765, %v1788
    %v1800 = vmul.f32 %v1766, %v1798
    %v1801 = vperm.slane %v117, 6
    %v1802 = vmul.f32 %v1799, %v1801
    %v1803 = vmul.f32 %v1800, %v1801
    %v1804 = vperm.slane %v117, 7
    %v1805 = vadd.f32 %v1802, %v1804
    %v1806 = vadd.f32 %v1803, %v1804
    %s1807 = scalar_lea.vmem %s1, 96
    %v1808 = vld [vmem:[%s1807] sm:$0xff]
    %v1809 = vld [vmem:[%s1807 + $0x8] sm:$0xff]
    %v1810 = vld [vmem:[%s1807 + $0x10] sm:$0xff]
    %v1811 = vld [vmem:[%s1807 + $0x18] sm:$0xff]
    %v1812 = vld [vmem:[%s1807 + $0x20] sm:$0xff]
    %v1813 = vld [vmem:[%s1807 + $0x28] sm:$0xff]
    %v1814 = vld [vmem:[%s1807 + $0x30] sm:$0xff]
    %v1815 = vld [vmem:[%s1807 + $0x38] sm:$0xff]
    %v1816 = vld [vmem:[%s1807 + $0x40] sm:$0xff]
    %v1817 = vld [vmem:[%s1807 + $0x48] sm:$0xff]
    %v1818 = vld [vmem:[%s1807 + $0x50] sm:$0xff]
    %v1819 = vld [vmem:[%s1807 + $0x58] sm:$0xff]
    %s1820 = scalar_lea.vmem %s2, 64
    %v1821 = vld [vmem:[%s1820] sm:$0xff]
    %v1822 = vld [vmem:[%s1820 + $0x8] sm:$0xff]
    %v1823 = vld [vmem:[%s1820 + $0x10] sm:$0xff]
    %v1824 = vld [vmem:[%s1820 + $0x18] sm:$0xff]
    %v1825 = vld [vmem:[%s1820 + $0x20] sm:$0xff]
    %v1826 = vld [vmem:[%s1820 + $0x28] sm:$0xff]
    %v1827 = vld [vmem:[%s1820 + $0x30] sm:$0xff]
    %v1828 = vld [vmem:[%s1820 + $0x38] sm:$0xff]
    %s1829 = scalar_lea.vmem [#allocation5], 8
    %v1830 = vld [vmem:[%s1829] sm:$0xff]
    %v1831 = vperm.slane %v1830, 0
    %v1833 = vsel %vm119, %v1805, 0
    %v1836 = vsel %vm119, %v1806, 0
    %1838 = vmatpush.msra.mxu0 0.0
    %1839 = vmatpush.msra.mxu0 0.0
    %1840 = vmatpush.msra.mxu0 0.0
    %1841 = vmatpush.msra.mxu0 0.0
    %1842 = vmatpush.msra.mxu0 0.0
    %1843 = vmatpush.msra.mxu0 0.0
    %1844 = vmatpush.msra.mxu0 0.0
    %1845 = vmatpush.msra.mxu0 0.0
    %1846 = vmatpush.msra.mxu0 0.0
    %1847 = vmatpush.msra.mxu0 0.0
    %1848 = vmatpush.msra.mxu0 0.0
    %1849 = vmatpush.msra.mxu0 0.0
    %1850 = vmatpush.msra.mxu0 %v1811
    %1851 = vmatpush.msra.mxu0 %v1810
    %1852 = vmatpush.msra.mxu0 %v1809
    %1853 = vmatpush.msra.mxu0 %v1808
    %1854 = vmatmul.f32.gmra.mxu0 %v1833
    %v1855 = vpop.f32.mrf.mxu0
    %v1856 = vadd.f32 %v1831, %v1855
    %1857 = vmatmul.f32.gmra.mxu0 %v1836
    %v1858 = vpop.f32.mrf.mxu0
    %v1859 = vadd.f32 %v1831, %v1858
    %1860 = vdwg.mxu0
    %1863 = vrot.lane.b32.xlu0 %v1856, 120
    %v1864 = vpop.permute.xlu0 %1863
    %1865 = vrot.lane.b32.xlu0 %v1859, 120
    %v1866 = vpop.permute.xlu0 %1865
    %1869 = vrot.lane.b32.xlu0 %v1856, 112
    %v1870 = vpop.permute.xlu0 %1869
    %1871 = vrot.lane.b32.xlu0 %v1859, 112
    %v1872 = vpop.permute.xlu0 %1871
    %1875 = vrot.lane.b32.xlu0 %v1856, 104
    %v1876 = vpop.permute.xlu0 %1875
    %1877 = vrot.lane.b32.xlu0 %v1859, 104
    %v1878 = vpop.permute.xlu0 %1877
    %1881 = vrot.lane.b32.xlu0 %v1856, 96
    %v1882 = vpop.permute.xlu0 %1881
    %1883 = vrot.lane.b32.xlu0 %v1859, 96
    %v1884 = vpop.permute.xlu0 %1883
    %1887 = vrot.lane.b32.xlu0 %v1856, 88
    %v1888 = vpop.permute.xlu0 %1887
    %1889 = vrot.lane.b32.xlu0 %v1859, 88
    %v1890 = vpop.permute.xlu0 %1889
    %1893 = vrot.lane.b32.xlu0 %v1856, 80
    %v1894 = vpop.permute.xlu0 %1893
    %1895 = vrot.lane.b32.xlu0 %v1859, 80
    %v1896 = vpop.permute.xlu0 %1895
    %1899 = vrot.lane.b32.xlu0 %v1856, 72
    %v1900 = vpop.permute.xlu0 %1899
    %1901 = vrot.lane.b32.xlu0 %v1859, 72
    %v1902 = vpop.permute.xlu0 %1901
    %1905 = vrot.lane.b32.xlu0 %v1856, 64
    %v1906 = vpop.permute.xlu0 %1905
    %1907 = vrot.lane.b32.xlu0 %v1859, 64
    %v1908 = vpop.permute.xlu0 %1907
    %1911 = vrot.lane.b32.xlu0 %v1856, 56
    %v1912 = vpop.permute.xlu0 %1911
    %1913 = vrot.lane.b32.xlu0 %v1859, 56
    %v1914 = vpop.permute.xlu0 %1913
    %1917 = vrot.lane.b32.xlu0 %v1856, 48
    %v1918 = vpop.permute.xlu0 %1917
    %1919 = vrot.lane.b32.xlu0 %v1859, 48
    %v1920 = vpop.permute.xlu0 %1919
    %1923 = vrot.lane.b32.xlu0 %v1856, 40
    %v1924 = vpop.permute.xlu0 %1923
    %1925 = vrot.lane.b32.xlu0 %v1859, 40
    %v1926 = vpop.permute.xlu0 %1925
    %v1929 = vrot.slane %v1870, 4
    %v1930 = vsel %vm218, %v1929, %v1856
    %v1931 = vrot.slane %v1856, 4
    %v1932 = vsel %vm218, %v1870, %v1931
    %v1934 = vunpack.c.l.s4 1983009808
    %v1935 = vunpack.c.0.s8 %v1934
    %v1936 = vperm.slane %v1930, %v1935
    %v1938 = vunpack.c.l.s4 1983009808
    %v1939 = vunpack.c.0.s8 %v1938
    %v1940 = vperm.slane %v1932, %v1939
    %v1941 = vrot.slane %v1876, 4
    %v1942 = vsel %vm218, %v1941, %v1864
    %v1943 = vrot.slane %v1864, 4
    %v1944 = vsel %vm218, %v1876, %v1943
    %v1946 = vunpack.c.l.s4 1983009808
    %v1947 = vunpack.c.0.s8 %v1946
    %v1948 = vperm.slane %v1942, %v1947
    %v1950 = vunpack.c.l.s4 1983009808
    %v1951 = vunpack.c.0.s8 %v1950
    %v1952 = vperm.slane %v1944, %v1951
    %v1953 = vrot.slane %v1894, 4
    %v1954 = vsel %vm218, %v1953, %v1882
    %v1955 = vrot.slane %v1882, 4
    %v1956 = vsel %vm218, %v1894, %v1955
    %v1958 = vunpack.c.l.s4 1983009808
    %v1959 = vunpack.c.0.s8 %v1958
    %v1960 = vperm.slane %v1954, %v1959
    %v1962 = vunpack.c.l.s4 1983009808
    %v1963 = vunpack.c.0.s8 %v1962
    %v1964 = vperm.slane %v1956, %v1963
    %v1965 = vrot.slane %v1900, 4
    %v1966 = vsel %vm218, %v1965, %v1888
    %v1967 = vrot.slane %v1888, 4
    %v1968 = vsel %vm218, %v1900, %v1967
    %v1970 = vunpack.c.l.s4 1983009808
    %v1971 = vunpack.c.0.s8 %v1970
    %v1972 = vperm.slane %v1966, %v1971
    %v1974 = vunpack.c.l.s4 1983009808
    %v1975 = vunpack.c.0.s8 %v1974
    %v1976 = vperm.slane %v1968, %v1975
    %v1977 = vrot.slane %v1948, 4
    %v1978 = vsel %vm218, %v1977, %v1936
    %v1979 = vrot.slane %v1936, 4
    %v1980 = vsel %vm218, %v1948, %v1979
    %v1982 = vunpack.c.l.s4 1934713408
    %v1983 = vunpack.c.0.s8 %v1982
    %v1984 = vperm.slane %v1978, %v1983
    %v1986 = vunpack.c.l.s4 1934713408
    %v1987 = vunpack.c.0.s8 %v1986
    %v1988 = vperm.slane %v1980, %v1987
    %v1989 = vrot.slane %v1952, 4
    %v1990 = vsel %vm218, %v1989, %v1940
    %v1991 = vrot.slane %v1940, 4
    %v1992 = vsel %vm218, %v1952, %v1991
    %v1994 = vunpack.c.l.s4 1934713408
    %v1995 = vunpack.c.0.s8 %v1994
    %v1996 = vperm.slane %v1990, %v1995
    %v1998 = vunpack.c.l.s4 1934713408
    %v1999 = vunpack.c.0.s8 %v1998
    %v2000 = vperm.slane %v1992, %v1999
    %v2001 = vrot.slane %v1972, 4
    %v2002 = vsel %vm218, %v2001, %v1960
    %v2003 = vrot.slane %v1960, 4
    %v2004 = vsel %vm218, %v1972, %v2003
    %v2006 = vunpack.c.l.s4 1934713408
    %v2007 = vunpack.c.0.s8 %v2006
    %v2008 = vperm.slane %v2002, %v2007
    %v2010 = vunpack.c.l.s4 1934713408
    %v2011 = vunpack.c.0.s8 %v2010
    %v2012 = vperm.slane %v2004, %v2011
    %v2013 = vrot.slane %v1976, 4
    %v2014 = vsel %vm218, %v2013, %v1964
    %v2015 = vrot.slane %v1964, 4
    %v2016 = vsel %vm218, %v1976, %v2015
    %v2018 = vunpack.c.l.s4 1934713408
    %v2019 = vunpack.c.0.s8 %v2018
    %v2020 = vperm.slane %v2014, %v2019
    %v2022 = vunpack.c.l.s4 1934713408
    %v2023 = vunpack.c.0.s8 %v2022
    %v2024 = vperm.slane %v2016, %v2023
    %v2025 = vrot.slane %v2008, 4
    %v2026 = vsel %vm218, %v2025, %v1984
    %v2027 = vrot.slane %v1984, 4
    %v2028 = vsel %vm218, %v2008, %v2027
    %v2029 = vrot.slane %v2012, 4
    %v2030 = vsel %vm218, %v2029, %v1988
    %v2031 = vrot.slane %v1988, 4
    %v2032 = vsel %vm218, %v2012, %v2031
    %v2033 = vrot.slane %v2020, 4
    %v2034 = vsel %vm218, %v2033, %v1996
    %v2035 = vrot.slane %v1996, 4
    %v2036 = vsel %vm218, %v2020, %v2035
    %v2037 = vrot.slane %v2024, 4
    %v2038 = vsel %vm218, %v2037, %v2000
    %v2039 = vrot.slane %v2000, 4
    %v2040 = vsel %vm218, %v2024, %v2039
    %v2041 = vrot.slane %v1918, 4
    %v2042 = vsel %vm218, %v2041, %v1906
    %v2043 = vrot.slane %v1906, 4
    %v2044 = vsel %vm218, %v1918, %v2043
    %v2046 = vunpack.c.l.s4 1983009808
    %v2047 = vunpack.c.0.s8 %v2046
    %v2048 = vperm.slane %v2042, %v2047
    %v2050 = vunpack.c.l.s4 1983009808
    %v2051 = vunpack.c.0.s8 %v2050
    %v2052 = vperm.slane %v2044, %v2051
    %v2053 = vrot.slane %v1924, 4
    %v2054 = vsel %vm218, %v2053, %v1912
    %v2055 = vrot.slane %v1912, 4
    %v2056 = vsel %vm218, %v1924, %v2055
    %v2058 = vunpack.c.l.s4 1983009808
    %v2059 = vunpack.c.0.s8 %v2058
    %v2060 = vperm.slane %v2054, %v2059
    %v2062 = vunpack.c.l.s4 1983009808
    %v2063 = vunpack.c.0.s8 %v2062
    %v2064 = vperm.slane %v2056, %v2063
    %v2065 = vrot.slane %v2060, 4
    %v2066 = vsel %vm218, %v2065, %v2048
    %v2067 = vrot.slane %v2048, 4
    %v2068 = vsel %vm218, %v2060, %v2067
    %v2070 = vunpack.c.l.s4 1934713408
    %v2071 = vunpack.c.0.s8 %v2070
    %v2072 = vperm.slane %v2066, %v2071
    %v2074 = vunpack.c.l.s4 1934713408
    %v2075 = vunpack.c.0.s8 %v2074
    %v2076 = vperm.slane %v2068, %v2075
    %v2077 = vrot.slane %v2064, 4
    %v2078 = vsel %vm218, %v2077, %v2052
    %v2079 = vrot.slane %v2052, 4
    %v2080 = vsel %vm218, %v2064, %v2079
    %v2082 = vunpack.c.l.s4 1934713408
    %v2083 = vunpack.c.0.s8 %v2082
    %v2084 = vperm.slane %v2078, %v2083
    %v2086 = vunpack.c.l.s4 1934713408
    %v2087 = vunpack.c.0.s8 %v2086
    %v2088 = vperm.slane %v2080, %v2087
    %v2089 = vrot.slane %v2072, 4
    %v2090 = vsel %vm218, 0.0, %v2089
    %v2091 = vrot.slane %v2076, 4
    %v2092 = vsel %vm218, 0.0, %v2091
    %v2093 = vrot.slane %v2084, 4
    %v2094 = vsel %vm218, 0.0, %v2093
    %v2095 = vrot.slane %v2088, 4
    %v2096 = vsel %vm218, 0.0, %v2095
    %v2097 = vrot.slane %v1872, 4
    %v2098 = vsel %vm218, %v2097, %v1859
    %v2099 = vrot.slane %v1859, 4
    %v2100 = vsel %vm218, %v1872, %v2099
    %v2102 = vunpack.c.l.s4 1983009808
    %v2103 = vunpack.c.0.s8 %v2102
    %v2104 = vperm.slane %v2098, %v2103
    %v2106 = vunpack.c.l.s4 1983009808
    %v2107 = vunpack.c.0.s8 %v2106
    %v2108 = vperm.slane %v2100, %v2107
    %v2109 = vrot.slane %v1878, 4
    %v2110 = vsel %vm218, %v2109, %v1866
    %v2111 = vrot.slane %v1866, 4
    %v2112 = vsel %vm218, %v1878, %v2111
    %v2114 = vunpack.c.l.s4 1983009808
    %v2115 = vunpack.c.0.s8 %v2114
    %v2116 = vperm.slane %v2110, %v2115
    %v2118 = vunpack.c.l.s4 1983009808
    %v2119 = vunpack.c.0.s8 %v2118
    %v2120 = vperm.slane %v2112, %v2119
    %v2121 = vrot.slane %v1896, 4
    %v2122 = vsel %vm218, %v2121, %v1884
    %v2123 = vrot.slane %v1884, 4
    %v2124 = vsel %vm218, %v1896, %v2123
    %v2126 = vunpack.c.l.s4 1983009808
    %v2127 = vunpack.c.0.s8 %v2126
    %v2128 = vperm.slane %v2122, %v2127
    %v2130 = vunpack.c.l.s4 1983009808
    %v2131 = vunpack.c.0.s8 %v2130
    %v2132 = vperm.slane %v2124, %v2131
    %v2133 = vrot.slane %v1902, 4
    %v2134 = vsel %vm218, %v2133, %v1890
    %v2135 = vrot.slane %v1890, 4
    %v2136 = vsel %vm218, %v1902, %v2135
    %v2138 = vunpack.c.l.s4 1983009808
    %v2139 = vunpack.c.0.s8 %v2138
    %v2140 = vperm.slane %v2134, %v2139
    %v2142 = vunpack.c.l.s4 1983009808
    %v2143 = vunpack.c.0.s8 %v2142
    %v2144 = vperm.slane %v2136, %v2143
    %v2145 = vrot.slane %v2116, 4
    %v2146 = vsel %vm218, %v2145, %v2104
    %v2147 = vrot.slane %v2104, 4
    %v2148 = vsel %vm218, %v2116, %v2147
    %v2150 = vunpack.c.l.s4 1934713408
    %v2151 = vunpack.c.0.s8 %v2150
    %v2152 = vperm.slane %v2146, %v2151
    %v2154 = vunpack.c.l.s4 1934713408
    %v2155 = vunpack.c.0.s8 %v2154
    %v2156 = vperm.slane %v2148, %v2155
    %v2157 = vrot.slane %v2120, 4
    %v2158 = vsel %vm218, %v2157, %v2108
    %v2159 = vrot.slane %v2108, 4
    %v2160 = vsel %vm218, %v2120, %v2159
    %v2162 = vunpack.c.l.s4 1934713408
    %v2163 = vunpack.c.0.s8 %v2162
    %v2164 = vperm.slane %v2158, %v2163
    %v2166 = vunpack.c.l.s4 1934713408
    %v2167 = vunpack.c.0.s8 %v2166
    %v2168 = vperm.slane %v2160, %v2167
    %v2169 = vrot.slane %v2140, 4
    %v2170 = vsel %vm218, %v2169, %v2128
    %v2171 = vrot.slane %v2128, 4
    %v2172 = vsel %vm218, %v2140, %v2171
    %v2174 = vunpack.c.l.s4 1934713408
    %v2175 = vunpack.c.0.s8 %v2174
    %v2176 = vperm.slane %v2170, %v2175
    %v2178 = vunpack.c.l.s4 1934713408
    %v2179 = vunpack.c.0.s8 %v2178
    %v2180 = vperm.slane %v2172, %v2179
    %v2181 = vrot.slane %v2144, 4
    %v2182 = vsel %vm218, %v2181, %v2132
    %v2183 = vrot.slane %v2132, 4
    %v2184 = vsel %vm218, %v2144, %v2183
    %v2186 = vunpack.c.l.s4 1934713408
    %v2187 = vunpack.c.0.s8 %v2186
    %v2188 = vperm.slane %v2182, %v2187
    %v2190 = vunpack.c.l.s4 1934713408
    %v2191 = vunpack.c.0.s8 %v2190
    %v2192 = vperm.slane %v2184, %v2191
    %v2193 = vrot.slane %v2176, 4
    %v2194 = vsel %vm218, %v2193, %v2152
    %v2195 = vrot.slane %v2152, 4
    %v2196 = vsel %vm218, %v2176, %v2195
    %v2197 = vrot.slane %v2180, 4
    %v2198 = vsel %vm218, %v2197, %v2156
    %v2199 = vrot.slane %v2156, 4
    %v2200 = vsel %vm218, %v2180, %v2199
    %v2201 = vrot.slane %v2188, 4
    %v2202 = vsel %vm218, %v2201, %v2164
    %v2203 = vrot.slane %v2164, 4
    %v2204 = vsel %vm218, %v2188, %v2203
    %v2205 = vrot.slane %v2192, 4
    %v2206 = vsel %vm218, %v2205, %v2168
    %v2207 = vrot.slane %v2168, 4
    %v2208 = vsel %vm218, %v2192, %v2207
    %v2209 = vrot.slane %v1920, 4
    %v2210 = vsel %vm218, %v2209, %v1908
    %v2211 = vrot.slane %v1908, 4
    %v2212 = vsel %vm218, %v1920, %v2211
    %v2214 = vunpack.c.l.s4 1983009808
    %v2215 = vunpack.c.0.s8 %v2214
    %v2216 = vperm.slane %v2210, %v2215
    %v2218 = vunpack.c.l.s4 1983009808
    %v2219 = vunpack.c.0.s8 %v2218
    %v2220 = vperm.slane %v2212, %v2219
    %v2221 = vrot.slane %v1926, 4
    %v2222 = vsel %vm218, %v2221, %v1914
    %v2223 = vrot.slane %v1914, 4
    %v2224 = vsel %vm218, %v1926, %v2223
    %v2226 = vunpack.c.l.s4 1983009808
    %v2227 = vunpack.c.0.s8 %v2226
    %v2228 = vperm.slane %v2222, %v2227
    %v2230 = vunpack.c.l.s4 1983009808
    %v2231 = vunpack.c.0.s8 %v2230
    %v2232 = vperm.slane %v2224, %v2231
    %v2233 = vrot.slane %v2228, 4
    %v2234 = vsel %vm218, %v2233, %v2216
    %v2235 = vrot.slane %v2216, 4
    %v2236 = vsel %vm218, %v2228, %v2235
    %v2238 = vunpack.c.l.s4 1934713408
    %v2239 = vunpack.c.0.s8 %v2238
    %v2240 = vperm.slane %v2234, %v2239
    %v2242 = vunpack.c.l.s4 1934713408
    %v2243 = vunpack.c.0.s8 %v2242
    %v2244 = vperm.slane %v2236, %v2243
    %v2245 = vrot.slane %v2232, 4
    %v2246 = vsel %vm218, %v2245, %v2220
    %v2247 = vrot.slane %v2220, 4
    %v2248 = vsel %vm218, %v2232, %v2247
    %v2250 = vunpack.c.l.s4 1934713408
    %v2251 = vunpack.c.0.s8 %v2250
    %v2252 = vperm.slane %v2246, %v2251
    %v2254 = vunpack.c.l.s4 1934713408
    %v2255 = vunpack.c.0.s8 %v2254
    %v2256 = vperm.slane %v2248, %v2255
    %v2257 = vrot.slane %v2240, 4
    %v2258 = vsel %vm218, 0.0, %v2257
    %v2259 = vrot.slane %v2244, 4
    %v2260 = vsel %vm218, 0.0, %v2259
    %v2261 = vrot.slane %v2252, 4
    %v2262 = vsel %vm218, 0.0, %v2261
    %v2263 = vrot.slane %v2256, 4
    %v2264 = vsel %vm218, 0.0, %v2263
    %v2265 = vrot.slane %v2030, 4
    %v2266 = vsel %vm218, %v2265, %v2026
    %v2267 = vrot.slane %v2026, 4
    %v2268 = vsel %vm218, %v2030, %v2267
    %v2270 = vunpack.c.l.s4 1983009808
    %v2271 = vunpack.c.0.s8 %v2270
    %v2272 = vperm.slane %v2266, %v2271
    %v2274 = vunpack.c.l.s4 1983009808
    %v2275 = vunpack.c.0.s8 %v2274
    %v2276 = vperm.slane %v2268, %v2275
    %v2277 = vrot.slane %v2032, 4
    %v2278 = vsel %vm218, %v2277, %v2028
    %v2279 = vrot.slane %v2028, 4
    %v2280 = vsel %vm218, %v2032, %v2279
    %v2282 = vunpack.c.l.s4 1983009808
    %v2283 = vunpack.c.0.s8 %v2282
    %v2284 = vperm.slane %v2278, %v2283
    %v2286 = vunpack.c.l.s4 1983009808
    %v2287 = vunpack.c.0.s8 %v2286
    %v2288 = vperm.slane %v2280, %v2287
    %v2289 = vrot.slane %v2038, 4
    %v2290 = vsel %vm218, %v2289, %v2034
    %v2291 = vrot.slane %v2034, 4
    %v2292 = vsel %vm218, %v2038, %v2291
    %v2294 = vunpack.c.l.s4 1983009808
    %v2295 = vunpack.c.0.s8 %v2294
    %v2296 = vperm.slane %v2290, %v2295
    %v2298 = vunpack.c.l.s4 1983009808
    %v2299 = vunpack.c.0.s8 %v2298
    %v2300 = vperm.slane %v2292, %v2299
    %v2301 = vrot.slane %v2040, 4
    %v2302 = vsel %vm218, %v2301, %v2036
    %v2303 = vrot.slane %v2036, 4
    %v2304 = vsel %vm218, %v2040, %v2303
    %v2306 = vunpack.c.l.s4 1983009808
    %v2307 = vunpack.c.0.s8 %v2306
    %v2308 = vperm.slane %v2302, %v2307
    %v2310 = vunpack.c.l.s4 1983009808
    %v2311 = vunpack.c.0.s8 %v2310
    %v2312 = vperm.slane %v2304, %v2311
    %v2313 = vrot.slane %v2284, 4
    %v2314 = vsel %vm218, %v2313, %v2272
    %v2315 = vrot.slane %v2272, 4
    %v2316 = vsel %vm218, %v2284, %v2315
    %v2318 = vunpack.c.l.s4 1934713408
    %v2319 = vunpack.c.0.s8 %v2318
    %v2320 = vperm.slane %v2314, %v2319
    %v2322 = vunpack.c.l.s4 1934713408
    %v2323 = vunpack.c.0.s8 %v2322
    %v2324 = vperm.slane %v2316, %v2323
    %v2325 = vrot.slane %v2288, 4
    %v2326 = vsel %vm218, %v2325, %v2276
    %v2327 = vrot.slane %v2276, 4
    %v2328 = vsel %vm218, %v2288, %v2327
    %v2330 = vunpack.c.l.s4 1934713408
    %v2331 = vunpack.c.0.s8 %v2330
    %v2332 = vperm.slane %v2326, %v2331
    %v2334 = vunpack.c.l.s4 1934713408
    %v2335 = vunpack.c.0.s8 %v2334
    %v2336 = vperm.slane %v2328, %v2335
    %v2337 = vrot.slane %v2308, 4
    %v2338 = vsel %vm218, %v2337, %v2296
    %v2339 = vrot.slane %v2296, 4
    %v2340 = vsel %vm218, %v2308, %v2339
    %v2342 = vunpack.c.l.s4 1934713408
    %v2343 = vunpack.c.0.s8 %v2342
    %v2344 = vperm.slane %v2338, %v2343
    %v2346 = vunpack.c.l.s4 1934713408
    %v2347 = vunpack.c.0.s8 %v2346
    %v2348 = vperm.slane %v2340, %v2347
    %v2349 = vrot.slane %v2312, 4
    %v2350 = vsel %vm218, %v2349, %v2300
    %v2351 = vrot.slane %v2300, 4
    %v2352 = vsel %vm218, %v2312, %v2351
    %v2354 = vunpack.c.l.s4 1934713408
    %v2355 = vunpack.c.0.s8 %v2354
    %v2356 = vperm.slane %v2350, %v2355
    %v2358 = vunpack.c.l.s4 1934713408
    %v2359 = vunpack.c.0.s8 %v2358
    %v2360 = vperm.slane %v2352, %v2359
    %v2361 = vrot.slane %v2344, 4
    %v2362 = vsel %vm218, %v2361, %v2320
    %v2363 = vrot.slane %v2320, 4
    %v2364 = vsel %vm218, %v2344, %v2363
    %v2365 = vrot.slane %v2348, 4
    %v2366 = vsel %vm218, %v2365, %v2324
    %v2367 = vrot.slane %v2324, 4
    %v2368 = vsel %vm218, %v2348, %v2367
    %v2369 = vrot.slane %v2356, 4
    %v2370 = vsel %vm218, %v2369, %v2332
    %v2371 = vrot.slane %v2332, 4
    %v2372 = vsel %vm218, %v2356, %v2371
    %v2373 = vrot.slane %v2360, 4
    %v2374 = vsel %vm218, %v2373, %v2336
    %v2375 = vrot.slane %v2336, 4
    %v2376 = vsel %vm218, %v2360, %v2375
    %v2377 = vrot.slane %v2198, 4
    %v2378 = vsel %vm218, %v2377, %v2194
    %v2379 = vrot.slane %v2194, 4
    %v2380 = vsel %vm218, %v2198, %v2379
    %v2382 = vunpack.c.l.s4 1983009808
    %v2383 = vunpack.c.0.s8 %v2382
    %v2384 = vperm.slane %v2378, %v2383
    %v2386 = vunpack.c.l.s4 1983009808
    %v2387 = vunpack.c.0.s8 %v2386
    %v2388 = vperm.slane %v2380, %v2387
    %v2389 = vrot.slane %v2200, 4
    %v2390 = vsel %vm218, %v2389, %v2196
    %v2391 = vrot.slane %v2196, 4
    %v2392 = vsel %vm218, %v2200, %v2391
    %v2394 = vunpack.c.l.s4 1983009808
    %v2395 = vunpack.c.0.s8 %v2394
    %v2396 = vperm.slane %v2390, %v2395
    %v2398 = vunpack.c.l.s4 1983009808
    %v2399 = vunpack.c.0.s8 %v2398
    %v2400 = vperm.slane %v2392, %v2399
    %v2401 = vrot.slane %v2206, 4
    %v2402 = vsel %vm218, %v2401, %v2202
    %v2403 = vrot.slane %v2202, 4
    %v2404 = vsel %vm218, %v2206, %v2403
    %v2406 = vunpack.c.l.s4 1983009808
    %v2407 = vunpack.c.0.s8 %v2406
    %v2408 = vperm.slane %v2402, %v2407
    %v2410 = vunpack.c.l.s4 1983009808
    %v2411 = vunpack.c.0.s8 %v2410
    %v2412 = vperm.slane %v2404, %v2411
    %v2413 = vrot.slane %v2208, 4
    %v2414 = vsel %vm218, %v2413, %v2204
    %v2415 = vrot.slane %v2204, 4
    %v2416 = vsel %vm218, %v2208, %v2415
    %v2418 = vunpack.c.l.s4 1983009808
    %v2419 = vunpack.c.0.s8 %v2418
    %v2420 = vperm.slane %v2414, %v2419
    %v2422 = vunpack.c.l.s4 1983009808
    %v2423 = vunpack.c.0.s8 %v2422
    %v2424 = vperm.slane %v2416, %v2423
    %v2425 = vrot.slane %v2396, 4
    %v2426 = vsel %vm218, %v2425, %v2384
    %v2427 = vrot.slane %v2384, 4
    %v2428 = vsel %vm218, %v2396, %v2427
    %v2430 = vunpack.c.l.s4 1934713408
    %v2431 = vunpack.c.0.s8 %v2430
    %v2432 = vperm.slane %v2426, %v2431
    %v2434 = vunpack.c.l.s4 1934713408
    %v2435 = vunpack.c.0.s8 %v2434
    %v2436 = vperm.slane %v2428, %v2435
    %v2437 = vrot.slane %v2400, 4
    %v2438 = vsel %vm218, %v2437, %v2388
    %v2439 = vrot.slane %v2388, 4
    %v2440 = vsel %vm218, %v2400, %v2439
    %v2442 = vunpack.c.l.s4 1934713408
    %v2443 = vunpack.c.0.s8 %v2442
    %v2444 = vperm.slane %v2438, %v2443
    %v2446 = vunpack.c.l.s4 1934713408
    %v2447 = vunpack.c.0.s8 %v2446
    %v2448 = vperm.slane %v2440, %v2447
    %v2449 = vrot.slane %v2420, 4
    %v2450 = vsel %vm218, %v2449, %v2408
    %v2451 = vrot.slane %v2408, 4
    %v2452 = vsel %vm218, %v2420, %v2451
    %v2454 = vunpack.c.l.s4 1934713408
    %v2455 = vunpack.c.0.s8 %v2454
    %v2456 = vperm.slane %v2450, %v2455
    %v2458 = vunpack.c.l.s4 1934713408
    %v2459 = vunpack.c.0.s8 %v2458
    %v2460 = vperm.slane %v2452, %v2459
    %v2461 = vrot.slane %v2424, 4
    %v2462 = vsel %vm218, %v2461, %v2412
    %v2463 = vrot.slane %v2412, 4
    %v2464 = vsel %vm218, %v2424, %v2463
    %v2466 = vunpack.c.l.s4 1934713408
    %v2467 = vunpack.c.0.s8 %v2466
    %v2468 = vperm.slane %v2462, %v2467
    %v2470 = vunpack.c.l.s4 1934713408
    %v2471 = vunpack.c.0.s8 %v2470
    %v2472 = vperm.slane %v2464, %v2471
    %v2473 = vrot.slane %v2456, 4
    %v2474 = vsel %vm218, %v2473, %v2432
    %v2475 = vrot.slane %v2432, 4
    %v2476 = vsel %vm218, %v2456, %v2475
    %v2477 = vrot.slane %v2460, 4
    %v2478 = vsel %vm218, %v2477, %v2436
    %v2479 = vrot.slane %v2436, 4
    %v2480 = vsel %vm218, %v2460, %v2479
    %v2481 = vrot.slane %v2468, 4
    %v2482 = vsel %vm218, %v2481, %v2444
    %v2483 = vrot.slane %v2444, 4
    %v2484 = vsel %vm218, %v2468, %v2483
    %v2485 = vrot.slane %v2472, 4
    %v2486 = vsel %vm218, %v2485, %v2448
    %v2487 = vrot.slane %v2448, 4
    %v2488 = vsel %vm218, %v2472, %v2487
    %v2489 = vsel %vm218, %v2091, %v2072
    %v2491 = vunpack.c.l.s4 1983009808
    %v2492 = vunpack.c.0.s8 %v2491
    %v2493 = vperm.slane %v2489, %v2492
    %v2494 = vrot.slane %v2092, 4
    %v2495 = vsel %vm218, %v2494, %v2090
    %v2497 = vunpack.c.l.s4 1983009808
    %v2498 = vunpack.c.0.s8 %v2497
    %v2499 = vperm.slane %v2495, %v2498
    %v2500 = vsel %vm218, %v2095, %v2084
    %v2502 = vunpack.c.l.s4 1983009808
    %v2503 = vunpack.c.0.s8 %v2502
    %v2504 = vperm.slane %v2500, %v2503
    %v2505 = vrot.slane %v2096, 4
    %v2506 = vsel %vm218, %v2505, %v2094
    %v2508 = vunpack.c.l.s4 1983009808
    %v2509 = vunpack.c.0.s8 %v2508
    %v2510 = vperm.slane %v2506, %v2509
    %v2511 = vrot.slane %v2499, 4
    %v2512 = vsel %vm218, %v2511, %v2493
    %v2513 = vrot.slane %v2493, 4
    %v2514 = vsel %vm218, %v2499, %v2513
    %v2516 = vunpack.c.l.s4 1934713408
    %v2517 = vunpack.c.0.s8 %v2516
    %v2518 = vperm.slane %v2512, %v2517
    %v2520 = vunpack.c.l.s4 1934713408
    %v2521 = vunpack.c.0.s8 %v2520
    %v2522 = vperm.slane %v2514, %v2521
    %v2523 = vrot.slane %v2510, 4
    %v2524 = vsel %vm218, %v2523, %v2504
    %v2525 = vrot.slane %v2504, 4
    %v2526 = vsel %vm218, %v2510, %v2525
    %v2528 = vunpack.c.l.s4 1934713408
    %v2529 = vunpack.c.0.s8 %v2528
    %v2530 = vperm.slane %v2524, %v2529
    %v2532 = vunpack.c.l.s4 1934713408
    %v2533 = vunpack.c.0.s8 %v2532
    %v2534 = vperm.slane %v2526, %v2533
    %v2535 = vrot.slane %v2530, 4
    %v2536 = vsel %vm218, %v2535, %v2518
    %v2537 = vrot.slane %v2518, 4
    %v2538 = vsel %vm218, %v2530, %v2537
    %v2539 = vrot.slane %v2534, 4
    %v2540 = vsel %vm218, %v2539, %v2522
    %v2541 = vrot.slane %v2522, 4
    %v2542 = vsel %vm218, %v2534, %v2541
    %v2543 = vsel %vm218, %v2259, %v2240
    %v2545 = vunpack.c.l.s4 1983009808
    %v2546 = vunpack.c.0.s8 %v2545
    %v2547 = vperm.slane %v2543, %v2546
    %v2548 = vrot.slane %v2260, 4
    %v2549 = vsel %vm218, %v2548, %v2258
    %v2551 = vunpack.c.l.s4 1983009808
    %v2552 = vunpack.c.0.s8 %v2551
    %v2553 = vperm.slane %v2549, %v2552
    %v2554 = vsel %vm218, %v2263, %v2252
    %v2556 = vunpack.c.l.s4 1983009808
    %v2557 = vunpack.c.0.s8 %v2556
    %v2558 = vperm.slane %v2554, %v2557
    %v2559 = vrot.slane %v2264, 4
    %v2560 = vsel %vm218, %v2559, %v2262
    %v2562 = vunpack.c.l.s4 1983009808
    %v2563 = vunpack.c.0.s8 %v2562
    %v2564 = vperm.slane %v2560, %v2563
    %v2565 = vrot.slane %v2553, 4
    %v2566 = vsel %vm218, %v2565, %v2547
    %v2567 = vrot.slane %v2547, 4
    %v2568 = vsel %vm218, %v2553, %v2567
    %v2570 = vunpack.c.l.s4 1934713408
    %v2571 = vunpack.c.0.s8 %v2570
    %v2572 = vperm.slane %v2566, %v2571
    %v2574 = vunpack.c.l.s4 1934713408
    %v2575 = vunpack.c.0.s8 %v2574
    %v2576 = vperm.slane %v2568, %v2575
    %v2577 = vrot.slane %v2564, 4
    %v2578 = vsel %vm218, %v2577, %v2558
    %v2579 = vrot.slane %v2558, 4
    %v2580 = vsel %vm218, %v2564, %v2579
    %v2582 = vunpack.c.l.s4 1934713408
    %v2583 = vunpack.c.0.s8 %v2582
    %v2584 = vperm.slane %v2578, %v2583
    %v2586 = vunpack.c.l.s4 1934713408
    %v2587 = vunpack.c.0.s8 %v2586
    %v2588 = vperm.slane %v2580, %v2587
    %v2589 = vrot.slane %v2584, 4
    %v2590 = vsel %vm218, %v2589, %v2572
    %v2591 = vrot.slane %v2572, 4
    %v2592 = vsel %vm218, %v2584, %v2591
    %v2593 = vrot.slane %v2588, 4
    %v2594 = vsel %vm218, %v2593, %v2576
    %v2595 = vrot.slane %v2576, 4
    %v2596 = vsel %vm218, %v2588, %v2595
    %v2598 = vsel %vm886, %v2362, 0
    %v2601 = vsel %vm886, %v2474, 0
    %v2604 = vsel %vm886, %v2370, 0
    %v2607 = vsel %vm886, %v2482, 0
    %2609 = vmatpush.xpose.msra.mxu0 0.0
    %2610 = vmatpush.xpose.msra.mxu0 0.0
    %2611 = vmatpush.xpose.msra.mxu0 0.0
    %2612 = vmatpush.xpose.msra.mxu0 0.0
    %2613 = vmatpush.xpose.msra.mxu0 0.0
    %2614 = vmatpush.xpose.msra.mxu0 0.0
    %2615 = vmatpush.xpose.msra.mxu0 0.0
    %2616 = vmatpush.xpose.msra.mxu0 0.0
    %2617 = vmatpush.xpose.msra.mxu0 0.0
    %2618 = vmatpush.xpose.msra.mxu0 0.0
    %2619 = vmatpush.xpose.msra.mxu0 0.0
    %2620 = vmatpush.xpose.msra.mxu0 0.0
    %2621 = vmatpush.xpose.msra.mxu0 0.0
    %2622 = vmatpush.xpose.msra.mxu0 0.0
    %2623 = vmatpush.xpose.msra.mxu0 %v2607
    %2624 = vmatpush.xpose.msra.mxu0 %v2604
    %2625 = vmatmul.f32.gmra.mxu0 %v2598
    %v2626 = vpop.f32.mrf.mxu0
    %v2627 = vadd.f32 0.0, %v2626
    %2628 = vmatmul.f32.gmra.mxu0 %v2601
    %v2629 = vpop.f32.mrf.mxu0
    %v2630 = vadd.f32 0.0, %v2629
    %2631 = vdwg.mxu0
    %v2633 = vsel %vm886, %v2364, 0
    %v2636 = vsel %vm886, %v2476, 0
    %v2639 = vsel %vm886, %v2372, 0
    %v2642 = vsel %vm886, %v2484, 0
    %2644 = vmatpush.xpose.msra.mxu0 0.0
    %2645 = vmatpush.xpose.msra.mxu0 0.0
    %2646 = vmatpush.xpose.msra.mxu0 0.0
    %2647 = vmatpush.xpose.msra.mxu0 0.0
    %2648 = vmatpush.xpose.msra.mxu0 0.0
    %2649 = vmatpush.xpose.msra.mxu0 0.0
    %2650 = vmatpush.xpose.msra.mxu0 0.0
    %2651 = vmatpush.xpose.msra.mxu0 0.0
    %2652 = vmatpush.xpose.msra.mxu0 0.0
    %2653 = vmatpush.xpose.msra.mxu0 0.0
    %2654 = vmatpush.xpose.msra.mxu0 0.0
    %2655 = vmatpush.xpose.msra.mxu0 0.0
    %2656 = vmatpush.xpose.msra.mxu0 0.0
    %2657 = vmatpush.xpose.msra.mxu0 0.0
    %2658 = vmatpush.xpose.msra.mxu0 %v2642
    %2659 = vmatpush.xpose.msra.mxu0 %v2639
    %2660 = vmatmul.f32.gmra.mxu0 %v2633
    %v2661 = vpop.f32.mrf.mxu0
    %v2662 = vadd.f32 0.0, %v2661
    %2663 = vmatmul.f32.gmra.mxu0 %v2636
    %v2664 = vpop.f32.mrf.mxu0
    %v2665 = vadd.f32 0.0, %v2664
    %2666 = vdwg.mxu0
    %v2668 = vsel %vm886, %v2366, 0
    %v2671 = vsel %vm886, %v2478, 0
    %v2674 = vsel %vm886, %v2374, 0
    %v2677 = vsel %vm886, %v2486, 0
    %2679 = vmatpush.xpose.msra.mxu0 0.0
    %2680 = vmatpush.xpose.msra.mxu0 0.0
    %2681 = vmatpush.xpose.msra.mxu0 0.0
    %2682 = vmatpush.xpose.msra.mxu0 0.0
    %2683 = vmatpush.xpose.msra.mxu0 0.0
    %2684 = vmatpush.xpose.msra.mxu0 0.0
    %2685 = vmatpush.xpose.msra.mxu0 0.0
    %2686 = vmatpush.xpose.msra.mxu0 0.0
    %2687 = vmatpush.xpose.msra.mxu0 0.0
    %2688 = vmatpush.xpose.msra.mxu0 0.0
    %2689 = vmatpush.xpose.msra.mxu0 0.0
    %2690 = vmatpush.xpose.msra.mxu0 0.0
    %2691 = vmatpush.xpose.msra.mxu0 0.0
    %2692 = vmatpush.xpose.msra.mxu0 0.0
    %2693 = vmatpush.xpose.msra.mxu0 %v2677
    %2694 = vmatpush.xpose.msra.mxu0 %v2674
    %2695 = vmatmul.f32.gmra.mxu0 %v2668
    %v2696 = vpop.f32.mrf.mxu0
    %v2697 = vadd.f32 0.0, %v2696
    %2698 = vmatmul.f32.gmra.mxu0 %v2671
    %v2699 = vpop.f32.mrf.mxu0
    %v2700 = vadd.f32 0.0, %v2699
    %2701 = vdwg.mxu0
    %v2703 = vsel %vm886, %v2368, 0
    %v2706 = vsel %vm886, %v2480, 0
    %v2709 = vsel %vm886, %v2376, 0
    %v2712 = vsel %vm886, %v2488, 0
    %2714 = vmatpush.xpose.msra.mxu0 0.0
    %2715 = vmatpush.xpose.msra.mxu0 0.0
    %2716 = vmatpush.xpose.msra.mxu0 0.0
    %2717 = vmatpush.xpose.msra.mxu0 0.0
    %2718 = vmatpush.xpose.msra.mxu0 0.0
    %2719 = vmatpush.xpose.msra.mxu0 0.0
    %2720 = vmatpush.xpose.msra.mxu0 0.0
    %2721 = vmatpush.xpose.msra.mxu0 0.0
    %2722 = vmatpush.xpose.msra.mxu0 0.0
    %2723 = vmatpush.xpose.msra.mxu0 0.0
    %2724 = vmatpush.xpose.msra.mxu0 0.0
    %2725 = vmatpush.xpose.msra.mxu0 0.0
    %2726 = vmatpush.xpose.msra.mxu0 0.0
    %2727 = vmatpush.xpose.msra.mxu0 0.0
    %2728 = vmatpush.xpose.msra.mxu0 %v2712
    %2729 = vmatpush.xpose.msra.mxu0 %v2709
    %2730 = vmatmul.f32.gmra.mxu0 %v2703
    %v2731 = vpop.f32.mrf.mxu0
    %v2732 = vadd.f32 0.0, %v2731
    %2733 = vmatmul.f32.gmra.mxu0 %v2706
    %v2734 = vpop.f32.mrf.mxu0
    %v2735 = vadd.f32 0.0, %v2734
    %2736 = vdwg.mxu0
    %v2737 = vmul.f32 %v2627, 0.35355338
    %v2738 = vmul.f32 %v2630, 0.35355338
    %v2739 = vmul.f32 %v2662, 0.35355338
    %v2740 = vmul.f32 %v2665, 0.35355338
    %v2741 = vmul.f32 %v2697, 0.35355338
    %v2742 = vmul.f32 %v2700, 0.35355338
    %v2743 = vmul.f32 %v2732, 0.35355338
    %v2744 = vmul.f32 %v2735, 0.35355338
    %v2745 = vadd.f32 %v2737, %v95
    %v2746 = vadd.f32 %v2738, %v96
    %v2747 = vadd.f32 %v2739, %v95
    %v2748 = vadd.f32 %v2740, %v96
    %v2749 = vadd.f32 %v2741, %v95
    %v2750 = vadd.f32 %v2742, %v96
    %v2751 = vadd.f32 %v2743, %v95
    %v2752 = vadd.f32 %v2744, %v96
    %v2753 = vsel %vm1043, %v2745, -inf
    %2754 = vmax.xlane.f32.xlu0 %v2753
    %v2755 = vpop.xlane.xlu0 %2754
    %v2756 = vsel %vm1043, %v2746, -inf
    %2757 = vmax.xlane.f32.xlu0 %v2756
    %v2758 = vpop.xlane.xlu0 %2757
    %v2759 = vsel %vm1043, %v2747, -inf
    %2760 = vmax.xlane.f32.xlu0 %v2759
    %v2761 = vpop.xlane.xlu0 %2760
    %v2762 = vsel %vm1043, %v2748, -inf
    %2763 = vmax.xlane.f32.xlu0 %v2762
    %v2764 = vpop.xlane.xlu0 %2763
    %v2765 = vsel %vm1043, %v2749, -inf
    %2766 = vmax.xlane.f32.xlu0 %v2765
    %v2767 = vpop.xlane.xlu0 %2766
    %v2768 = vsel %vm1043, %v2750, -inf
    %2769 = vmax.xlane.f32.xlu0 %v2768
    %v2770 = vpop.xlane.xlu0 %2769
    %v2771 = vsel %vm1043, %v2751, -inf
    %2772 = vmax.xlane.f32.xlu0 %v2771
    %v2773 = vpop.xlane.xlu0 %2772
    %v2774 = vsel %vm1043, %v2752, -inf
    %2775 = vmax.xlane.f32.xlu0 %v2774
    %v2776 = vpop.xlane.xlu0 %2775
    %v2777 = vsub.f32 %v2745, %v2755
    %v2778 = vsub.f32 %v2746, %v2758
    %v2779 = vsub.f32 %v2747, %v2761
    %v2780 = vsub.f32 %v2748, %v2764
    %v2781 = vsub.f32 %v2749, %v2767
    %v2782 = vsub.f32 %v2750, %v2770
    %v2783 = vsub.f32 %v2751, %v2773
    %v2784 = vsub.f32 %v2752, %v2776
    %v2785 = vmul.f32 %v2777, 1.442695
    %v2786 = vpow.pop %v2785
    %v2787 = vmul.f32 %v2778, 1.442695
    %v2788 = vpow.pop %v2787
    %v2789 = vmul.f32 %v2779, 1.442695
    %v2790 = vpow.pop %v2789
    %v2791 = vmul.f32 %v2780, 1.442695
    %v2792 = vpow.pop %v2791
    %v2793 = vmul.f32 %v2781, 1.442695
    %v2794 = vpow.pop %v2793
    %v2795 = vmul.f32 %v2782, 1.442695
    %v2796 = vpow.pop %v2795
    %v2797 = vmul.f32 %v2783, 1.442695
    %v2798 = vpow.pop %v2797
    %v2799 = vmul.f32 %v2784, 1.442695
    %v2800 = vpow.pop %v2799
    %v2801 = vsel %vm1043, %v2786, 0.0
    %2802 = vadd.xlane.f32.xlu0 %v2801
    %v2803 = vpop.xlane.xlu0 %2802
    %v2804 = vsel %vm1043, %v2788, 0.0
    %2805 = vadd.xlane.f32.xlu0 %v2804
    %v2806 = vpop.xlane.xlu0 %2805
    %v2807 = vsel %vm1043, %v2790, 0.0
    %2808 = vadd.xlane.f32.xlu0 %v2807
    %v2809 = vpop.xlane.xlu0 %2808
    %v2810 = vsel %vm1043, %v2792, 0.0
    %2811 = vadd.xlane.f32.xlu0 %v2810
    %v2812 = vpop.xlane.xlu0 %2811
    %v2813 = vsel %vm1043, %v2794, 0.0
    %2814 = vadd.xlane.f32.xlu0 %v2813
    %v2815 = vpop.xlane.xlu0 %2814
    %v2816 = vsel %vm1043, %v2796, 0.0
    %2817 = vadd.xlane.f32.xlu0 %v2816
    %v2818 = vpop.xlane.xlu0 %2817
    %v2819 = vsel %vm1043, %v2798, 0.0
    %2820 = vadd.xlane.f32.xlu0 %v2819
    %v2821 = vpop.xlane.xlu0 %2820
    %v2822 = vsel %vm1043, %v2800, 0.0
    %2823 = vadd.xlane.f32.xlu0 %v2822
    %v2824 = vpop.xlane.xlu0 %2823
    %v2825 = vrcp.pop %v2803
    %v2826 = vmul.f32 %v2803, %v2825
    %v2827 = vsub.f32 1.0, %v2826
    %v2828 = vmul.f32 %v2825, %v2827
    %v2829 = vadd.f32 %v2825, %v2828
    %vm2830 = vweird.f32 %v2803
    %vm2831 = vweird.f32 %v2825
    %vm2832 = vmor %vm2830, %vm2831
    %v2833 = vsel %vm2832, %v2825, %v2829
    %v2834 = vand.u32 2147483647, %v2803
    %vm2835 = vcmp.eq.f32.partialorder %v2834, 8.507059e+37
    %v2836 = vand.u32 %v2803, 2147483648
    %v2837 = vor.u32 1.1754944e-38, %v2836
    %v2838 = vsel %vm2835, %v2837, %v2833
    %v2839 = vmul.f32 %v2786, %v2838
    %v2840 = vrcp.pop %v2806
    %v2841 = vmul.f32 %v2806, %v2840
    %v2842 = vsub.f32 1.0, %v2841
    %v2843 = vmul.f32 %v2840, %v2842
    %v2844 = vadd.f32 %v2840, %v2843
    %vm2845 = vweird.f32 %v2806
    %vm2846 = vweird.f32 %v2840
    %vm2847 = vmor %vm2845, %vm2846
    %v2848 = vsel %vm2847, %v2840, %v2844
    %v2849 = vand.u32 2147483647, %v2806
    %vm2850 = vcmp.eq.f32.partialorder %v2849, 8.507059e+37
    %v2851 = vand.u32 %v2806, 2147483648
    %v2852 = vor.u32 1.1754944e-38, %v2851
    %v2853 = vsel %vm2850, %v2852, %v2848
    %v2854 = vmul.f32 %v2788, %v2853
    %v2855 = vrcp.pop %v2809
    %v2856 = vmul.f32 %v2809, %v2855
    %v2857 = vsub.f32 1.0, %v2856
    %v2858 = vmul.f32 %v2855, %v2857
    %v2859 = vadd.f32 %v2855, %v2858
    %vm2860 = vweird.f32 %v2809
    %vm2861 = vweird.f32 %v2855
    %vm2862 = vmor %vm2860, %vm2861
    %v2863 = vsel %vm2862, %v2855, %v2859
    %v2864 = vand.u32 2147483647, %v2809
    %vm2865 = vcmp.eq.f32.partialorder %v2864, 8.507059e+37
    %v2866 = vand.u32 %v2809, 2147483648
    %v2867 = vor.u32 1.1754944e-38, %v2866
    %v2868 = vsel %vm2865, %v2867, %v2863
    %v2869 = vmul.f32 %v2790, %v2868
    %v2870 = vrcp.pop %v2812
    %v2871 = vmul.f32 %v2812, %v2870
    %v2872 = vsub.f32 1.0, %v2871
    %v2873 = vmul.f32 %v2870, %v2872
    %v2874 = vadd.f32 %v2870, %v2873
    %vm2875 = vweird.f32 %v2812
    %vm2876 = vweird.f32 %v2870
    %vm2877 = vmor %vm2875, %vm2876
    %v2878 = vsel %vm2877, %v2870, %v2874
    %v2879 = vand.u32 2147483647, %v2812
    %vm2880 = vcmp.eq.f32.partialorder %v2879, 8.507059e+37
    %v2881 = vand.u32 %v2812, 2147483648
    %v2882 = vor.u32 1.1754944e-38, %v2881
    %v2883 = vsel %vm2880, %v2882, %v2878
    %v2884 = vmul.f32 %v2792, %v2883
    %v2885 = vrcp.pop %v2815
    %v2886 = vmul.f32 %v2815, %v2885
    %v2887 = vsub.f32 1.0, %v2886
    %v2888 = vmul.f32 %v2885, %v2887
    %v2889 = vadd.f32 %v2885, %v2888
    %vm2890 = vweird.f32 %v2815
    %vm2891 = vweird.f32 %v2885
    %vm2892 = vmor %vm2890, %vm2891
    %v2893 = vsel %vm2892, %v2885, %v2889
    %v2894 = vand.u32 2147483647, %v2815
    %vm2895 = vcmp.eq.f32.partialorder %v2894, 8.507059e+37
    %v2896 = vand.u32 %v2815, 2147483648
    %v2897 = vor.u32 1.1754944e-38, %v2896
    %v2898 = vsel %vm2895, %v2897, %v2893
    %v2899 = vmul.f32 %v2794, %v2898
    %v2900 = vrcp.pop %v2818
    %v2901 = vmul.f32 %v2818, %v2900
    %v2902 = vsub.f32 1.0, %v2901
    %v2903 = vmul.f32 %v2900, %v2902
    %v2904 = vadd.f32 %v2900, %v2903
    %vm2905 = vweird.f32 %v2818
    %vm2906 = vweird.f32 %v2900
    %vm2907 = vmor %vm2905, %vm2906
    %v2908 = vsel %vm2907, %v2900, %v2904
    %v2909 = vand.u32 2147483647, %v2818
    %vm2910 = vcmp.eq.f32.partialorder %v2909, 8.507059e+37
    %v2911 = vand.u32 %v2818, 2147483648
    %v2912 = vor.u32 1.1754944e-38, %v2911
    %v2913 = vsel %vm2910, %v2912, %v2908
    %v2914 = vmul.f32 %v2796, %v2913
    %v2915 = vrcp.pop %v2821
    %v2916 = vmul.f32 %v2821, %v2915
    %v2917 = vsub.f32 1.0, %v2916
    %v2918 = vmul.f32 %v2915, %v2917
    %v2919 = vadd.f32 %v2915, %v2918
    %vm2920 = vweird.f32 %v2821
    %vm2921 = vweird.f32 %v2915
    %vm2922 = vmor %vm2920, %vm2921
    %v2923 = vsel %vm2922, %v2915, %v2919
    %v2924 = vand.u32 2147483647, %v2821
    %vm2925 = vcmp.eq.f32.partialorder %v2924, 8.507059e+37
    %v2926 = vand.u32 %v2821, 2147483648
    %v2927 = vor.u32 1.1754944e-38, %v2926
    %v2928 = vsel %vm2925, %v2927, %v2923
    %v2929 = vmul.f32 %v2798, %v2928
    %v2930 = vrcp.pop %v2824
    %v2931 = vmul.f32 %v2824, %v2930
    %v2932 = vsub.f32 1.0, %v2931
    %v2933 = vmul.f32 %v2930, %v2932
    %v2934 = vadd.f32 %v2930, %v2933
    %vm2935 = vweird.f32 %v2824
    %vm2936 = vweird.f32 %v2930
    %vm2937 = vmor %vm2935, %vm2936
    %v2938 = vsel %vm2937, %v2930, %v2934
    %v2939 = vand.u32 2147483647, %v2824
    %vm2940 = vcmp.eq.f32.partialorder %v2939, 8.507059e+37
    %v2941 = vand.u32 %v2824, 2147483648
    %v2942 = vor.u32 1.1754944e-38, %v2941
    %v2943 = vsel %vm2940, %v2942, %v2938
    %v2944 = vmul.f32 %v2800, %v2943
    %v2946 = vsel %vm1043, %v2839, 0
    %v2949 = vsel %vm1043, %v2854, 0
    %2951 = vmatpush.msra.mxu0 0.0
    %2952 = vmatpush.msra.mxu0 0.0
    %2953 = vmatpush.msra.mxu0 0.0
    %2954 = vmatpush.msra.mxu0 0.0
    %2955 = vmatpush.msra.mxu0 0.0
    %2956 = vmatpush.msra.mxu0 0.0
    %2957 = vmatpush.msra.mxu0 0.0
    %2958 = vmatpush.msra.mxu0 0.0
    %2959 = vmatpush.msra.mxu0 0.0
    %2960 = vmatpush.msra.mxu0 0.0
    %2961 = vmatpush.msra.mxu0 0.0
    %2962 = vmatpush.msra.mxu0 0.0
    %2963 = vmatpush.msra.mxu0 0.0
    %2964 = vmatpush.msra.mxu0 0.0
    %2965 = vmatpush.msra.mxu0 %v2590
    %2966 = vmatpush.msra.mxu0 %v2536
    %2967 = vmatmul.f32.gmra.mxu0 %v2946
    %v2968 = vpop.f32.mrf.mxu0
    %v2969 = vadd.f32 0.0, %v2968
    %2970 = vmatmul.f32.gmra.mxu0 %v2949
    %v2971 = vpop.f32.mrf.mxu0
    %v2972 = vadd.f32 0.0, %v2971
    %2973 = vdwg.mxu0
    %v2975 = vsel %vm1043, %v2869, 0
    %v2978 = vsel %vm1043, %v2884, 0
    %2980 = vmatpush.msra.mxu0 0.0
    %2981 = vmatpush.msra.mxu0 0.0
    %2982 = vmatpush.msra.mxu0 0.0
    %2983 = vmatpush.msra.mxu0 0.0
    %2984 = vmatpush.msra.mxu0 0.0
    %2985 = vmatpush.msra.mxu0 0.0
    %2986 = vmatpush.msra.mxu0 0.0
    %2987 = vmatpush.msra.mxu0 0.0
    %2988 = vmatpush.msra.mxu0 0.0
    %2989 = vmatpush.msra.mxu0 0.0
    %2990 = vmatpush.msra.mxu0 0.0
    %2991 = vmatpush.msra.mxu0 0.0
    %2992 = vmatpush.msra.mxu0 0.0
    %2993 = vmatpush.msra.mxu0 0.0
    %2994 = vmatpush.msra.mxu0 %v2592
    %2995 = vmatpush.msra.mxu0 %v2538
    %2996 = vmatmul.f32.gmra.mxu0 %v2975
    %v2997 = vpop.f32.mrf.mxu0
    %v2998 = vadd.f32 0.0, %v2997
    %2999 = vmatmul.f32.gmra.mxu0 %v2978
    %v3000 = vpop.f32.mrf.mxu0
    %v3001 = vadd.f32 0.0, %v3000
    %3002 = vdwg.mxu0
    %v3004 = vsel %vm1043, %v2899, 0
    %v3007 = vsel %vm1043, %v2914, 0
    %3009 = vmatpush.msra.mxu0 0.0
    %3010 = vmatpush.msra.mxu0 0.0
    %3011 = vmatpush.msra.mxu0 0.0
    %3012 = vmatpush.msra.mxu0 0.0
    %3013 = vmatpush.msra.mxu0 0.0
    %3014 = vmatpush.msra.mxu0 0.0
    %3015 = vmatpush.msra.mxu0 0.0
    %3016 = vmatpush.msra.mxu0 0.0
    %3017 = vmatpush.msra.mxu0 0.0
    %3018 = vmatpush.msra.mxu0 0.0
    %3019 = vmatpush.msra.mxu0 0.0
    %3020 = vmatpush.msra.mxu0 0.0
    %3021 = vmatpush.msra.mxu0 0.0
    %3022 = vmatpush.msra.mxu0 0.0
    %3023 = vmatpush.msra.mxu0 %v2594
    %3024 = vmatpush.msra.mxu0 %v2540
    %3025 = vmatmul.f32.gmra.mxu0 %v3004
    %v3026 = vpop.f32.mrf.mxu0
    %v3027 = vadd.f32 0.0, %v3026
    %3028 = vmatmul.f32.gmra.mxu0 %v3007
    %v3029 = vpop.f32.mrf.mxu0
    %v3030 = vadd.f32 0.0, %v3029
    %3031 = vdwg.mxu0
    %v3033 = vsel %vm1043, %v2929, 0
    %v3036 = vsel %vm1043, %v2944, 0
    %3038 = vmatpush.msra.mxu0 0.0
    %3039 = vmatpush.msra.mxu0 0.0
    %3040 = vmatpush.msra.mxu0 0.0
    %3041 = vmatpush.msra.mxu0 0.0
    %3042 = vmatpush.msra.mxu0 0.0
    %3043 = vmatpush.msra.mxu0 0.0
    %3044 = vmatpush.msra.mxu0 0.0
    %3045 = vmatpush.msra.mxu0 0.0
    %3046 = vmatpush.msra.mxu0 0.0
    %3047 = vmatpush.msra.mxu0 0.0
    %3048 = vmatpush.msra.mxu0 0.0
    %3049 = vmatpush.msra.mxu0 0.0
    %3050 = vmatpush.msra.mxu0 0.0
    %3051 = vmatpush.msra.mxu0 0.0
    %3052 = vmatpush.msra.mxu0 %v2596
    %3053 = vmatpush.msra.mxu0 %v2542
    %3054 = vmatmul.f32.gmra.mxu0 %v3033
    %v3055 = vpop.f32.mrf.mxu0
    %v3056 = vadd.f32 0.0, %v3055
    %3057 = vmatmul.f32.gmra.mxu0 %v3036
    %v3058 = vpop.f32.mrf.mxu0
    %v3059 = vadd.f32 0.0, %v3058
    %3060 = vdwg.mxu0
    %v3061 = vrot.slane %v3027, 4
    %v3062 = vsel %vm218, %v3061, %v2969
    %v3063 = vrot.slane %v2969, 4
    %v3064 = vsel %vm218, %v3027, %v3063
    %v3066 = vunpack.c.l.s4 1983009808
    %v3067 = vunpack.c.0.s8 %v3066
    %v3068 = vperm.slane %v3062, %v3067
    %v3070 = vunpack.c.l.s4 1983009808
    %v3071 = vunpack.c.0.s8 %v3070
    %v3072 = vperm.slane %v3064, %v3071
    %v3073 = vrot.slane %v3056, 4
    %v3074 = vsel %vm218, %v3073, %v2998
    %v3075 = vrot.slane %v2998, 4
    %v3076 = vsel %vm218, %v3056, %v3075
    %v3078 = vunpack.c.l.s4 1983009808
    %v3079 = vunpack.c.0.s8 %v3078
    %v3080 = vperm.slane %v3074, %v3079
    %v3082 = vunpack.c.l.s4 1983009808
    %v3083 = vunpack.c.0.s8 %v3082
    %v3084 = vperm.slane %v3076, %v3083
    %v3085 = vrot.slane %v3080, 4
    %v3086 = vsel %vm218, %v3085, %v3068
    %v3087 = vrot.slane %v3068, 4
    %v3088 = vsel %vm218, %v3080, %v3087
    %v3090 = vunpack.c.l.s4 1934713408
    %v3091 = vunpack.c.0.s8 %v3090
    %v3092 = vperm.slane %v3086, %v3091
    %v3094 = vunpack.c.l.s4 1934713408
    %v3095 = vunpack.c.0.s8 %v3094
    %v3096 = vperm.slane %v3088, %v3095
    %v3097 = vrot.slane %v3084, 4
    %v3098 = vsel %vm218, %v3097, %v3072
    %v3099 = vrot.slane %v3072, 4
    %v3100 = vsel %vm218, %v3084, %v3099
    %v3102 = vunpack.c.l.s4 1934713408
    %v3103 = vunpack.c.0.s8 %v3102
    %v3104 = vperm.slane %v3098, %v3103
    %v3106 = vunpack.c.l.s4 1934713408
    %v3107 = vunpack.c.0.s8 %v3106
    %v3108 = vperm.slane %v3100, %v3107
    %v3109 = vrot.slane %v3092, 4
    %v3110 = vsel %vm218, 0.0, %v3109
    %v3111 = vrot.slane %v3096, 4
    %v3112 = vsel %vm218, 0.0, %v3111
    %v3113 = vrot.slane %v3104, 4
    %v3114 = vsel %vm218, 0.0, %v3113
    %v3115 = vrot.slane %v3108, 4
    %v3116 = vsel %vm218, 0.0, %v3115
    %v3117 = vrot.slane %v3030, 4
    %v3118 = vsel %vm218, %v3117, %v2972
    %v3119 = vrot.slane %v2972, 4
    %v3120 = vsel %vm218, %v3030, %v3119
    %v3122 = vunpack.c.l.s4 1983009808
    %v3123 = vunpack.c.0.s8 %v3122
    %v3124 = vperm.slane %v3118, %v3123
    %v3126 = vunpack.c.l.s4 1983009808
    %v3127 = vunpack.c.0.s8 %v3126
    %v3128 = vperm.slane %v3120, %v3127
    %v3129 = vrot.slane %v3059, 4
    %v3130 = vsel %vm218, %v3129, %v3001
    %v3131 = vrot.slane %v3001, 4
    %v3132 = vsel %vm218, %v3059, %v3131
    %v3134 = vunpack.c.l.s4 1983009808
    %v3135 = vunpack.c.0.s8 %v3134
    %v3136 = vperm.slane %v3130, %v3135
    %v3138 = vunpack.c.l.s4 1983009808
    %v3139 = vunpack.c.0.s8 %v3138
    %v3140 = vperm.slane %v3132, %v3139
    %v3141 = vrot.slane %v3136, 4
    %v3142 = vsel %vm218, %v3141, %v3124
    %v3143 = vrot.slane %v3124, 4
    %v3144 = vsel %vm218, %v3136, %v3143
    %v3146 = vunpack.c.l.s4 1934713408
    %v3147 = vunpack.c.0.s8 %v3146
    %v3148 = vperm.slane %v3142, %v3147
    %v3150 = vunpack.c.l.s4 1934713408
    %v3151 = vunpack.c.0.s8 %v3150
    %v3152 = vperm.slane %v3144, %v3151
    %v3153 = vrot.slane %v3140, 4
    %v3154 = vsel %vm218, %v3153, %v3128
    %v3155 = vrot.slane %v3128, 4
    %v3156 = vsel %vm218, %v3140, %v3155
    %v3158 = vunpack.c.l.s4 1934713408
    %v3159 = vunpack.c.0.s8 %v3158
    %v3160 = vperm.slane %v3154, %v3159
    %v3162 = vunpack.c.l.s4 1934713408
    %v3163 = vunpack.c.0.s8 %v3162
    %v3164 = vperm.slane %v3156, %v3163
    %v3165 = vrot.slane %v3148, 4
    %v3166 = vsel %vm218, 0.0, %v3165
    %v3167 = vrot.slane %v3152, 4
    %v3168 = vsel %vm218, 0.0, %v3167
    %v3169 = vrot.slane %v3160, 4
    %v3170 = vsel %vm218, 0.0, %v3169
    %v3171 = vrot.slane %v3164, 4
    %v3172 = vsel %vm218, 0.0, %v3171
    %v3173 = vsel %vm218, %v3111, %v3092
    %v3175 = vunpack.c.l.s4 1983009808
    %v3176 = vunpack.c.0.s8 %v3175
    %v3177 = vperm.slane %v3173, %v3176
    %v3178 = vrot.slane %v3112, 4
    %v3179 = vsel %vm218, %v3178, %v3110
    %v3181 = vunpack.c.l.s4 1983009808
    %v3182 = vunpack.c.0.s8 %v3181
    %v3183 = vperm.slane %v3179, %v3182
    %v3184 = vsel %vm218, %v3115, %v3104
    %v3186 = vunpack.c.l.s4 1983009808
    %v3187 = vunpack.c.0.s8 %v3186
    %v3188 = vperm.slane %v3184, %v3187
    %v3189 = vrot.slane %v3116, 4
    %v3190 = vsel %vm218, %v3189, %v3114
    %v3192 = vunpack.c.l.s4 1983009808
    %v3193 = vunpack.c.0.s8 %v3192
    %v3194 = vperm.slane %v3190, %v3193
    %v3195 = vrot.slane %v3183, 4
    %v3196 = vsel %vm218, %v3195, %v3177
    %v3197 = vrot.slane %v3177, 4
    %v3198 = vsel %vm218, %v3183, %v3197
    %v3200 = vunpack.c.l.s4 1934713408
    %v3201 = vunpack.c.0.s8 %v3200
    %v3202 = vperm.slane %v3196, %v3201
    %v3204 = vunpack.c.l.s4 1934713408
    %v3205 = vunpack.c.0.s8 %v3204
    %v3206 = vperm.slane %v3198, %v3205
    %v3207 = vrot.slane %v3194, 4
    %v3208 = vsel %vm218, %v3207, %v3188
    %v3209 = vrot.slane %v3188, 4
    %v3210 = vsel %vm218, %v3194, %v3209
    %v3212 = vunpack.c.l.s4 1934713408
    %v3213 = vunpack.c.0.s8 %v3212
    %v3214 = vperm.slane %v3208, %v3213
    %v3216 = vunpack.c.l.s4 1934713408
    %v3217 = vunpack.c.0.s8 %v3216
    %v3218 = vperm.slane %v3210, %v3217
    %v3219 = vrot.slane %v3214, 4
    %v3220 = vsel %vm218, %v3219, %v3202
    %v3221 = vrot.slane %v3202, 4
    %v3222 = vsel %vm218, %v3214, %v3221
    %v3223 = vrot.slane %v3218, 4
    %v3224 = vsel %vm218, %v3223, %v3206
    %v3225 = vrot.slane %v3206, 4
    %v3226 = vsel %vm218, %v3218, %v3225
    %v3227 = vsel %vm218, %v3167, %v3148
    %v3229 = vunpack.c.l.s4 1983009808
    %v3230 = vunpack.c.0.s8 %v3229
    %v3231 = vperm.slane %v3227, %v3230
    %v3232 = vrot.slane %v3168, 4
    %v3233 = vsel %vm218, %v3232, %v3166
    %v3235 = vunpack.c.l.s4 1983009808
    %v3236 = vunpack.c.0.s8 %v3235
    %v3237 = vperm.slane %v3233, %v3236
    %v3238 = vsel %vm218, %v3171, %v3160
    %v3240 = vunpack.c.l.s4 1983009808
    %v3241 = vunpack.c.0.s8 %v3240
    %v3242 = vperm.slane %v3238, %v3241
    %v3243 = vrot.slane %v3172, 4
    %v3244 = vsel %vm218, %v3243, %v3170
    %v3246 = vunpack.c.l.s4 1983009808
    %v3247 = vunpack.c.0.s8 %v3246
    %v3248 = vperm.slane %v3244, %v3247
    %v3249 = vrot.slane %v3237, 4
    %v3250 = vsel %vm218, %v3249, %v3231
    %v3251 = vrot.slane %v3231, 4
    %v3252 = vsel %vm218, %v3237, %v3251
    %v3254 = vunpack.c.l.s4 1934713408
    %v3255 = vunpack.c.0.s8 %v3254
    %v3256 = vperm.slane %v3250, %v3255
    %v3258 = vunpack.c.l.s4 1934713408
    %v3259 = vunpack.c.0.s8 %v3258
    %v3260 = vperm.slane %v3252, %v3259
    %v3261 = vrot.slane %v3248, 4
    %v3262 = vsel %vm218, %v3261, %v3242
    %v3263 = vrot.slane %v3242, 4
    %v3264 = vsel %vm218, %v3248, %v3263
    %v3266 = vunpack.c.l.s4 1934713408
    %v3267 = vunpack.c.0.s8 %v3266
    %v3268 = vperm.slane %v3262, %v3267
    %v3270 = vunpack.c.l.s4 1934713408
    %v3271 = vunpack.c.0.s8 %v3270
    %v3272 = vperm.slane %v3264, %v3271
    %v3273 = vrot.slane %v3268, 4
    %v3274 = vsel %vm218, %v3273, %v3256
    %v3275 = vrot.slane %v3256, 4
    %v3276 = vsel %vm218, %v3268, %v3275
    %v3277 = vrot.slane %v3272, 4
    %v3278 = vsel %vm218, %v3277, %v3260
    %v3279 = vrot.slane %v3260, 4
    %v3280 = vsel %vm218, %v3272, %v3279
    %3283 = vrot.lane.b32.xlu0 %v3222, 8
    %v3284 = vpop.permute.xlu0 %3283
    %3285 = vrot.lane.b32.xlu0 %v3276, 8
    %v3286 = vpop.permute.xlu0 %3285
    %3291 = vrot.lane.b32.xlu0 %v3224, 16
    %v3292 = vpop.permute.xlu0 %3291
    %3293 = vrot.lane.b32.xlu0 %v3278, 16
    %v3294 = vpop.permute.xlu0 %3293
    %3299 = vrot.lane.b32.xlu0 %v3226, 24
    %v3300 = vpop.permute.xlu0 %3299
    %3301 = vrot.lane.b32.xlu0 %v3280, 24
    %v3302 = vpop.permute.xlu0 %3301
    %v3305 = vsel %vm886, %v3220, %v3284
    %v3306 = vsel %vm886, %v3274, %v3286
    %v3307 = vsel %vm1043, %v3305, %v3292
    %v3308 = vsel %vm1043, %v3306, %v3294
    %v3309 = vsel %vm1600, %v3307, %v3300
    %v3310 = vsel %vm1600, %v3308, %v3302
    %v3311 = vperm.slane %v1830, 1
    %v3313 = vsel %vm119, %v3309, 0
    %v3316 = vsel %vm119, %v3310, 0
    %3318 = vmatpush.msra.mxu0 0.0
    %3319 = vmatpush.msra.mxu0 0.0
    %3320 = vmatpush.msra.mxu0 0.0
    %3321 = vmatpush.msra.mxu0 0.0
    %3322 = vmatpush.msra.mxu0 0.0
    %3323 = vmatpush.msra.mxu0 0.0
    %3324 = vmatpush.msra.mxu0 0.0
    %3325 = vmatpush.msra.mxu0 0.0
    %3326 = vmatpush.msra.mxu0 0.0
    %3327 = vmatpush.msra.mxu0 0.0
    %3328 = vmatpush.msra.mxu0 0.0
    %3329 = vmatpush.msra.mxu0 0.0
    %3330 = vmatpush.msra.mxu0 %v1815
    %3331 = vmatpush.msra.mxu0 %v1814
    %3332 = vmatpush.msra.mxu0 %v1813
    %3333 = vmatpush.msra.mxu0 %v1812
    %3334 = vmatmul.f32.gmra.mxu0 %v3313
    %v3335 = vpop.f32.mrf.mxu0
    %v3336 = vadd.f32 %v3311, %v3335
    %3337 = vmatmul.f32.gmra.mxu0 %v3316
    %v3338 = vpop.f32.mrf.mxu0
    %v3339 = vadd.f32 %v3311, %v3338
    %3340 = vdwg.mxu0
    %v3341 = vadd.f32 %v1805, %v3336
    %v3342 = vadd.f32 %v1806, %v3339
    %v3343 = vsel %vm119, %v3341, 0.0
    %3344 = vadd.xlane.f32.xlu0 %v3343
    %v3345 = vpop.xlane.xlu0 %3344
    %v3346 = vsel %vm119, %v3342, 0.0
    %3347 = vadd.xlane.f32.xlu0 %v3346
    %v3348 = vpop.xlane.xlu0 %3347
    %v3349 = vmul.f32 %v3345, %v1647
    %v3350 = vmul.f32 %v3348, %v1647
    %v3351 = vsub.f32 %v3341, %v3349
    %v3352 = vsub.f32 %v3342, %v3350
    %v3353 = vmul.f32 %v3351, %v3351
    %v3354 = vmul.f32 %v3352, %v3352
    %v3355 = vsel %vm119, %v3353, 0.0
    %3356 = vadd.xlane.f32.xlu0 %v3355
    %v3357 = vpop.xlane.xlu0 %3356
    %v3358 = vsel %vm119, %v3354, 0.0
    %3359 = vadd.xlane.f32.xlu0 %v3358
    %v3360 = vpop.xlane.xlu0 %3359
    %v3361 = vmul.f32 %v3357, %v1647
    %v3362 = vmul.f32 %v3360, %v1647
    %v3363 = vadd.f32 %v3361, 1e-05
    %v3364 = vadd.f32 %v3362, 1e-05
    %v3365 = vrsqrt.pop %v3363
    %v3366 = vmul.f32 %v3365, %v3363
    %v3367 = vmul.f32 %v3366, %v3365
    %v3368 = vmul.f32 0.5, %v3367
    %v3369 = vsub.f32 1.5, %v3368
    %v3370 = vmul.f32 %v3365, %v3369
    %vm3371 = vweird.f32 %v3363
    %vm3372 = vweird.f32 %v3365
    %vm3373 = vmor %vm3371, %vm3372
    %v3374 = vsel %vm3373, %v3365, %v3370
    %v3375 = vrsqrt.pop %v3364
    %v3376 = vmul.f32 %v3375, %v3364
    %v3377 = vmul.f32 %v3376, %v3375
    %v3378 = vmul.f32 0.5, %v3377
    %v3379 = vsub.f32 1.5, %v3378
    %v3380 = vmul.f32 %v3375, %v3379
    %vm3381 = vweird.f32 %v3364
    %vm3382 = vweird.f32 %v3375
    %vm3383 = vmor %vm3381, %vm3382
    %v3384 = vsel %vm3383, %v3375, %v3380
    %v3385 = vmul.f32 %v3351, %v3374
    %v3386 = vmul.f32 %v3352, %v3384
    %v3387 = vperm.slane %v1830, 4
    %v3388 = vmul.f32 %v3385, %v3387
    %v3389 = vmul.f32 %v3386, %v3387
    %v3390 = vperm.slane %v1830, 5
    %v3391 = vadd.f32 %v3388, %v3390
    %v3392 = vadd.f32 %v3389, %v3390
    %v3393 = vperm.slane %v1830, 2
    %v3395 = vsel %vm119, %v3391, 0
    %v3398 = vsel %vm119, %v3392, 0
    %3400 = vmatpush.msra.mxu0 0.0
    %3401 = vmatpush.msra.mxu0 0.0
    %3402 = vmatpush.msra.mxu0 0.0
    %3403 = vmatpush.msra.mxu0 0.0
    %3404 = vmatpush.msra.mxu0 0.0
    %3405 = vmatpush.msra.mxu0 0.0
    %3406 = vmatpush.msra.mxu0 0.0
    %3407 = vmatpush.msra.mxu0 0.0
    %3408 = vmatpush.msra.mxu0 0.0
    %3409 = vmatpush.msra.mxu0 0.0
    %3410 = vmatpush.msra.mxu0 0.0
    %3411 = vmatpush.msra.mxu0 0.0
    %3412 = vmatpush.msra.mxu0 %v1819
    %3413 = vmatpush.msra.mxu0 %v1818
    %3414 = vmatpush.msra.mxu0 %v1817
    %3415 = vmatpush.msra.mxu0 %v1816
    %3416 = vmatmul.f32.gmra.mxu0 %v3395
    %v3417 = vpop.f32.mrf.mxu0
    %v3418 = vadd.f32 %v3393, %v3417
    %3419 = vmatmul.f32.gmra.mxu0 %v3398
    %v3420 = vpop.f32.mrf.mxu0
    %v3421 = vadd.f32 %v3393, %v3420
    %3422 = vdwg.mxu0
    %v3423 = vmax.f32 %v3418, 0.0
    %v3424 = vmax.f32 %v3421, 0.0
    %v3425 = vperm.slane %v1830, 3
    %v3427 = vsel %vm1725, %v3423, 0
    %v3430 = vsel %vm1725, %v3424, 0
    %3432 = vmatpush.msra.mxu0 0.0
    %3433 = vmatpush.msra.mxu0 0.0
    %3434 = vmatpush.msra.mxu0 0.0
    %3435 = vmatpush.msra.mxu0 0.0
    %3436 = vmatpush.msra.mxu0 0.0
    %3437 = vmatpush.msra.mxu0 0.0
    %3438 = vmatpush.msra.mxu0 0.0
    %3439 = vmatpush.msra.mxu0 0.0
    %3440 = vmatpush.msra.mxu0 %v1828
    %3441 = vmatpush.msra.mxu0 %v1827
    %3442 = vmatpush.msra.mxu0 %v1826
    %3443 = vmatpush.msra.mxu0 %v1825
    %3444 = vmatpush.msra.mxu0 %v1824
    %3445 = vmatpush.msra.mxu0 %v1823
    %3446 = vmatpush.msra.mxu0 %v1822
    %3447 = vmatpush.msra.mxu0 %v1821
    %3448 = vmatmul.f32.gmra.mxu0 %v3427
    %v3449 = vpop.f32.mrf.mxu0
    %v3450 = vadd.f32 %v3425, %v3449
    %3451 = vmatmul.f32.gmra.mxu0 %v3430
    %v3452 = vpop.f32.mrf.mxu0
    %v3453 = vadd.f32 %v3425, %v3452
    %3454 = vdwg.mxu0
    %v3455 = vadd.f32 %v3391, %v3450
    %v3456 = vadd.f32 %v3392, %v3453
    %v3457 = vsel %vm119, %v3455, 0.0
    %3458 = vadd.xlane.f32.xlu0 %v3457
    %v3459 = vpop.xlane.xlu0 %3458
    %v3460 = vsel %vm119, %v3456, 0.0
    %3461 = vadd.xlane.f32.xlu0 %v3460
    %v3462 = vpop.xlane.xlu0 %3461
    %v3463 = vmul.f32 %v3459, %v1647
    %v3464 = vmul.f32 %v3462, %v1647
    %v3465 = vsub.f32 %v3455, %v3463
    %v3466 = vsub.f32 %v3456, %v3464
    %v3467 = vmul.f32 %v3465, %v3465
    %v3468 = vmul.f32 %v3466, %v3466
    %v3469 = vsel %vm119, %v3467, 0.0
    %3470 = vadd.xlane.f32.xlu0 %v3469
    %v3471 = vpop.xlane.xlu0 %3470
    %v3472 = vsel %vm119, %v3468, 0.0
    %3473 = vadd.xlane.f32.xlu0 %v3472
    %v3474 = vpop.xlane.xlu0 %3473
    %v3475 = vmul.f32 %v3471, %v1647
    %v3476 = vmul.f32 %v3474, %v1647
    %v3477 = vadd.f32 %v3475, 1e-05
    %v3478 = vadd.f32 %v3476, 1e-05
    %v3479 = vrsqrt.pop %v3477
    %v3480 = vmul.f32 %v3479, %v3477
    %v3481 = vmul.f32 %v3480, %v3479
    %v3482 = vmul.f32 0.5, %v3481
    %v3483 = vsub.f32 1.5, %v3482
    %v3484 = vmul.f32 %v3479, %v3483
    %vm3485 = vweird.f32 %v3477
    %vm3486 = vweird.f32 %v3479
    %vm3487 = vmor %vm3485, %vm3486
    %v3488 = vsel %vm3487, %v3479, %v3484
    %v3489 = vrsqrt.pop %v3478
    %v3490 = vmul.f32 %v3489, %v3478
    %v3491 = vmul.f32 %v3490, %v3489
    %v3492 = vmul.f32 0.5, %v3491
    %v3493 = vsub.f32 1.5, %v3492
    %v3494 = vmul.f32 %v3489, %v3493
    %vm3495 = vweird.f32 %v3478
    %vm3496 = vweird.f32 %v3489
    %vm3497 = vmor %vm3495, %vm3496
    %v3498 = vsel %vm3497, %v3489, %v3494
    %v3499 = vmul.f32 %v3465, %v3488
    %v3500 = vmul.f32 %v3466, %v3498
    %v3501 = vperm.slane %v1830, 6
    %v3502 = vmul.f32 %v3499, %v3501
    %v3503 = vmul.f32 %v3500, %v3501
    %v3504 = vperm.slane %v1830, 7
    %v3505 = vadd.f32 %v3502, %v3504
    %v3506 = vadd.f32 %v3503, %v3504
    %3507 = vst.msk [vmem:[#allocation7] sm:$0xff] %vm119, %v3505
    %3508 = vst.msk [vmem:[#allocation7 + $0x8] sm:$0xff] %vm119, %v3506
    // Predicated region
    $region26: #{transformer_encoder.1} parent=1 // pred_check
      _
    $region27: #{transformer_encoder.1} parent=1 // pred_check_branch
      %3510 = sbr.rel (0) target = $region29
    $region28: #{transformer_encoder.1} parent=1 // pred_region
      %3512 = vsyncadd [#allocation4], 0
      %s3513 = sshll.u32 [#allocation7], 4
      %s3514 = int_to_ptr.vmem [resolvable:$true] %s3513
      %s3515 = sshll.u32 %s4, 4
      %s3516 = int_to_ptr.hbm [resolvable:$true] %s3515
      %3521 = dma.vmem_to_hbm [thread:$0]  %s3514, 256, %s3516, [#allocation4], 128, 128, 8
    $region29: #{transformer_encoder.1} parent=1 // pred_fallthru
      _
    // Predicated region
    $region30: #{transformer_encoder.1} parent=1 // pred_check
      _
    $region31: #{transformer_encoder.1} parent=1 // pred_check_branch
      %3523 = sbr.rel (0) target = $region33
    $region32: #{transformer_encoder.1} parent=1 // pred_region
      %3525 = dma.done [#allocation4], 256
    $region33: #{transformer_encoder.1} parent=1 // pred_fallthru
      _
    %3526 = vsyncpa [#allocation3], 1
    %3527 = vsyncpa [#allocation6], 1
    %3528 = vsyncpa [#allocation4], 1

</llo_original>
